<compile_context>
chip_gen: v7x
topology: tpu7x:2x2x1
jax: 0.10.0
libtpu: 0.0.40
codegen_flags: <defaults>
</compile_context>

<pallas_src>
import math
import functools

import jax
import jax.numpy as jnp
from jax.experimental import pallas as pl
from jax.experimental.pallas import tpu as pltpu

# ----------------------------- config --------------------------------------
D_MODEL = 32
HEADS = 4
D_FF = 64
DH = D_MODEL // HEADS
NORM_EPS = 1e-6
NEG_INF = -1e18          # onmt MHA uses masked_fill(mask, -1e18)
_SP_W = max(D_MODEL, D_FF)   # lane width of packed small-param slab
_N_SMALL = 6                 # rows: ln1g, ln1b, lnfg, lnfb, b2, b1


# ----------------------------- kernel --------------------------------------
def _decoder_layer_kernel(x_ref, sp_ref, wqkv_ref, wslab_ref, out_ref,
                          *, batch, seq):
    """Whole (batch*seq, D) activation slab resident in VMEM; no grid."""
    x2 = x_ref[...]                                          # (B*T, D)

    # ---- unpack small-param slab (static, offset-0 lane slices) ----
    ln1g = sp_ref[0:1, 0:D_MODEL]
    ln1b = sp_ref[1:2, 0:D_MODEL]
    lnfg = sp_ref[2:3, 0:D_MODEL]
    lnfb = sp_ref[3:4, 0:D_MODEL]
    b2 = sp_ref[4:5, 0:D_MODEL]
    b1 = sp_ref[5:6, 0:D_FF]
    pad = sp_ref[_N_SMALL:_N_SMALL + batch, 0:seq]           # (B, T), 1.0 = pad key

    # ---- layer_norm_1 (pre-norm for self-attention) ----
    mu = jnp.mean(x2, axis=-1, keepdims=True)
    var = jnp.mean((x2 - mu) ** 2, axis=-1, keepdims=True)
    ln1 = (x2 - mu) * jax.lax.rsqrt(var + NORM_EPS) * ln1g + ln1b

    # ---- causal + padding (+patch) additive mask built in-kernel ----
    col = jax.lax.broadcasted_iota(jnp.int32, (batch, seq, seq), 2)
    row = jax.lax.broadcasted_iota(jnp.int32, (batch, seq, seq), 1)
    future_f = (col > row).astype(jnp.float32)
    pad_b = jnp.broadcast_to(pad[:, None, :], (batch, seq, seq))
    masked_f = jnp.maximum(pad_b, future_f)                  # 1.0 where masked
    # patch_mask: fully-masked rows become unmasked (matches onmt semantics)
    row_keep = (jnp.min(masked_f, axis=-1, keepdims=True) < 0.5).astype(jnp.float32)
    bias = masked_f * row_keep * NEG_INF                     # (B, T, T)

    # ---- multi-headed self attention; residual folded into accumulator ----
    acc = x2                                                 # (B*T, D)
    attn0 = None
    for h in range(HEADS):                                   # static unroll
        # per-head projections: leading-axis ref indexing only (no lane slices);
        # 1/sqrt(DH) already folded into the Q weight at pack time.
        qh = jnp.dot(ln1, wqkv_ref[h], preferred_element_type=jnp.float32)
        kh = jnp.dot(ln1, wqkv_ref[HEADS + h], preferred_element_type=jnp.float32)
        vh = jnp.dot(ln1, wqkv_ref[2 * HEADS + h], preferred_element_type=jnp.float32)

        s = jnp.einsum('bqd,bkd->bqk',
                       qh.reshape(batch, seq, DH), kh.reshape(batch, seq, DH),
                       preferred_element_type=jnp.float32) + bias       # (B, T, T)
        m = jnp.max(s, axis=-1, keepdims=True)
        e = jnp.exp(s - m)
        l = jnp.sum(e, axis=-1, keepdims=True)
        inv = pl.reciprocal(l, approx=True)                  # EUP slot
        inv = inv * (2.0 - l * inv)                          # one Newton step
        p = e * inv
        if h == 0:
            attn0 = p.reshape(batch * seq, seq)              # top_attn = attns[:, 0]

        ctx_h = jnp.einsum('bqk,bkd->bqd', p, vh.reshape(batch, seq, DH),
                           preferred_element_type=jnp.float32)
        # per-head output projection: Wo row slice is sublane-aligned (mult of 8)
        acc = acc + jnp.dot(ctx_h.reshape(batch * seq, DH),
                            wslab_ref[h * DH:(h + 1) * DH, 0:D_MODEL],
                            preferred_element_type=jnp.float32)

    res = acc                                                # attn_out + x

    # ---- PositionwiseFeedForward: ln -> w1 -> relu -> w2 -> +residual ----
    mu2 = jnp.mean(res, axis=-1, keepdims=True)
    var2 = jnp.mean((res - mu2) ** 2, axis=-1, keepdims=True)
    lnf = (res - mu2) * jax.lax.rsqrt(var2 + NORM_EPS) * lnfg + lnfb
    h1 = jnp.dot(lnf, wslab_ref[D_MODEL:2 * D_MODEL, 0:D_FF],
                 preferred_element_type=jnp.float32) + b1
    h1 = jnp.maximum(h1, 0.0)                                # relu
    ffn = jnp.dot(h1, wslab_ref[2 * D_MODEL:2 * D_MODEL + D_FF, 0:D_MODEL],
                  preferred_element_type=jnp.float32) + b2
    layer_out = ffn + res

    # ---- single fused lane-dense output store: [layer_out | top_attn] ----
    out_ref[...] = jnp.concatenate([layer_out, attn0], axis=-1)   # (B*T, D+T)


# -------------------- one-time parameter packing ----------------------------
def pack_static_params(params):
    """Pack the 12 raw parameters into 3 transfer slabs (call ONCE, not per step)."""
    ln1g, ln1b, wq, wk, wv, wo, lnfg, lnfb, w1, b1, w2, b2 = params

    def padrow(v):                                  # (1, n) -> (1, _SP_W)
        return jnp.pad(v, ((0, 0), (0, _SP_W - v.shape[1])))

    small = jnp.concatenate(
        [padrow(ln1g), padrow(ln1b), padrow(lnfg), padrow(lnfb),
         padrow(b2), padrow(b1)], axis=0)           # (_N_SMALL, _SP_W)

    # fold 1/sqrt(DH) into the Q weight columns; head split onto leading axis.
    wq_s = wq / math.sqrt(DH)
    def heads(w):                                   # (D, H*DH) -> (H, D, DH)
        return w.reshape(D_MODEL, HEADS, DH).transpose(1, 0, 2)
    wqkv = jnp.concatenate([heads(wq_s), heads(wk), heads(wv)], axis=0)  # (3H, D, DH)

    # Wo / W1 / W2 stacked along the sublane axis, lane-padded to _SP_W.
    wslab = jnp.concatenate(
        [jnp.pad(wo, ((0, 0), (0, _SP_W - D_MODEL))),
         jnp.pad(w1, ((0, 0), (0, _SP_W - D_FF))),
         jnp.pad(w2, ((0, 0), (0, _SP_W - D_MODEL)))], axis=0)  # (2D+D_FF, _SP_W)

    return small, wqkv, wslab


# ----------------------------- wrapper --------------------------------------
def transformer_decoder_layer(x, tgt_pad_mask, packed_params):
    """x: (B, T, D) f32;  tgt_pad_mask: (B, 1, T) bool (True = padding token)."""
    B, T, D = x.shape
    small, wqkv, wslab = packed_params

    x2d = x.reshape(B * T, D)                                  # lane-dense slab
    pad_rows = jnp.pad(tgt_pad_mask.reshape(B, T).astype(jnp.float32),
                       ((0, 0), (0, _SP_W - T)))
    sp = jnp.concatenate([small, pad_rows], axis=0)            # (_N_SMALL+B, _SP_W)

    vmem = lambda: pl.BlockSpec(memory_space=pltpu.MemorySpace.VMEM)
    kernel = functools.partial(_decoder_layer_kernel, batch=B, seq=T)

    fused = pl.pallas_call(
        kernel,
        out_shape=jax.ShapeDtypeStruct((B * T, D + T), jnp.float32),
        in_specs=[vmem(), vmem(), vmem(), vmem()],
        out_specs=vmem(),
    )(x2d, sp, wqkv, wslab)

    layer_out = fused[:, :D].reshape(B, T, D)
    top_attn = fused[:, D:D + T].reshape(B, T, T)
    # attn_align is always None for this layer (no full-context alignment pass).
    return layer_out, top_attn, None


# ----------------------- mask construction (reference glue) -----------------
def compute_dec_mask(tgt_pad_mask, sliding_window=0, future=False):
    """tgt_pad_mask: (B, 1, T) bool, True = padding.  Returns (B, T, T) bool."""
    T = tgt_pad_mask.shape[-1]
    if not future:
        future_mask = jnp.tril(jnp.ones((T, T), dtype=bool), 0)
        if sliding_window > 0:
            future_mask = jnp.triu(future_mask, -sliding_window)
        future_mask = ~future_mask[None, :, :]                     # (1, T, T)
        comb = jnp.logical_or(tgt_pad_mask, future_mask)           # (B, T, T)
        patch_mask = ~jnp.all(comb, axis=2, keepdims=True)
        patch_mask = jnp.broadcast_to(patch_mask, comb.shape)
        dec_mask = jnp.logical_and(comb, patch_mask)
    else:
        dec_mask = jnp.broadcast_to(tgt_pad_mask, (tgt_pad_mask.shape[0], T, T))
    return dec_mask


# ----------------------- pure-JAX reference (sanity) ------------------------
def _reference(x, tgt_pad_mask, params):
    ln1g, ln1b, wq, wk, wv, wo, lnfg, lnfb, w1, b1, w2, b2 = params

    def ln(t, g, b):
        mu = jnp.mean(t, -1, keepdims=True)
        var = jnp.mean((t - mu) ** 2, -1, keepdims=True)
        return (t - mu) / jnp.sqrt(var + NORM_EPS) * g + b

    B, T, D = x.shape
    dec_mask = compute_dec_mask(tgt_pad_mask)                      # (B, T, T) bool
    n = ln(x, ln1g[0], ln1b[0])
    q = n @ wq; k = n @ wk; v = n @ wv
    q = q.reshape(B, T, HEADS, DH).transpose(0, 2, 1, 3) / math.sqrt(DH)
    k = k.reshape(B, T, HEADS, DH).transpose(0, 2, 1, 3)
    v = v.reshape(B, T, HEADS, DH).transpose(0, 2, 1, 3)
    s = jnp.einsum("bhqd,bhkd->bhqk", q, k)
    s = jnp.where(dec_mask[:, None], NEG_INF, s)
    p = jax.nn.softmax(s, axis=-1)
    ctx = jnp.einsum("bhqk,bhkd->bhqd", p, v).transpose(0, 2, 1, 3).reshape(B, T, D)
    res = ctx @ wo + x
    nf = ln(res, lnfg[0], lnfb[0])
    ffn = jnp.maximum(nf @ w1 + b1[0], 0.0) @ w2 + b2[0]
    return ffn + res, p[:, 0]


# ----------------------------- main ------------------------------------------
if __name__ == "__main__":
    key = jax.random.PRNGKey(0)
    B, T = 2, 8
    ks = jax.random.split(key, 12)

    x = jax.random.normal(ks[0], (B, T, D_MODEL), dtype=jnp.float32)

    # pad mask: last two tokens of batch element 1 are padding
    pad = jnp.zeros((B, 1, T), dtype=bool).at[1, 0, -2:].set(True)

    def linear_w(k, fan_in, fan_out):
        # deterministic synthetic init (weights stored as (in, out): y = x @ W)
        return (jax.random.normal(k, (fan_in, fan_out), dtype=jnp.float32)
                / math.sqrt(fan_in))

    params = (
        jnp.ones((1, D_MODEL), jnp.float32),   # ln1 gamma
        jnp.zeros((1, D_MODEL), jnp.float32),  # ln1 beta
        linear_w(ks[1], D_MODEL, D_MODEL),     # Wq
        linear_w(ks[2], D_MODEL, D_MODEL),     # Wk
        linear_w(ks[3], D_MODEL, D_MODEL),     # Wv
        linear_w(ks[4], D_MODEL, D_MODEL),     # Wo   (add_qkvbias=False -> no biases)
        jnp.ones((1, D_MODEL), jnp.float32),   # ffn layer_norm gamma
        jnp.zeros((1, D_MODEL), jnp.float32),  # ffn layer_norm beta
        linear_w(ks[5], D_MODEL, D_FF),        # W1
        0.01 * jax.random.normal(ks[6], (1, D_FF), dtype=jnp.float32),     # b1
        linear_w(ks[7], D_FF, D_MODEL),        # W2
        0.01 * jax.random.normal(ks[8], (1, D_MODEL), dtype=jnp.float32),  # b2
    )

    # One-time packing (hoisted out of the per-call path).
    packed = jax.tree_util.tree_map(jax.block_until_ready, pack_static_params(params))

    layer_out, top_attn, attn_align = transformer_decoder_layer(x, pad, packed)
    jax.block_until_ready((layer_out, top_attn))

    ref_out, ref_attn = _reference(x, pad, params)
    assert jnp.allclose(layer_out, ref_out, atol=1e-3, rtol=1e-3), "layer_out mismatch"
    assert jnp.allclose(top_attn, ref_attn, atol=1e-3, rtol=1e-3), "top_attn mismatch"
    assert attn_align is None

    print("KERNEL_OK")
</pallas_src>

<mosaic_0001>
module attributes {stable_mosaic.version = 11 : i64} {
  func.func @_decoder_layer_kernel(%arg0: memref<16x32xf32, #tpu.memory_space<vmem>>, %arg1: memref<8x64xf32, #tpu.memory_space<vmem>>, %arg2: memref<12x32x8xf32, #tpu.memory_space<vmem>>, %arg3: memref<128x64xf32, #tpu.memory_space<vmem>>, %arg4: memref<16x40xf32, #tpu.memory_space<vmem>>) attributes {dimension_semantics = [], scalar_prefetch = 0 : i64, scratch_operands = 0 : i64, tpu.core_type = #tpu.core_type<tc>} {
    %c0 = arith.constant 0 : index
    %c0_0 = arith.constant 0 : index
    %0 = vector.load %arg0[%c0, %c0_0] : memref<16x32xf32, #tpu.memory_space<vmem>>, vector<16x32xf32>
    %c0_1 = arith.constant 0 : index
    %c0_2 = arith.constant 0 : index
    %1 = vector.load %arg1[%c0_1, %c0_2] : memref<8x64xf32, #tpu.memory_space<vmem>>, vector<1x32xf32>
    %c1 = arith.constant 1 : index
    %c0_3 = arith.constant 0 : index
    %2 = vector.load %arg1[%c1, %c0_3] : memref<8x64xf32, #tpu.memory_space<vmem>>, vector<1x32xf32>
    %c2 = arith.constant 2 : index
    %c0_4 = arith.constant 0 : index
    %3 = vector.load %arg1[%c2, %c0_4] : memref<8x64xf32, #tpu.memory_space<vmem>>, vector<1x32xf32>
    %c3 = arith.constant 3 : index
    %c0_5 = arith.constant 0 : index
    %4 = vector.load %arg1[%c3, %c0_5] : memref<8x64xf32, #tpu.memory_space<vmem>>, vector<1x32xf32>
    %c4 = arith.constant 4 : index
    %c0_6 = arith.constant 0 : index
    %5 = vector.load %arg1[%c4, %c0_6] : memref<8x64xf32, #tpu.memory_space<vmem>>, vector<1x32xf32>
    %c5 = arith.constant 5 : index
    %c0_7 = arith.constant 0 : index
    %6 = vector.load %arg1[%c5, %c0_7] : memref<8x64xf32, #tpu.memory_space<vmem>>, vector<1x64xf32>
    %c6 = arith.constant 6 : index
    %c0_8 = arith.constant 0 : index
    %7 = vector.load %arg1[%c6, %c0_8] : memref<8x64xf32, #tpu.memory_space<vmem>>, vector<2x8xf32>
    %cst = arith.constant dense<0.000000e+00> : vector<16xf32>
    %8 = vector.multi_reduction <add>, %0, %cst [1] : vector<16x32xf32> to vector<16xf32>
    %9 = vector.shape_cast %8 : vector<16xf32> to vector<16x1xf32>
    %cst_9 = arith.constant 3.200000e+01 : f32
    %10 = vector.broadcast %cst_9 : f32 to vector<16x1xf32>
    %11 = arith.divf %9, %10 : vector<16x1xf32>
    %12 = vector.broadcast %11 : vector<16x1xf32> to vector<16x32xf32>
    %13 = arith.subf %0, %12 : vector<16x32xf32>
    %14 = arith.mulf %13, %13 : vector<16x32xf32>
    %cst_10 = arith.constant dense<0.000000e+00> : vector<16xf32>
    %15 = vector.multi_reduction <add>, %14, %cst_10 [1] : vector<16x32xf32> to vector<16xf32>
    %16 = vector.shape_cast %15 : vector<16xf32> to vector<16x1xf32>
    %cst_11 = arith.constant 3.200000e+01 : f32
    %17 = vector.broadcast %cst_11 : f32 to vector<16x1xf32>
    %18 = arith.divf %16, %17 : vector<16x1xf32>
    %19 = vector.broadcast %11 : vector<16x1xf32> to vector<16x32xf32>
    %20 = arith.subf %0, %19 : vector<16x32xf32>
    %cst_12 = arith.constant 9.99999997E-7 : f32
    %21 = vector.broadcast %cst_12 : f32 to vector<16x1xf32>
    %22 = arith.addf %18, %21 : vector<16x1xf32>
    %23 = math.rsqrt %22 : vector<16x1xf32>
    %24 = vector.broadcast %23 : vector<16x1xf32> to vector<16x32xf32>
    %25 = arith.mulf %20, %24 : vector<16x32xf32>
    %26 = vector.broadcast %1 : vector<1x32xf32> to vector<16x32xf32>
    %27 = arith.mulf %25, %26 : vector<16x32xf32>
    %28 = vector.broadcast %2 : vector<1x32xf32> to vector<16x32xf32>
    %29 = arith.addf %27, %28 : vector<16x32xf32>
    %30 = tpu.iota {dimensions = array<i32: 2>} : vector<2x8x8xi32>
    %31 = tpu.iota {dimensions = array<i32: 1>} : vector<2x8x8xi32>
    %32 = arith.cmpi sgt, %30, %31 : vector<2x8x8xi32>
    %33 = arith.extui %32 : vector<2x8x8xi1> to vector<2x8x8xi32>
    %34 = arith.sitofp %33 : vector<2x8x8xi32> to vector<2x8x8xf32>
    %35 = vector.shape_cast %7 : vector<2x8xf32> to vector<2x1x8xf32>
    %36 = vector.shape_cast %35 : vector<2x1x8xf32> to vector<2x1x8xf32>
    %37 = vector.broadcast %36 : vector<2x1x8xf32> to vector<2x8x8xf32>
    %38 = arith.maximumf %37, %34 : vector<2x8x8xf32>
    %cst_13 = arith.constant dense<0x7F800000> : vector<2x8xf32>
    %39 = vector.multi_reduction <minimumf>, %38, %cst_13 [2] : vector<2x8x8xf32> to vector<2x8xf32>
    %40 = vector.shape_cast %39 : vector<2x8xf32> to vector<2x8x1xf32>
    %cst_14 = arith.constant 5.000000e-01 : f32
    %41 = vector.broadcast %cst_14 : f32 to vector<2x8x1xf32>
    %42 = arith.cmpf olt, %40, %41 : vector<2x8x1xf32>
    %43 = arith.extui %42 : vector<2x8x1xi1> to vector<2x8x1xi32>
    %44 = arith.sitofp %43 : vector<2x8x1xi32> to vector<2x8x1xf32>
    %45 = vector.broadcast %44 : vector<2x8x1xf32> to vector<2x8x8xf32>
    %46 = arith.mulf %38, %45 : vector<2x8x8xf32>
    %cst_15 = arith.constant -9.99999984E+17 : f32
    %47 = vector.broadcast %cst_15 : f32 to vector<2x8x8xf32>
    %48 = arith.mulf %46, %47 : vector<2x8x8xf32>
    %c0_16 = arith.constant 0 : index
    %c0_17 = arith.constant 0 : index
    %c0_18 = arith.constant 0 : index
    %49 = vector.load %arg2[%c0_16, %c0_17, %c0_18] : memref<12x32x8xf32, #tpu.memory_space<vmem>>, vector<1x32x8xf32>
    %50 = vector.shape_cast %49 : vector<1x32x8xf32> to vector<32x8xf32>
    %cst_19 = arith.constant dense<0.000000e+00> : vector<16x8xf32>
    %51 = tpu.matmul %29, %50, %cst_19 {dimension_numbers = #tpu.dot_dimension_numbers<[1], [0], [0], [1], [0, 0, 1, 1], [], []>} : vector<16x32xf32>, vector<32x8xf32>, vector<16x8xf32> -> vector<16x8xf32>
    %c4_20 = arith.constant 4 : index
    %c0_21 = arith.constant 0 : index
    %c0_22 = arith.constant 0 : index
    %52 = vector.load %arg2[%c4_20, %c0_21, %c0_22] : memref<12x32x8xf32, #tpu.memory_space<vmem>>, vector<1x32x8xf32>
    %53 = vector.shape_cast %52 : vector<1x32x8xf32> to vector<32x8xf32>
    %cst_23 = arith.constant dense<0.000000e+00> : vector<16x8xf32>
    %54 = tpu.matmul %29, %53, %cst_23 {dimension_numbers = #tpu.dot_dimension_numbers<[1], [0], [0], [1], [0, 0, 1, 1], [], []>} : vector<16x32xf32>, vector<32x8xf32>, vector<16x8xf32> -> vector<16x8xf32>
    %c8 = arith.constant 8 : index
    %c0_24 = arith.constant 0 : index
    %c0_25 = arith.constant 0 : index
    %55 = vector.load %arg2[%c8, %c0_24, %c0_25] : memref<12x32x8xf32, #tpu.memory_space<vmem>>, vector<1x32x8xf32>
    %56 = vector.shape_cast %55 : vector<1x32x8xf32> to vector<32x8xf32>
    %cst_26 = arith.constant dense<0.000000e+00> : vector<16x8xf32>
    %57 = tpu.matmul %29, %56, %cst_26 {dimension_numbers = #tpu.dot_dimension_numbers<[1], [0], [0], [1], [0, 0, 1, 1], [], []>} : vector<16x32xf32>, vector<32x8xf32>, vector<16x8xf32> -> vector<16x8xf32>
    %58 = vector.shape_cast %51 : vector<16x8xf32> to vector<2x8x8xf32>
    %59 = vector.shape_cast %54 : vector<16x8xf32> to vector<2x8x8xf32>
    "tpu.trace_start"() <{level = 10 : i32, message = "bqd,bkd->bqk"}> : () -> ()
    %cst_27 = arith.constant dense<0.000000e+00> : vector<2x8x8xf32>
    %60 = tpu.matmul %58, %59, %cst_27 {dimension_numbers = #tpu.dot_dimension_numbers<[2], [2], [1], [1], [0, 0, 0, 1, 1, 1], [0], [0]>} : vector<2x8x8xf32>, vector<2x8x8xf32>, vector<2x8x8xf32> -> vector<2x8x8xf32>
    "tpu.trace_stop"() : () -> ()
    %61 = arith.addf %60, %48 : vector<2x8x8xf32>
    %cst_28 = arith.constant dense<0xFF800000> : vector<2x8xf32>
    %62 = vector.multi_reduction <maximumf>, %61, %cst_28 [2] : vector<2x8x8xf32> to vector<2x8xf32>
    %63 = vector.shape_cast %62 : vector<2x8xf32> to vector<2x8x1xf32>
    %64 = vector.broadcast %63 : vector<2x8x1xf32> to vector<2x8x8xf32>
    %65 = arith.subf %61, %64 : vector<2x8x8xf32>
    %66 = math.exp %65 : vector<2x8x8xf32>
    %cst_29 = arith.constant dense<0.000000e+00> : vector<2x8xf32>
    %67 = vector.multi_reduction <add>, %66, %cst_29 [2] : vector<2x8x8xf32> to vector<2x8xf32>
    %68 = vector.shape_cast %67 : vector<2x8xf32> to vector<2x8x1xf32>
    %69 = tpu.reciprocal %68 {approx = true} : vector<2x8x1xf32> -> vector<2x8x1xf32>
    %70 = arith.mulf %68, %69 : vector<2x8x1xf32>
    %cst_30 = arith.constant 2.000000e+00 : f32
    %71 = vector.broadcast %cst_30 : f32 to vector<2x8x1xf32>
    %72 = arith.subf %71, %70 : vector<2x8x1xf32>
    %73 = arith.mulf %69, %72 : vector<2x8x1xf32>
    %74 = vector.broadcast %73 : vector<2x8x1xf32> to vector<2x8x8xf32>
    %75 = arith.mulf %66, %74 : vector<2x8x8xf32>
    %76 = vector.shape_cast %75 : vector<2x8x8xf32> to vector<16x8xf32>
    %77 = vector.shape_cast %57 : vector<16x8xf32> to vector<2x8x8xf32>
    "tpu.trace_start"() <{level = 10 : i32, message = "bqk,bkd->bqd"}> : () -> ()
    %cst_31 = arith.constant dense<0.000000e+00> : vector<2x8x8xf32>
    %78 = tpu.matmul %75, %77, %cst_31 {dimension_numbers = #tpu.dot_dimension_numbers<[2], [1], [1], [2], [0, 0, 0, 1, 1, 2], [0], [0]>} : vector<2x8x8xf32>, vector<2x8x8xf32>, vector<2x8x8xf32> -> vector<2x8x8xf32>
    "tpu.trace_stop"() : () -> ()
    %79 = vector.shape_cast %78 : vector<2x8x8xf32> to vector<16x8xf32>
    %c0_32 = arith.constant 0 : index
    %c0_33 = arith.constant 0 : index
    %80 = vector.load %arg3[%c0_32, %c0_33] : memref<128x64xf32, #tpu.memory_space<vmem>>, vector<8x32xf32>
    %cst_34 = arith.constant dense<0.000000e+00> : vector<16x32xf32>
    %81 = tpu.matmul %79, %80, %cst_34 {dimension_numbers = #tpu.dot_dimension_numbers<[1], [0], [0], [1], [0, 0, 1, 1], [], []>} : vector<16x8xf32>, vector<8x32xf32>, vector<16x32xf32> -> vector<16x32xf32>
    %82 = arith.addf %0, %81 : vector<16x32xf32>
    %c1_35 = arith.constant 1 : index
    %c0_36 = arith.constant 0 : index
    %c0_37 = arith.constant 0 : index
    %83 = vector.load %arg2[%c1_35, %c0_36, %c0_37] : memref<12x32x8xf32, #tpu.memory_space<vmem>>, vector<1x32x8xf32>
    %84 = vector.shape_cast %83 : vector<1x32x8xf32> to vector<32x8xf32>
    %cst_38 = arith.constant dense<0.000000e+00> : vector<16x8xf32>
    %85 = tpu.matmul %29, %84, %cst_38 {dimension_numbers = #tpu.dot_dimension_numbers<[1], [0], [0], [1], [0, 0, 1, 1], [], []>} : vector<16x32xf32>, vector<32x8xf32>, vector<16x8xf32> -> vector<16x8xf32>
    %c5_39 = arith.constant 5 : index
    %c0_40 = arith.constant 0 : index
    %c0_41 = arith.constant 0 : index
    %86 = vector.load %arg2[%c5_39, %c0_40, %c0_41] : memref<12x32x8xf32, #tpu.memory_space<vmem>>, vector<1x32x8xf32>
    %87 = vector.shape_cast %86 : vector<1x32x8xf32> to vector<32x8xf32>
    %cst_42 = arith.constant dense<0.000000e+00> : vector<16x8xf32>
    %88 = tpu.matmul %29, %87, %cst_42 {dimension_numbers = #tpu.dot_dimension_numbers<[1], [0], [0], [1], [0, 0, 1, 1], [], []>} : vector<16x32xf32>, vector<32x8xf32>, vector<16x8xf32> -> vector<16x8xf32>
    %c9 = arith.constant 9 : index
    %c0_43 = arith.constant 0 : index
    %c0_44 = arith.constant 0 : index
    %89 = vector.load %arg2[%c9, %c0_43, %c0_44] : memref<12x32x8xf32, #tpu.memory_space<vmem>>, vector<1x32x8xf32>
    %90 = vector.shape_cast %89 : vector<1x32x8xf32> to vector<32x8xf32>
    %cst_45 = arith.constant dense<0.000000e+00> : vector<16x8xf32>
    %91 = tpu.matmul %29, %90, %cst_45 {dimension_numbers = #tpu.dot_dimension_numbers<[1], [0], [0], [1], [0, 0, 1, 1], [], []>} : vector<16x32xf32>, vector<32x8xf32>, vector<16x8xf32> -> vector<16x8xf32>
    %92 = vector.shape_cast %85 : vector<16x8xf32> to vector<2x8x8xf32>
    %93 = vector.shape_cast %88 : vector<16x8xf32> to vector<2x8x8xf32>
    "tpu.trace_start"() <{level = 10 : i32, message = "bqd,bkd->bqk"}> : () -> ()
    %cst_46 = arith.constant dense<0.000000e+00> : vector<2x8x8xf32>
    %94 = tpu.matmul %92, %93, %cst_46 {dimension_numbers = #tpu.dot_dimension_numbers<[2], [2], [1], [1], [0, 0, 0, 1, 1, 1], [0], [0]>} : vector<2x8x8xf32>, vector<2x8x8xf32>, vector<2x8x8xf32> -> vector<2x8x8xf32>
    "tpu.trace_stop"() : () -> ()
    %95 = arith.addf %94, %48 : vector<2x8x8xf32>
    %cst_47 = arith.constant dense<0xFF800000> : vector<2x8xf32>
    %96 = vector.multi_reduction <maximumf>, %95, %cst_47 [2] : vector<2x8x8xf32> to vector<2x8xf32>
    %97 = vector.shape_cast %96 : vector<2x8xf32> to vector<2x8x1xf32>
    %98 = vector.broadcast %97 : vector<2x8x1xf32> to vector<2x8x8xf32>
    %99 = arith.subf %95, %98 : vector<2x8x8xf32>
    %100 = math.exp %99 : vector<2x8x8xf32>
    %cst_48 = arith.constant dense<0.000000e+00> : vector<2x8xf32>
    %101 = vector.multi_reduction <add>, %100, %cst_48 [2] : vector<2x8x8xf32> to vector<2x8xf32>
    %102 = vector.shape_cast %101 : vector<2x8xf32> to vector<2x8x1xf32>
    %103 = tpu.reciprocal %102 {approx = true} : vector<2x8x1xf32> -> vector<2x8x1xf32>
    %104 = arith.mulf %102, %103 : vector<2x8x1xf32>
    %cst_49 = arith.constant 2.000000e+00 : f32
    %105 = vector.broadcast %cst_49 : f32 to vector<2x8x1xf32>
    %106 = arith.subf %105, %104 : vector<2x8x1xf32>
    %107 = arith.mulf %103, %106 : vector<2x8x1xf32>
    %108 = vector.broadcast %107 : vector<2x8x1xf32> to vector<2x8x8xf32>
    %109 = arith.mulf %100, %108 : vector<2x8x8xf32>
    %110 = vector.shape_cast %91 : vector<16x8xf32> to vector<2x8x8xf32>
    "tpu.trace_start"() <{level = 10 : i32, message = "bqk,bkd->bqd"}> : () -> ()
    %cst_50 = arith.constant dense<0.000000e+00> : vector<2x8x8xf32>
    %111 = tpu.matmul %109, %110, %cst_50 {dimension_numbers = #tpu.dot_dimension_numbers<[2], [1], [1], [2], [0, 0, 0, 1, 1, 2], [0], [0]>} : vector<2x8x8xf32>, vector<2x8x8xf32>, vector<2x8x8xf32> -> vector<2x8x8xf32>
    "tpu.trace_stop"() : () -> ()
    %112 = vector.shape_cast %111 : vector<2x8x8xf32> to vector<16x8xf32>
    %c8_51 = arith.constant 8 : index
    %c0_52 = arith.constant 0 : index
    %113 = vector.load %arg3[%c8_51, %c0_52] : memref<128x64xf32, #tpu.memory_space<vmem>>, vector<8x32xf32>
    %cst_53 = arith.constant dense<0.000000e+00> : vector<16x32xf32>
    %114 = tpu.matmul %112, %113, %cst_53 {dimension_numbers = #tpu.dot_dimension_numbers<[1], [0], [0], [1], [0, 0, 1, 1], [], []>} : vector<16x8xf32>, vector<8x32xf32>, vector<16x32xf32> -> vector<16x32xf32>
    %115 = arith.addf %82, %114 : vector<16x32xf32>
    %c2_54 = arith.constant 2 : index
    %c0_55 = arith.constant 0 : index
    %c0_56 = arith.constant 0 : index
    %116 = vector.load %arg2[%c2_54, %c0_55, %c0_56] : memref<12x32x8xf32, #tpu.memory_space<vmem>>, vector<1x32x8xf32>
    %117 = vector.shape_cast %116 : vector<1x32x8xf32> to vector<32x8xf32>
    %cst_57 = arith.constant dense<0.000000e+00> : vector<16x8xf32>
    %118 = tpu.matmul %29, %117, %cst_57 {dimension_numbers = #tpu.dot_dimension_numbers<[1], [0], [0], [1], [0, 0, 1, 1], [], []>} : vector<16x32xf32>, vector<32x8xf32>, vector<16x8xf32> -> vector<16x8xf32>
    %c6_58 = arith.constant 6 : index
    %c0_59 = arith.constant 0 : index
    %c0_60 = arith.constant 0 : index
    %119 = vector.load %arg2[%c6_58, %c0_59, %c0_60] : memref<12x32x8xf32, #tpu.memory_space<vmem>>, vector<1x32x8xf32>
    %120 = vector.shape_cast %119 : vector<1x32x8xf32> to vector<32x8xf32>
    %cst_61 = arith.constant dense<0.000000e+00> : vector<16x8xf32>
    %121 = tpu.matmul %29, %120, %cst_61 {dimension_numbers = #tpu.dot_dimension_numbers<[1], [0], [0], [1], [0, 0, 1, 1], [], []>} : vector<16x32xf32>, vector<32x8xf32>, vector<16x8xf32> -> vector<16x8xf32>
    %c10 = arith.constant 10 : index
    %c0_62 = arith.constant 0 : index
    %c0_63 = arith.constant 0 : index
    %122 = vector.load %arg2[%c10, %c0_62, %c0_63] : memref<12x32x8xf32, #tpu.memory_space<vmem>>, vector<1x32x8xf32>
    %123 = vector.shape_cast %122 : vector<1x32x8xf32> to vector<32x8xf32>
    %cst_64 = arith.constant dense<0.000000e+00> : vector<16x8xf32>
    %124 = tpu.matmul %29, %123, %cst_64 {dimension_numbers = #tpu.dot_dimension_numbers<[1], [0], [0], [1], [0, 0, 1, 1], [], []>} : vector<16x32xf32>, vector<32x8xf32>, vector<16x8xf32> -> vector<16x8xf32>
    %125 = vector.shape_cast %118 : vector<16x8xf32> to vector<2x8x8xf32>
    %126 = vector.shape_cast %121 : vector<16x8xf32> to vector<2x8x8xf32>
    "tpu.trace_start"() <{level = 10 : i32, message = "bqd,bkd->bqk"}> : () -> ()
    %cst_65 = arith.constant dense<0.000000e+00> : vector<2x8x8xf32>
    %127 = tpu.matmul %125, %126, %cst_65 {dimension_numbers = #tpu.dot_dimension_numbers<[2], [2], [1], [1], [0, 0, 0, 1, 1, 1], [0], [0]>} : vector<2x8x8xf32>, vector<2x8x8xf32>, vector<2x8x8xf32> -> vector<2x8x8xf32>
    "tpu.trace_stop"() : () -> ()
    %128 = arith.addf %127, %48 : vector<2x8x8xf32>
    %cst_66 = arith.constant dense<0xFF800000> : vector<2x8xf32>
    %129 = vector.multi_reduction <maximumf>, %128, %cst_66 [2] : vector<2x8x8xf32> to vector<2x8xf32>
    %130 = vector.shape_cast %129 : vector<2x8xf32> to vector<2x8x1xf32>
    %131 = vector.broadcast %130 : vector<2x8x1xf32> to vector<2x8x8xf32>
    %132 = arith.subf %128, %131 : vector<2x8x8xf32>
    %133 = math.exp %132 : vector<2x8x8xf32>
    %cst_67 = arith.constant dense<0.000000e+00> : vector<2x8xf32>
    %134 = vector.multi_reduction <add>, %133, %cst_67 [2] : vector<2x8x8xf32> to vector<2x8xf32>
    %135 = vector.shape_cast %134 : vector<2x8xf32> to vector<2x8x1xf32>
    %136 = tpu.reciprocal %135 {approx = true} : vector<2x8x1xf32> -> vector<2x8x1xf32>
    %137 = arith.mulf %135, %136 : vector<2x8x1xf32>
    %cst_68 = arith.constant 2.000000e+00 : f32
    %138 = vector.broadcast %cst_68 : f32 to vector<2x8x1xf32>
    %139 = arith.subf %138, %137 : vector<2x8x1xf32>
    %140 = arith.mulf %136, %139 : vector<2x8x1xf32>
    %141 = vector.broadcast %140 : vector<2x8x1xf32> to vector<2x8x8xf32>
    %142 = arith.mulf %133, %141 : vector<2x8x8xf32>
    %143 = vector.shape_cast %124 : vector<16x8xf32> to vector<2x8x8xf32>
    "tpu.trace_start"() <{level = 10 : i32, message = "bqk,bkd->bqd"}> : () -> ()
    %cst_69 = arith.constant dense<0.000000e+00> : vector<2x8x8xf32>
    %144 = tpu.matmul %142, %143, %cst_69 {dimension_numbers = #tpu.dot_dimension_numbers<[2], [1], [1], [2], [0, 0, 0, 1, 1, 2], [0], [0]>} : vector<2x8x8xf32>, vector<2x8x8xf32>, vector<2x8x8xf32> -> vector<2x8x8xf32>
    "tpu.trace_stop"() : () -> ()
    %145 = vector.shape_cast %144 : vector<2x8x8xf32> to vector<16x8xf32>
    %c16 = arith.constant 16 : index
    %c0_70 = arith.constant 0 : index
    %146 = vector.load %arg3[%c16, %c0_70] : memref<128x64xf32, #tpu.memory_space<vmem>>, vector<8x32xf32>
    %cst_71 = arith.constant dense<0.000000e+00> : vector<16x32xf32>
    %147 = tpu.matmul %145, %146, %cst_71 {dimension_numbers = #tpu.dot_dimension_numbers<[1], [0], [0], [1], [0, 0, 1, 1], [], []>} : vector<16x8xf32>, vector<8x32xf32>, vector<16x32xf32> -> vector<16x32xf32>
    %148 = arith.addf %115, %147 : vector<16x32xf32>
    %c3_72 = arith.constant 3 : index
    %c0_73 = arith.constant 0 : index
    %c0_74 = arith.constant 0 : index
    %149 = vector.load %arg2[%c3_72, %c0_73, %c0_74] : memref<12x32x8xf32, #tpu.memory_space<vmem>>, vector<1x32x8xf32>
    %150 = vector.shape_cast %149 : vector<1x32x8xf32> to vector<32x8xf32>
    %cst_75 = arith.constant dense<0.000000e+00> : vector<16x8xf32>
    %151 = tpu.matmul %29, %150, %cst_75 {dimension_numbers = #tpu.dot_dimension_numbers<[1], [0], [0], [1], [0, 0, 1, 1], [], []>} : vector<16x32xf32>, vector<32x8xf32>, vector<16x8xf32> -> vector<16x8xf32>
    %c7 = arith.constant 7 : index
    %c0_76 = arith.constant 0 : index
    %c0_77 = arith.constant 0 : index
    %152 = vector.load %arg2[%c7, %c0_76, %c0_77] : memref<12x32x8xf32, #tpu.memory_space<vmem>>, vector<1x32x8xf32>
    %153 = vector.shape_cast %152 : vector<1x32x8xf32> to vector<32x8xf32>
    %cst_78 = arith.constant dense<0.000000e+00> : vector<16x8xf32>
    %154 = tpu.matmul %29, %153, %cst_78 {dimension_numbers = #tpu.dot_dimension_numbers<[1], [0], [0], [1], [0, 0, 1, 1], [], []>} : vector<16x32xf32>, vector<32x8xf32>, vector<16x8xf32> -> vector<16x8xf32>
    %c11 = arith.constant 11 : index
    %c0_79 = arith.constant 0 : index
    %c0_80 = arith.constant 0 : index
    %155 = vector.load %arg2[%c11, %c0_79, %c0_80] : memref<12x32x8xf32, #tpu.memory_space<vmem>>, vector<1x32x8xf32>
    %156 = vector.shape_cast %155 : vector<1x32x8xf32> to vector<32x8xf32>
    %cst_81 = arith.constant dense<0.000000e+00> : vector<16x8xf32>
    %157 = tpu.matmul %29, %156, %cst_81 {dimension_numbers = #tpu.dot_dimension_numbers<[1], [0], [0], [1], [0, 0, 1, 1], [], []>} : vector<16x32xf32>, vector<32x8xf32>, vector<16x8xf32> -> vector<16x8xf32>
    %158 = vector.shape_cast %151 : vector<16x8xf32> to vector<2x8x8xf32>
    %159 = vector.shape_cast %154 : vector<16x8xf32> to vector<2x8x8xf32>
    "tpu.trace_start"() <{level = 10 : i32, message = "bqd,bkd->bqk"}> : () -> ()
    %cst_82 = arith.constant dense<0.000000e+00> : vector<2x8x8xf32>
    %160 = tpu.matmul %158, %159, %cst_82 {dimension_numbers = #tpu.dot_dimension_numbers<[2], [2], [1], [1], [0, 0, 0, 1, 1, 1], [0], [0]>} : vector<2x8x8xf32>, vector<2x8x8xf32>, vector<2x8x8xf32> -> vector<2x8x8xf32>
    "tpu.trace_stop"() : () -> ()
    %161 = arith.addf %160, %48 : vector<2x8x8xf32>
    %cst_83 = arith.constant dense<0xFF800000> : vector<2x8xf32>
    %162 = vector.multi_reduction <maximumf>, %161, %cst_83 [2] : vector<2x8x8xf32> to vector<2x8xf32>
    %163 = vector.shape_cast %162 : vector<2x8xf32> to vector<2x8x1xf32>
    %164 = vector.broadcast %163 : vector<2x8x1xf32> to vector<2x8x8xf32>
    %165 = arith.subf %161, %164 : vector<2x8x8xf32>
    %166 = math.exp %165 : vector<2x8x8xf32>
    %cst_84 = arith.constant dense<0.000000e+00> : vector<2x8xf32>
    %167 = vector.multi_reduction <add>, %166, %cst_84 [2] : vector<2x8x8xf32> to vector<2x8xf32>
    %168 = vector.shape_cast %167 : vector<2x8xf32> to vector<2x8x1xf32>
    %169 = tpu.reciprocal %168 {approx = true} : vector<2x8x1xf32> -> vector<2x8x1xf32>
    %170 = arith.mulf %168, %169 : vector<2x8x1xf32>
    %cst_85 = arith.constant 2.000000e+00 : f32
    %171 = vector.broadcast %cst_85 : f32 to vector<2x8x1xf32>
    %172 = arith.subf %171, %170 : vector<2x8x1xf32>
    %173 = arith.mulf %169, %172 : vector<2x8x1xf32>
    %174 = vector.broadcast %173 : vector<2x8x1xf32> to vector<2x8x8xf32>
    %175 = arith.mulf %166, %174 : vector<2x8x8xf32>
    %176 = vector.shape_cast %157 : vector<16x8xf32> to vector<2x8x8xf32>
    "tpu.trace_start"() <{level = 10 : i32, message = "bqk,bkd->bqd"}> : () -> ()
    %cst_86 = arith.constant dense<0.000000e+00> : vector<2x8x8xf32>
    %177 = tpu.matmul %175, %176, %cst_86 {dimension_numbers = #tpu.dot_dimension_numbers<[2], [1], [1], [2], [0, 0, 0, 1, 1, 2], [0], [0]>} : vector<2x8x8xf32>, vector<2x8x8xf32>, vector<2x8x8xf32> -> vector<2x8x8xf32>
    "tpu.trace_stop"() : () -> ()
    %178 = vector.shape_cast %177 : vector<2x8x8xf32> to vector<16x8xf32>
    %c24 = arith.constant 24 : index
    %c0_87 = arith.constant 0 : index
    %179 = vector.load %arg3[%c24, %c0_87] : memref<128x64xf32, #tpu.memory_space<vmem>>, vector<8x32xf32>
    %cst_88 = arith.constant dense<0.000000e+00> : vector<16x32xf32>
    %180 = tpu.matmul %178, %179, %cst_88 {dimension_numbers = #tpu.dot_dimension_numbers<[1], [0], [0], [1], [0, 0, 1, 1], [], []>} : vector<16x8xf32>, vector<8x32xf32>, vector<16x32xf32> -> vector<16x32xf32>
    %181 = arith.addf %148, %180 : vector<16x32xf32>
    %cst_89 = arith.constant dense<0.000000e+00> : vector<16xf32>
    %182 = vector.multi_reduction <add>, %181, %cst_89 [1] : vector<16x32xf32> to vector<16xf32>
    %183 = vector.shape_cast %182 : vector<16xf32> to vector<16x1xf32>
    %cst_90 = arith.constant 3.200000e+01 : f32
    %184 = vector.broadcast %cst_90 : f32 to vector<16x1xf32>
    %185 = arith.divf %183, %184 : vector<16x1xf32>
    %186 = vector.broadcast %185 : vector<16x1xf32> to vector<16x32xf32>
    %187 = arith.subf %181, %186 : vector<16x32xf32>
    %188 = arith.mulf %187, %187 : vector<16x32xf32>
    %cst_91 = arith.constant dense<0.000000e+00> : vector<16xf32>
    %189 = vector.multi_reduction <add>, %188, %cst_91 [1] : vector<16x32xf32> to vector<16xf32>
    %190 = vector.shape_cast %189 : vector<16xf32> to vector<16x1xf32>
    %cst_92 = arith.constant 3.200000e+01 : f32
    %191 = vector.broadcast %cst_92 : f32 to vector<16x1xf32>
    %192 = arith.divf %190, %191 : vector<16x1xf32>
    %193 = vector.broadcast %185 : vector<16x1xf32> to vector<16x32xf32>
    %194 = arith.subf %181, %193 : vector<16x32xf32>
    %cst_93 = arith.constant 9.99999997E-7 : f32
    %195 = vector.broadcast %cst_93 : f32 to vector<16x1xf32>
    %196 = arith.addf %192, %195 : vector<16x1xf32>
    %197 = math.rsqrt %196 : vector<16x1xf32>
    %198 = vector.broadcast %197 : vector<16x1xf32> to vector<16x32xf32>
    %199 = arith.mulf %194, %198 : vector<16x32xf32>
    %200 = vector.broadcast %3 : vector<1x32xf32> to vector<16x32xf32>
    %201 = arith.mulf %199, %200 : vector<16x32xf32>
    %202 = vector.broadcast %4 : vector<1x32xf32> to vector<16x32xf32>
    %203 = arith.addf %201, %202 : vector<16x32xf32>
    %c32 = arith.constant 32 : index
    %c0_94 = arith.constant 0 : index
    %204 = vector.load %arg3[%c32, %c0_94] : memref<128x64xf32, #tpu.memory_space<vmem>>, vector<32x64xf32>
    %cst_95 = arith.constant dense<0.000000e+00> : vector<16x64xf32>
    %205 = tpu.matmul %203, %204, %cst_95 {dimension_numbers = #tpu.dot_dimension_numbers<[1], [0], [0], [1], [0, 0, 1, 1], [], []>} : vector<16x32xf32>, vector<32x64xf32>, vector<16x64xf32> -> vector<16x64xf32>
    %206 = vector.broadcast %6 : vector<1x64xf32> to vector<16x64xf32>
    %207 = arith.addf %205, %206 : vector<16x64xf32>
    %cst_96 = arith.constant 0.000000e+00 : f32
    %208 = vector.broadcast %cst_96 : f32 to vector<16x64xf32>
    %209 = arith.maximumf %207, %208 : vector<16x64xf32>
    %c64 = arith.constant 64 : index
    %c0_97 = arith.constant 0 : index
    %210 = vector.load %arg3[%c64, %c0_97] : memref<128x64xf32, #tpu.memory_space<vmem>>, vector<64x32xf32>
    %cst_98 = arith.constant dense<0.000000e+00> : vector<16x32xf32>
    %211 = tpu.matmul %209, %210, %cst_98 {dimension_numbers = #tpu.dot_dimension_numbers<[1], [0], [0], [1], [0, 0, 1, 1], [], []>} : vector<16x64xf32>, vector<64x32xf32>, vector<16x32xf32> -> vector<16x32xf32>
    %212 = vector.broadcast %5 : vector<1x32xf32> to vector<16x32xf32>
    %213 = arith.addf %211, %212 : vector<16x32xf32>
    %214 = arith.addf %213, %181 : vector<16x32xf32>
    %215 = tpu.concatenate %214, %76 in 1 : vector<16x32xf32>, vector<16x8xf32> -> vector<16x40xf32>
    %c0_99 = arith.constant 0 : index
    %c0_100 = arith.constant 0 : index
    %216 = vector.load %arg4[%c0_99, %c0_100] : memref<16x40xf32, #tpu.memory_space<vmem>>, vector<16x40xf32>
    tpu.vector_store %arg4[%c0_99, %c0_100], %215 {strides = array<i32>} : memref<16x40xf32, #tpu.memory_space<vmem>>, vector<16x40xf32>,
    return
  }
}

</mosaic_0001>

<llo_original>
// kernel: tpu_custom_call.1
$region0: #{tpu_custom_call.1}
  #allocation0 [shape = 'u32[]', space=smem, size = 0x4, offset = 0x4, fixed_abs, tag = 'smem constant byte address 0x4 - core index']
  #allocation1 [shape = 'u32[144,128]{1,0:T(1,128)}', space=vmem, size = 0x12000, scoped, tag = 'internal scratch']
  %s0 = inlined_call_operand.vmem [shape: f32[16,32], index: 0, kind: input, shape index: {}]
  %s1 = inlined_call_operand.vmem [shape: f32[8,64], index: 1, kind: input, shape index: {}]
  %s2 = inlined_call_operand.vmem [shape: f32[12,32,8], index: 2, kind: input, shape index: {}]
  %s3 = inlined_call_operand.vmem [shape: f32[128,64], index: 3, kind: input, shape index: {}]
  %s4 = inlined_call_operand.hbm [shape: f32[16,40], index: 4, kind: output, shape index: {}]
  %s5 = sld [smem:[#allocation0]]
  $region26: #{tpu_custom_call.1} parent=0
    _
  %s7 = ssub.s32 1, %s5
  %s8 = scalar_select 0, %s7, %s5
  $region1: #{tpu_custom_call.1} parent=0
    #allocation2 [shape = 'u8[8192]{0}', space=vmem, size = 0x2000, scoped, tag = 'output window, operand 0, single buffered']
    #allocation3 [shape = 's32[1]{0}', space=sflag, size = 0x4, scoped, tag = 'scoped memory for tpu_custom_call.1']
    %9 = vsyncpa [#allocation3], 0
    // Predicated region
    $region2: #{tpu_custom_call.1} parent=1 // pred_check
      _
    $region3: #{tpu_custom_call.1} parent=1 // pred_check_branch
      %11 = sbr.rel (0) target = $region5
    $region4: #{tpu_custom_call.1} parent=1 // pred_region
      _
    $region5: #{tpu_custom_call.1} parent=1 // pred_fallthru
      _
    // Predicated region
    $region6: #{tpu_custom_call.1} parent=1 // pred_check
      _
    $region7: #{tpu_custom_call.1} parent=1 // pred_check_branch
      %13 = sbr.rel (0) target = $region9
    $region8: #{tpu_custom_call.1} parent=1 // pred_region
      _
    $region9: #{tpu_custom_call.1} parent=1 // pred_fallthru
      _
    // Predicated region
    $region10: #{tpu_custom_call.1} parent=1 // pred_check
      _
    $region11: #{tpu_custom_call.1} parent=1 // pred_check_branch
      %15 = sbr.rel (0) target = $region13
    $region12: #{tpu_custom_call.1} parent=1 // pred_region
      _
    $region13: #{tpu_custom_call.1} parent=1 // pred_fallthru
      _
    // Predicated region
    $region14: #{tpu_custom_call.1} parent=1 // pred_check
      _
    $region15: #{tpu_custom_call.1} parent=1 // pred_check_branch
      %17 = sbr.rel (0) target = $region17
    $region16: #{tpu_custom_call.1} parent=1 // pred_region
      _
    $region17: #{tpu_custom_call.1} parent=1 // pred_fallthru
      _
    %v18 = vld [vmem:[%s0] sm:$0xff]
    %v19 = vld [vmem:[%s0 + $0x8] sm:$0xff]
    %v20 = vld [vmem:[%s1] sm:$0x1]
    %v21 = vld [vmem:[%s1 + $0x1] sm:$0x1]
    %v22 = vld [vmem:[%s1 + $0x2] sm:$0x1]
    %v23 = vld [vmem:[%s1 + $0x3] sm:$0x1]
    %v24 = vld [vmem:[%s1 + $0x4] sm:$0x1]
    %v25 = vld [vmem:[%s1 + $0x5] sm:$0x1]
    %v26 = vld [vmem:[%s1 + $0x6] sm:$0x3]
    %vm27 = vcmask 261120
    %v28 = vsel %vm27, %v18, 0.0
    %29 = vadd.xlane.f32.xlu0 %v28
    %v30 = vpop.xlane.xlu0 %29
    %v31 = vsel %vm27, %v19, 0.0
    %32 = vadd.xlane.f32.xlu0 %v31
    %v33 = vpop.xlane.xlu0 %32
    %v34 = vrcp.pop 32.0
    %v35 = vmul.f32 %v30, %v34
    %v36 = vmul.f32 %v33, %v34
    %v37 = vsub.f32 %v18, %v35
    %v38 = vsub.f32 %v19, %v36
    %v39 = vmul.f32 %v37, %v37
    %v40 = vmul.f32 %v38, %v38
    %v41 = vsel %vm27, %v39, 0.0
    %42 = vadd.xlane.f32.xlu0 %v41
    %v43 = vpop.xlane.xlu0 %42
    %v44 = vsel %vm27, %v40, 0.0
    %45 = vadd.xlane.f32.xlu0 %v44
    %v46 = vpop.xlane.xlu0 %45
    %v47 = vmul.f32 %v43, %v34
    %v48 = vmul.f32 %v46, %v34
    %v49 = vadd.f32 %v47, 1e-06
    %v50 = vadd.f32 %v48, 1e-06
    %v51 = vrsqrt.pop %v49
    %v52 = vrsqrt.pop %v50
    %v53 = vmul.f32 %v37, %v51
    %v54 = vmul.f32 %v38, %v52
    %v55 = vlaneseq
    %v56 = vshrl.u32 %v55, 7
    %v57 = vsub.s32 0, %v56
    %v58 = vrot.slane %v20, %v57
    %v59 = vmul.f32 %v53, %v58
    %v60 = vmul.f32 %v54, %v58
    %v61 = vlaneseq
    %v62 = vshrl.u32 %v61, 7
    %v63 = vsub.s32 0, %v62
    %v64 = vrot.slane %v21, %v63
    %v65 = vadd.f32 %v59, %v64
    %v66 = vadd.f32 %v60, %v64
    %v67 = vlaneseq
    %v68 = vand.u32 %v67, 127
    %v69 = vlaneseq
    %v70 = vshrl.u32 %v69, 7
    %vm71 = vcmp.gt.s32.totalorder %v68, %v70
    %v72 = vsel %vm71, 1, 0
    %v73 = vcvt.s32.f32 %v72
    %v76 = vunpack.c.l.s4 1966171168
    %v77 = vunpack.c.0.s8 %v76
    %v78 = vlaneseq
    %v79 = vshrl.u32 %v78, 7
    %v80 = vsub.s32 %v77, %v79
    %v81 = vrot.slane %v26, %v80
    %v82 = vcombine.high %v81, %v81
    %v84 = vunpack.c.l.s4 1966171168
    %v85 = vunpack.c.0.s8 %v84
    %v86 = vlaneseq
    %v87 = vshrl.u32 %v86, 7
    %v88 = vsub.s32 %v85, %v87
    %v89 = vrot.slane %v81, %v88
    %v91 = vunpack.c.l.s4 1966171168
    %v92 = vunpack.c.0.s8 %v91
    %v93 = vlaneseq
    %v94 = vshrl.u32 %v93, 7
    %v95 = vsub.s32 %v92, %v94
    %v96 = vrot.slane %v82, %v95
    %v97 = vlaneseq
    %v98 = vshrl.u32 %v97, 7
    %v99 = vsub.s32 0, %v98
    %v100 = vrot.slane %v89, %v99
    %v101 = vlaneseq
    %v102 = vshrl.u32 %v101, 7
    %v103 = vsub.s32 0, %v102
    %v104 = vrot.slane %v96, %v103
    %v107 = vmax.f32 %v100, %v73
    %v108 = vmax.f32 %v104, %v73
    %vm109 = vcmask 64512
    %v110 = vsel %vm109, %v107, inf
    %111 = vmin.xlane.f32.xlu0 %v110
    %v112 = vpop.xlane.xlu0 %111
    %v113 = vsel %vm109, %v108, inf
    %114 = vmin.xlane.f32.xlu0 %v113
    %v115 = vpop.xlane.xlu0 %114
    %vm116 = vcmp.lt.f32.partialorder %v112, 0.5
    %vm117 = vcmp.lt.f32.partialorder %v115, 0.5
    %v118 = vsel %vm116, 1, 0
    %v119 = vsel %vm117, 1, 0
    %v120 = vcvt.s32.f32 %v118
    %v121 = vcvt.s32.f32 %v119
    %v122 = vmul.f32 %v107, %v120
    %v123 = vmul.f32 %v108, %v121
    %v124 = vmul.f32 %v122, -1e+18
    %v125 = vmul.f32 %v123, -1e+18
    %v126 = vld [vmem:[%s2] sm:$0xff]
    %v127 = vld [vmem:[%s2 + $0x8] sm:$0xff]
    %v128 = vld [vmem:[%s2 + $0x10] sm:$0xff]
    %v129 = vld [vmem:[%s2 + $0x18] sm:$0xff]
    %v131 = vsel %vm27, %v65, 0
    %v134 = vsel %vm27, %v66, 0
    %136 = vmatprep.subr.mxu0 0.0
    %137 = vmatpush1.msra.mxu0 %v126
    %138 = vmatprep.subr.mxu0 0.0
    %139 = vmatpush1.msra.mxu0 %v127
    %140 = vmatprep.subr.mxu0 0.0
    %141 = vmatpush1.msra.mxu0 %v128
    %142 = vmatprep.subr.mxu0 0.0
    %143 = vmatpush1.msra.mxu0 %v129
    %144 = vmatprep.subr.mxu0 0.0
    %145 = vmatpush1.msra.mxu0 0.0
    %146 = vmatprep.subr.mxu0 0.0
    %147 = vmatpush1.msra.mxu0 0.0
    %148 = vmatprep.subr.mxu0 0.0
    %149 = vmatpush1.msra.mxu0 0.0
    %150 = vmatprep.subr.mxu0 0.0
    %151 = vmatpush1.msra.mxu0 0.0
    %152 = vmatprep.subr.mxu0 0.0
    %153 = vmatpush1.msra.mxu0 0.0
    %154 = vmatprep.subr.mxu0 0.0
    %155 = vmatpush1.msra.mxu0 0.0
    %156 = vmatprep.subr.mxu0 0.0
    %157 = vmatpush1.msra.mxu0 0.0
    %158 = vmatprep.subr.mxu0 0.0
    %159 = vmatpush1.msra.mxu0 0.0
    %160 = vmatprep.subr.mxu0 0.0
    %161 = vmatpush1.msra.mxu0 0.0
    %162 = vmatprep.subr.mxu0 0.0
    %163 = vmatpush1.msra.mxu0 0.0
    %164 = vmatprep.subr.mxu0 0.0
    %165 = vmatpush1.msra.mxu0 0.0
    %166 = vmatprep.subr.mxu0 0.0
    %167 = vmatpush1.msra.mxu0 0.0
    %168 = vmatprep.subr.mxu0 0.0
    %169 = vmatpush1.msra.mxu0 0.0
    %170 = vmatprep.subr.mxu0 0.0
    %171 = vmatpush1.msra.mxu0 0.0
    %172 = vmatprep.subr.mxu0 0.0
    %173 = vmatpush1.msra.mxu0 0.0
    %174 = vmatprep.subr.mxu0 0.0
    %175 = vmatpush1.msra.mxu0 0.0
    %176 = vmatprep.subr.mxu0 0.0
    %177 = vmatpush1.msra.mxu0 0.0
    %178 = vmatprep.subr.mxu0 0.0
    %179 = vmatpush1.msra.mxu0 0.0
    %180 = vmatprep.subr.mxu0 0.0
    %181 = vmatpush1.msra.mxu0 0.0
    %182 = vmatprep.subr.mxu0 0.0
    %183 = vmatpush1.msra.mxu0 0.0
    %184 = vmatprep.subr.mxu0 0.0
    %185 = vmatpush1.msra.mxu0 0.0
    %186 = vmatprep.subr.mxu0 0.0
    %187 = vmatpush1.msra.mxu0 0.0
    %188 = vmatprep.subr.mxu0 0.0
    %189 = vmatpush1.msra.mxu0 0.0
    %190 = vmatprep.subr.mxu0 0.0
    %191 = vmatpush1.msra.mxu0 0.0
    %192 = vmatprep.subr.mxu0 0.0
    %193 = vmatpush1.msra.mxu0 0.0
    %194 = vmatprep.subr.mxu0 0.0
    %195 = vmatpush1.msra.mxu0 0.0
    %196 = vmatprep.subr.mxu0 0.0
    %197 = vmatpush1.msra.mxu0 0.0
    %198 = vmatprep.subr.mxu0 0.0
    %199 = vmatpush1.msra.mxu0 0.0
    %200 = vmatprep.mubr.f32.mxu0 0.0
    %201 = vmatmul.mubr.f32.gmra.mrb[0].mxu0 %v131
    %v202 = vpop.f32.mrb[0].mxu0
    %v203 = vadd.f32 0.0, %v202
    %v204 = vpop.f32.mrb[0].mxu0
    %205 = vmatprep.mubr.f32.mxu0 0.0
    %206 = vmatmul.mubr.f32.gmra.mrb[0].mxu0 %v134
    %v207 = vpop.f32.mrb[0].mxu0
    %v208 = vadd.f32 0.0, %v207
    %v209 = vpop.f32.mrb[0].mxu0
    %210 = vdwg.mxu0
    %s211 = scalar_lea.vmem %s2, 128
    %v212 = vld [vmem:[%s211] sm:$0xff]
    %v213 = vld [vmem:[%s211 + $0x8] sm:$0xff]
    %v214 = vld [vmem:[%s211 + $0x10] sm:$0xff]
    %v215 = vld [vmem:[%s211 + $0x18] sm:$0xff]
    %216 = vmatprep.subr.mxu0 0.0
    %217 = vmatpush1.msra.mxu0 %v212
    %218 = vmatprep.subr.mxu0 0.0
    %219 = vmatpush1.msra.mxu0 %v213
    %220 = vmatprep.subr.mxu0 0.0
    %221 = vmatpush1.msra.mxu0 %v214
    %222 = vmatprep.subr.mxu0 0.0
    %223 = vmatpush1.msra.mxu0 %v215
    %224 = vmatprep.subr.mxu0 0.0
    %225 = vmatpush1.msra.mxu0 0.0
    %226 = vmatprep.subr.mxu0 0.0
    %227 = vmatpush1.msra.mxu0 0.0
    %228 = vmatprep.subr.mxu0 0.0
    %229 = vmatpush1.msra.mxu0 0.0
    %230 = vmatprep.subr.mxu0 0.0
    %231 = vmatpush1.msra.mxu0 0.0
    %232 = vmatprep.subr.mxu0 0.0
    %233 = vmatpush1.msra.mxu0 0.0
    %234 = vmatprep.subr.mxu0 0.0
    %235 = vmatpush1.msra.mxu0 0.0
    %236 = vmatprep.subr.mxu0 0.0
    %237 = vmatpush1.msra.mxu0 0.0
    %238 = vmatprep.subr.mxu0 0.0
    %239 = vmatpush1.msra.mxu0 0.0
    %240 = vmatprep.subr.mxu0 0.0
    %241 = vmatpush1.msra.mxu0 0.0
    %242 = vmatprep.subr.mxu0 0.0
    %243 = vmatpush1.msra.mxu0 0.0
    %244 = vmatprep.subr.mxu0 0.0
    %245 = vmatpush1.msra.mxu0 0.0
    %246 = vmatprep.subr.mxu0 0.0
    %247 = vmatpush1.msra.mxu0 0.0
    %248 = vmatprep.subr.mxu0 0.0
    %249 = vmatpush1.msra.mxu0 0.0
    %250 = vmatprep.subr.mxu0 0.0
    %251 = vmatpush1.msra.mxu0 0.0
    %252 = vmatprep.subr.mxu0 0.0
    %253 = vmatpush1.msra.mxu0 0.0
    %254 = vmatprep.subr.mxu0 0.0
    %255 = vmatpush1.msra.mxu0 0.0
    %256 = vmatprep.subr.mxu0 0.0
    %257 = vmatpush1.msra.mxu0 0.0
    %258 = vmatprep.subr.mxu0 0.0
    %259 = vmatpush1.msra.mxu0 0.0
    %260 = vmatprep.subr.mxu0 0.0
    %261 = vmatpush1.msra.mxu0 0.0
    %262 = vmatprep.subr.mxu0 0.0
    %263 = vmatpush1.msra.mxu0 0.0
    %264 = vmatprep.subr.mxu0 0.0
    %265 = vmatpush1.msra.mxu0 0.0
    %266 = vmatprep.subr.mxu0 0.0
    %267 = vmatpush1.msra.mxu0 0.0
    %268 = vmatprep.subr.mxu0 0.0
    %269 = vmatpush1.msra.mxu0 0.0
    %270 = vmatprep.subr.mxu0 0.0
    %271 = vmatpush1.msra.mxu0 0.0
    %272 = vmatprep.subr.mxu0 0.0
    %273 = vmatpush1.msra.mxu0 0.0
    %274 = vmatprep.subr.mxu0 0.0
    %275 = vmatpush1.msra.mxu0 0.0
    %276 = vmatprep.subr.mxu0 0.0
    %277 = vmatpush1.msra.mxu0 0.0
    %278 = vmatprep.subr.mxu0 0.0
    %279 = vmatpush1.msra.mxu0 0.0
    %280 = vmatprep.mubr.f32.mxu0 0.0
    %281 = vmatmul.mubr.f32.gmra.mrb[0].mxu0 %v131
    %v282 = vpop.f32.mrb[0].mxu0
    %v283 = vadd.f32 0.0, %v282
    %v284 = vpop.f32.mrb[0].mxu0
    %285 = vmatprep.mubr.f32.mxu0 0.0
    %286 = vmatmul.mubr.f32.gmra.mrb[0].mxu0 %v134
    %v287 = vpop.f32.mrb[0].mxu0
    %v288 = vadd.f32 0.0, %v287
    %v289 = vpop.f32.mrb[0].mxu0
    %290 = vdwg.mxu0
    %s291 = scalar_lea.vmem %s2, 256
    %v292 = vld [vmem:[%s291] sm:$0xff]
    %v293 = vld [vmem:[%s291 + $0x8] sm:$0xff]
    %v294 = vld [vmem:[%s291 + $0x10] sm:$0xff]
    %v295 = vld [vmem:[%s291 + $0x18] sm:$0xff]
    %296 = vmatprep.subr.mxu0 0.0
    %297 = vmatpush1.msra.mxu0 %v292
    %298 = vmatprep.subr.mxu0 0.0
    %299 = vmatpush1.msra.mxu0 %v293
    %300 = vmatprep.subr.mxu0 0.0
    %301 = vmatpush1.msra.mxu0 %v294
    %302 = vmatprep.subr.mxu0 0.0
    %303 = vmatpush1.msra.mxu0 %v295
    %304 = vmatprep.subr.mxu0 0.0
    %305 = vmatpush1.msra.mxu0 0.0
    %306 = vmatprep.subr.mxu0 0.0
    %307 = vmatpush1.msra.mxu0 0.0
    %308 = vmatprep.subr.mxu0 0.0
    %309 = vmatpush1.msra.mxu0 0.0
    %310 = vmatprep.subr.mxu0 0.0
    %311 = vmatpush1.msra.mxu0 0.0
    %312 = vmatprep.subr.mxu0 0.0
    %313 = vmatpush1.msra.mxu0 0.0
    %314 = vmatprep.subr.mxu0 0.0
    %315 = vmatpush1.msra.mxu0 0.0
    %316 = vmatprep.subr.mxu0 0.0
    %317 = vmatpush1.msra.mxu0 0.0
    %318 = vmatprep.subr.mxu0 0.0
    %319 = vmatpush1.msra.mxu0 0.0
    %320 = vmatprep.subr.mxu0 0.0
    %321 = vmatpush1.msra.mxu0 0.0
    %322 = vmatprep.subr.mxu0 0.0
    %323 = vmatpush1.msra.mxu0 0.0
    %324 = vmatprep.subr.mxu0 0.0
    %325 = vmatpush1.msra.mxu0 0.0
    %326 = vmatprep.subr.mxu0 0.0
    %327 = vmatpush1.msra.mxu0 0.0
    %328 = vmatprep.subr.mxu0 0.0
    %329 = vmatpush1.msra.mxu0 0.0
    %330 = vmatprep.subr.mxu0 0.0
    %331 = vmatpush1.msra.mxu0 0.0
    %332 = vmatprep.subr.mxu0 0.0
    %333 = vmatpush1.msra.mxu0 0.0
    %334 = vmatprep.subr.mxu0 0.0
    %335 = vmatpush1.msra.mxu0 0.0
    %336 = vmatprep.subr.mxu0 0.0
    %337 = vmatpush1.msra.mxu0 0.0
    %338 = vmatprep.subr.mxu0 0.0
    %339 = vmatpush1.msra.mxu0 0.0
    %340 = vmatprep.subr.mxu0 0.0
    %341 = vmatpush1.msra.mxu0 0.0
    %342 = vmatprep.subr.mxu0 0.0
    %343 = vmatpush1.msra.mxu0 0.0
    %344 = vmatprep.subr.mxu0 0.0
    %345 = vmatpush1.msra.mxu0 0.0
    %346 = vmatprep.subr.mxu0 0.0
    %347 = vmatpush1.msra.mxu0 0.0
    %348 = vmatprep.subr.mxu0 0.0
    %349 = vmatpush1.msra.mxu0 0.0
    %350 = vmatprep.subr.mxu0 0.0
    %351 = vmatpush1.msra.mxu0 0.0
    %352 = vmatprep.subr.mxu0 0.0
    %353 = vmatpush1.msra.mxu0 0.0
    %354 = vmatprep.subr.mxu0 0.0
    %355 = vmatpush1.msra.mxu0 0.0
    %356 = vmatprep.subr.mxu0 0.0
    %357 = vmatpush1.msra.mxu0 0.0
    %358 = vmatprep.subr.mxu0 0.0
    %359 = vmatpush1.msra.mxu0 0.0
    %360 = vmatprep.mubr.f32.mxu0 0.0
    %361 = vmatmul.mubr.f32.gmra.mrb[0].mxu0 %v131
    %v362 = vpop.f32.mrb[0].mxu0
    %v363 = vadd.f32 0.0, %v362
    %v364 = vpop.f32.mrb[0].mxu0
    %365 = vmatprep.mubr.f32.mxu0 0.0
    %366 = vmatmul.mubr.f32.gmra.mrb[0].mxu0 %v134
    %v367 = vpop.f32.mrb[0].mxu0
    %v368 = vadd.f32 0.0, %v367
    %v369 = vpop.f32.mrb[0].mxu0
    %370 = vdwg.mxu0
    %v372 = vsel %vm109, %v203, 0
    %v375 = vsel %vm109, %v283, 0
    %377 = vmatprep.subr.mxu0 0.0
    %378 = vmatpush1.xpose.msra.mxu0 %v375
    %379 = vmatprep.subr.mxu0 0.0
    %380 = vmatpush1.xpose.msra.mxu0 0.0
    %381 = vmatprep.subr.mxu0 0.0
    %382 = vmatpush1.xpose.msra.mxu0 0.0
    %383 = vmatprep.subr.mxu0 0.0
    %384 = vmatpush1.xpose.msra.mxu0 0.0
    %385 = vmatprep.subr.mxu0 0.0
    %386 = vmatpush1.xpose.msra.mxu0 0.0
    %387 = vmatprep.subr.mxu0 0.0
    %388 = vmatpush1.xpose.msra.mxu0 0.0
    %389 = vmatprep.subr.mxu0 0.0
    %390 = vmatpush1.xpose.msra.mxu0 0.0
    %391 = vmatprep.subr.mxu0 0.0
    %392 = vmatpush1.xpose.msra.mxu0 0.0
    %393 = vmatprep.subr.mxu0 0.0
    %394 = vmatpush1.xpose.msra.mxu0 0.0
    %395 = vmatprep.subr.mxu0 0.0
    %396 = vmatpush1.xpose.msra.mxu0 0.0
    %397 = vmatprep.subr.mxu0 0.0
    %398 = vmatpush1.xpose.msra.mxu0 0.0
    %399 = vmatprep.subr.mxu0 0.0
    %400 = vmatpush1.xpose.msra.mxu0 0.0
    %401 = vmatprep.subr.mxu0 0.0
    %402 = vmatpush1.xpose.msra.mxu0 0.0
    %403 = vmatprep.subr.mxu0 0.0
    %404 = vmatpush1.xpose.msra.mxu0 0.0
    %405 = vmatprep.subr.mxu0 0.0
    %406 = vmatpush1.xpose.msra.mxu0 0.0
    %407 = vmatprep.subr.mxu0 0.0
    %408 = vmatpush1.xpose.msra.mxu0 0.0
    %409 = vmatprep.subr.mxu0 0.0
    %410 = vmatpush1.xpose.msra.mxu0 0.0
    %411 = vmatprep.subr.mxu0 0.0
    %412 = vmatpush1.xpose.msra.mxu0 0.0
    %413 = vmatprep.subr.mxu0 0.0
    %414 = vmatpush1.xpose.msra.mxu0 0.0
    %415 = vmatprep.subr.mxu0 0.0
    %416 = vmatpush1.xpose.msra.mxu0 0.0
    %417 = vmatprep.subr.mxu0 0.0
    %418 = vmatpush1.xpose.msra.mxu0 0.0
    %419 = vmatprep.subr.mxu0 0.0
    %420 = vmatpush1.xpose.msra.mxu0 0.0
    %421 = vmatprep.subr.mxu0 0.0
    %422 = vmatpush1.xpose.msra.mxu0 0.0
    %423 = vmatprep.subr.mxu0 0.0
    %424 = vmatpush1.xpose.msra.mxu0 0.0
    %425 = vmatprep.subr.mxu0 0.0
    %426 = vmatpush1.xpose.msra.mxu0 0.0
    %427 = vmatprep.subr.mxu0 0.0
    %428 = vmatpush1.xpose.msra.mxu0 0.0
    %429 = vmatprep.subr.mxu0 0.0
    %430 = vmatpush1.xpose.msra.mxu0 0.0
    %431 = vmatprep.subr.mxu0 0.0
    %432 = vmatpush1.xpose.msra.mxu0 0.0
    %433 = vmatprep.subr.mxu0 0.0
    %434 = vmatpush1.xpose.msra.mxu0 0.0
    %435 = vmatprep.subr.mxu0 0.0
    %436 = vmatpush1.xpose.msra.mxu0 0.0
    %437 = vmatprep.subr.mxu0 0.0
    %438 = vmatpush1.xpose.msra.mxu0 0.0
    %439 = vmatprep.subr.mxu0 0.0
    %440 = vmatpush1.xpose.msra.mxu0 0.0
    %441 = vmatprep.mubr.f32.mxu0 0.0
    %442 = vmatmul.mubr.f32.gmra.mrb[0].mxu0 %v372
    %v443 = vpop.f32.mrb[0].mxu0
    %v444 = vadd.f32 %v124, %v443
    %v445 = vpop.f32.mrb[0].mxu0
    %446 = vdwg.mxu0
    %v448 = vsel %vm109, %v208, 0
    %v451 = vsel %vm109, %v288, 0
    %453 = vmatprep.subr.mxu0 0.0
    %454 = vmatpush1.xpose.msra.mxu0 %v451
    %455 = vmatprep.subr.mxu0 0.0
    %456 = vmatpush1.xpose.msra.mxu0 0.0
    %457 = vmatprep.subr.mxu0 0.0
    %458 = vmatpush1.xpose.msra.mxu0 0.0
    %459 = vmatprep.subr.mxu0 0.0
    %460 = vmatpush1.xpose.msra.mxu0 0.0
    %461 = vmatprep.subr.mxu0 0.0
    %462 = vmatpush1.xpose.msra.mxu0 0.0
    %463 = vmatprep.subr.mxu0 0.0
    %464 = vmatpush1.xpose.msra.mxu0 0.0
    %465 = vmatprep.subr.mxu0 0.0
    %466 = vmatpush1.xpose.msra.mxu0 0.0
    %467 = vmatprep.subr.mxu0 0.0
    %468 = vmatpush1.xpose.msra.mxu0 0.0
    %469 = vmatprep.subr.mxu0 0.0
    %470 = vmatpush1.xpose.msra.mxu0 0.0
    %471 = vmatprep.subr.mxu0 0.0
    %472 = vmatpush1.xpose.msra.mxu0 0.0
    %473 = vmatprep.subr.mxu0 0.0
    %474 = vmatpush1.xpose.msra.mxu0 0.0
    %475 = vmatprep.subr.mxu0 0.0
    %476 = vmatpush1.xpose.msra.mxu0 0.0
    %477 = vmatprep.subr.mxu0 0.0
    %478 = vmatpush1.xpose.msra.mxu0 0.0
    %479 = vmatprep.subr.mxu0 0.0
    %480 = vmatpush1.xpose.msra.mxu0 0.0
    %481 = vmatprep.subr.mxu0 0.0
    %482 = vmatpush1.xpose.msra.mxu0 0.0
    %483 = vmatprep.subr.mxu0 0.0
    %484 = vmatpush1.xpose.msra.mxu0 0.0
    %485 = vmatprep.subr.mxu0 0.0
    %486 = vmatpush1.xpose.msra.mxu0 0.0
    %487 = vmatprep.subr.mxu0 0.0
    %488 = vmatpush1.xpose.msra.mxu0 0.0
    %489 = vmatprep.subr.mxu0 0.0
    %490 = vmatpush1.xpose.msra.mxu0 0.0
    %491 = vmatprep.subr.mxu0 0.0
    %492 = vmatpush1.xpose.msra.mxu0 0.0
    %493 = vmatprep.subr.mxu0 0.0
    %494 = vmatpush1.xpose.msra.mxu0 0.0
    %495 = vmatprep.subr.mxu0 0.0
    %496 = vmatpush1.xpose.msra.mxu0 0.0
    %497 = vmatprep.subr.mxu0 0.0
    %498 = vmatpush1.xpose.msra.mxu0 0.0
    %499 = vmatprep.subr.mxu0 0.0
    %500 = vmatpush1.xpose.msra.mxu0 0.0
    %501 = vmatprep.subr.mxu0 0.0
    %502 = vmatpush1.xpose.msra.mxu0 0.0
    %503 = vmatprep.subr.mxu0 0.0
    %504 = vmatpush1.xpose.msra.mxu0 0.0
    %505 = vmatprep.subr.mxu0 0.0
    %506 = vmatpush1.xpose.msra.mxu0 0.0
    %507 = vmatprep.subr.mxu0 0.0
    %508 = vmatpush1.xpose.msra.mxu0 0.0
    %509 = vmatprep.subr.mxu0 0.0
    %510 = vmatpush1.xpose.msra.mxu0 0.0
    %511 = vmatprep.subr.mxu0 0.0
    %512 = vmatpush1.xpose.msra.mxu0 0.0
    %513 = vmatprep.subr.mxu0 0.0
    %514 = vmatpush1.xpose.msra.mxu0 0.0
    %515 = vmatprep.subr.mxu0 0.0
    %516 = vmatpush1.xpose.msra.mxu0 0.0
    %517 = vmatprep.mubr.f32.mxu0 0.0
    %518 = vmatmul.mubr.f32.gmra.mrb[0].mxu0 %v448
    %v519 = vpop.f32.mrb[0].mxu0
    %v520 = vadd.f32 %v125, %v519
    %v521 = vpop.f32.mrb[0].mxu0
    %522 = vdwg.mxu0
    %v523 = vsel %vm109, %v444, -inf
    %524 = vmax.xlane.f32.xlu0 %v523
    %v525 = vpop.xlane.xlu0 %524
    %v526 = vsel %vm109, %v520, -inf
    %527 = vmax.xlane.f32.xlu0 %v526
    %v528 = vpop.xlane.xlu0 %527
    %v529 = vsub.f32 %v444, %v525
    %v530 = vsub.f32 %v520, %v528
    %v531 = vmul.f32 %v529, 1.442695
    %v532 = vpow.pop %v531
    %v533 = vmul.f32 %v530, 1.442695
    %v534 = vpow.pop %v533
    %v535 = vsel %vm109, %v532, 0.0
    %536 = vadd.xlane.f32.xlu0 %v535
    %v537 = vpop.xlane.xlu0 %536
    %v538 = vsel %vm109, %v534, 0.0
    %539 = vadd.xlane.f32.xlu0 %v538
    %v540 = vpop.xlane.xlu0 %539
    %v541 = vrcp.pop %v537
    %v542 = vrcp.pop %v540
    %v543 = vmul.f32 %v537, %v541
    %v544 = vmul.f32 %v540, %v542
    %v545 = vsub.f32 2.0, %v543
    %v546 = vsub.f32 2.0, %v544
    %v547 = vmul.f32 %v541, %v545
    %v548 = vmul.f32 %v542, %v546
    %v549 = vmul.f32 %v532, %v547
    %v550 = vmul.f32 %v534, %v548
    %v552 = vsel %vm109, %v549, 0
    %554 = vmatprep.subr.mxu0 0.0
    %555 = vmatpush1.msra.mxu0 %v363
    %556 = vmatprep.subr.mxu0 0.0
    %557 = vmatpush1.msra.mxu0 0.0
    %558 = vmatprep.subr.mxu0 0.0
    %559 = vmatpush1.msra.mxu0 0.0
    %560 = vmatprep.subr.mxu0 0.0
    %561 = vmatpush1.msra.mxu0 0.0
    %562 = vmatprep.subr.mxu0 0.0
    %563 = vmatpush1.msra.mxu0 0.0
    %564 = vmatprep.subr.mxu0 0.0
    %565 = vmatpush1.msra.mxu0 0.0
    %566 = vmatprep.subr.mxu0 0.0
    %567 = vmatpush1.msra.mxu0 0.0
    %568 = vmatprep.subr.mxu0 0.0
    %569 = vmatpush1.msra.mxu0 0.0
    %570 = vmatprep.subr.mxu0 0.0
    %571 = vmatpush1.msra.mxu0 0.0
    %572 = vmatprep.subr.mxu0 0.0
    %573 = vmatpush1.msra.mxu0 0.0
    %574 = vmatprep.subr.mxu0 0.0
    %575 = vmatpush1.msra.mxu0 0.0
    %576 = vmatprep.subr.mxu0 0.0
    %577 = vmatpush1.msra.mxu0 0.0
    %578 = vmatprep.subr.mxu0 0.0
    %579 = vmatpush1.msra.mxu0 0.0
    %580 = vmatprep.subr.mxu0 0.0
    %581 = vmatpush1.msra.mxu0 0.0
    %582 = vmatprep.subr.mxu0 0.0
    %583 = vmatpush1.msra.mxu0 0.0
    %584 = vmatprep.subr.mxu0 0.0
    %585 = vmatpush1.msra.mxu0 0.0
    %586 = vmatprep.subr.mxu0 0.0
    %587 = vmatpush1.msra.mxu0 0.0
    %588 = vmatprep.subr.mxu0 0.0
    %589 = vmatpush1.msra.mxu0 0.0
    %590 = vmatprep.subr.mxu0 0.0
    %591 = vmatpush1.msra.mxu0 0.0
    %592 = vmatprep.subr.mxu0 0.0
    %593 = vmatpush1.msra.mxu0 0.0
    %594 = vmatprep.subr.mxu0 0.0
    %595 = vmatpush1.msra.mxu0 0.0
    %596 = vmatprep.subr.mxu0 0.0
    %597 = vmatpush1.msra.mxu0 0.0
    %598 = vmatprep.subr.mxu0 0.0
    %599 = vmatpush1.msra.mxu0 0.0
    %600 = vmatprep.subr.mxu0 0.0
    %601 = vmatpush1.msra.mxu0 0.0
    %602 = vmatprep.subr.mxu0 0.0
    %603 = vmatpush1.msra.mxu0 0.0
    %604 = vmatprep.subr.mxu0 0.0
    %605 = vmatpush1.msra.mxu0 0.0
    %606 = vmatprep.subr.mxu0 0.0
    %607 = vmatpush1.msra.mxu0 0.0
    %608 = vmatprep.subr.mxu0 0.0
    %609 = vmatpush1.msra.mxu0 0.0
    %610 = vmatprep.subr.mxu0 0.0
    %611 = vmatpush1.msra.mxu0 0.0
    %612 = vmatprep.subr.mxu0 0.0
    %613 = vmatpush1.msra.mxu0 0.0
    %614 = vmatprep.subr.mxu0 0.0
    %615 = vmatpush1.msra.mxu0 0.0
    %616 = vmatprep.subr.mxu0 0.0
    %617 = vmatpush1.msra.mxu0 0.0
    %618 = vmatprep.mubr.f32.mxu0 0.0
    %619 = vmatmul.mubr.f32.gmra.mrb[0].mxu0 %v552
    %v620 = vpop.f32.mrb[0].mxu0
    %v621 = vadd.f32 0.0, %v620
    %v622 = vpop.f32.mrb[0].mxu0
    %623 = vdwg.mxu0
    %v625 = vsel %vm109, %v550, 0
    %627 = vmatprep.subr.mxu0 0.0
    %628 = vmatpush1.msra.mxu0 %v368
    %629 = vmatprep.subr.mxu0 0.0
    %630 = vmatpush1.msra.mxu0 0.0
    %631 = vmatprep.subr.mxu0 0.0
    %632 = vmatpush1.msra.mxu0 0.0
    %633 = vmatprep.subr.mxu0 0.0
    %634 = vmatpush1.msra.mxu0 0.0
    %635 = vmatprep.subr.mxu0 0.0
    %636 = vmatpush1.msra.mxu0 0.0
    %637 = vmatprep.subr.mxu0 0.0
    %638 = vmatpush1.msra.mxu0 0.0
    %639 = vmatprep.subr.mxu0 0.0
    %640 = vmatpush1.msra.mxu0 0.0
    %641 = vmatprep.subr.mxu0 0.0
    %642 = vmatpush1.msra.mxu0 0.0
    %643 = vmatprep.subr.mxu0 0.0
    %644 = vmatpush1.msra.mxu0 0.0
    %645 = vmatprep.subr.mxu0 0.0
    %646 = vmatpush1.msra.mxu0 0.0
    %647 = vmatprep.subr.mxu0 0.0
    %648 = vmatpush1.msra.mxu0 0.0
    %649 = vmatprep.subr.mxu0 0.0
    %650 = vmatpush1.msra.mxu0 0.0
    %651 = vmatprep.subr.mxu0 0.0
    %652 = vmatpush1.msra.mxu0 0.0
    %653 = vmatprep.subr.mxu0 0.0
    %654 = vmatpush1.msra.mxu0 0.0
    %655 = vmatprep.subr.mxu0 0.0
    %656 = vmatpush1.msra.mxu0 0.0
    %657 = vmatprep.subr.mxu0 0.0
    %658 = vmatpush1.msra.mxu0 0.0
    %659 = vmatprep.subr.mxu0 0.0
    %660 = vmatpush1.msra.mxu0 0.0
    %661 = vmatprep.subr.mxu0 0.0
    %662 = vmatpush1.msra.mxu0 0.0
    %663 = vmatprep.subr.mxu0 0.0
    %664 = vmatpush1.msra.mxu0 0.0
    %665 = vmatprep.subr.mxu0 0.0
    %666 = vmatpush1.msra.mxu0 0.0
    %667 = vmatprep.subr.mxu0 0.0
    %668 = vmatpush1.msra.mxu0 0.0
    %669 = vmatprep.subr.mxu0 0.0
    %670 = vmatpush1.msra.mxu0 0.0
    %671 = vmatprep.subr.mxu0 0.0
    %672 = vmatpush1.msra.mxu0 0.0
    %673 = vmatprep.subr.mxu0 0.0
    %674 = vmatpush1.msra.mxu0 0.0
    %675 = vmatprep.subr.mxu0 0.0
    %676 = vmatpush1.msra.mxu0 0.0
    %677 = vmatprep.subr.mxu0 0.0
    %678 = vmatpush1.msra.mxu0 0.0
    %679 = vmatprep.subr.mxu0 0.0
    %680 = vmatpush1.msra.mxu0 0.0
    %681 = vmatprep.subr.mxu0 0.0
    %682 = vmatpush1.msra.mxu0 0.0
    %683 = vmatprep.subr.mxu0 0.0
    %684 = vmatpush1.msra.mxu0 0.0
    %685 = vmatprep.subr.mxu0 0.0
    %686 = vmatpush1.msra.mxu0 0.0
    %687 = vmatprep.subr.mxu0 0.0
    %688 = vmatpush1.msra.mxu0 0.0
    %689 = vmatprep.subr.mxu0 0.0
    %690 = vmatpush1.msra.mxu0 0.0
    %691 = vmatprep.mubr.f32.mxu0 0.0
    %692 = vmatmul.mubr.f32.gmra.mrb[0].mxu0 %v625
    %v693 = vpop.f32.mrb[0].mxu0
    %v694 = vadd.f32 0.0, %v693
    %v695 = vpop.f32.mrb[0].mxu0
    %696 = vdwg.mxu0
    %v697 = vld [vmem:[%s3] sm:$0xff]
    %v699 = vsel %vm109, %v621, 0
    %v702 = vsel %vm109, %v694, 0
    %704 = vmatprep.subr.mxu0 0.0
    %705 = vmatpush1.msra.mxu0 %v697
    %706 = vmatprep.subr.mxu0 0.0
    %707 = vmatpush1.msra.mxu0 0.0
    %708 = vmatprep.subr.mxu0 0.0
    %709 = vmatpush1.msra.mxu0 0.0
    %710 = vmatprep.subr.mxu0 0.0
    %711 = vmatpush1.msra.mxu0 0.0
    %712 = vmatprep.subr.mxu0 0.0
    %713 = vmatpush1.msra.mxu0 0.0
    %714 = vmatprep.subr.mxu0 0.0
    %715 = vmatpush1.msra.mxu0 0.0
    %716 = vmatprep.subr.mxu0 0.0
    %717 = vmatpush1.msra.mxu0 0.0
    %718 = vmatprep.subr.mxu0 0.0
    %719 = vmatpush1.msra.mxu0 0.0
    %720 = vmatprep.subr.mxu0 0.0
    %721 = vmatpush1.msra.mxu0 0.0
    %722 = vmatprep.subr.mxu0 0.0
    %723 = vmatpush1.msra.mxu0 0.0
    %724 = vmatprep.subr.mxu0 0.0
    %725 = vmatpush1.msra.mxu0 0.0
    %726 = vmatprep.subr.mxu0 0.0
    %727 = vmatpush1.msra.mxu0 0.0
    %728 = vmatprep.subr.mxu0 0.0
    %729 = vmatpush1.msra.mxu0 0.0
    %730 = vmatprep.subr.mxu0 0.0
    %731 = vmatpush1.msra.mxu0 0.0
    %732 = vmatprep.subr.mxu0 0.0
    %733 = vmatpush1.msra.mxu0 0.0
    %734 = vmatprep.subr.mxu0 0.0
    %735 = vmatpush1.msra.mxu0 0.0
    %736 = vmatprep.subr.mxu0 0.0
    %737 = vmatpush1.msra.mxu0 0.0
    %738 = vmatprep.subr.mxu0 0.0
    %739 = vmatpush1.msra.mxu0 0.0
    %740 = vmatprep.subr.mxu0 0.0
    %741 = vmatpush1.msra.mxu0 0.0
    %742 = vmatprep.subr.mxu0 0.0
    %743 = vmatpush1.msra.mxu0 0.0
    %744 = vmatprep.subr.mxu0 0.0
    %745 = vmatpush1.msra.mxu0 0.0
    %746 = vmatprep.subr.mxu0 0.0
    %747 = vmatpush1.msra.mxu0 0.0
    %748 = vmatprep.subr.mxu0 0.0
    %749 = vmatpush1.msra.mxu0 0.0
    %750 = vmatprep.subr.mxu0 0.0
    %751 = vmatpush1.msra.mxu0 0.0
    %752 = vmatprep.subr.mxu0 0.0
    %753 = vmatpush1.msra.mxu0 0.0
    %754 = vmatprep.subr.mxu0 0.0
    %755 = vmatpush1.msra.mxu0 0.0
    %756 = vmatprep.subr.mxu0 0.0
    %757 = vmatpush1.msra.mxu0 0.0
    %758 = vmatprep.subr.mxu0 0.0
    %759 = vmatpush1.msra.mxu0 0.0
    %760 = vmatprep.subr.mxu0 0.0
    %761 = vmatpush1.msra.mxu0 0.0
    %762 = vmatprep.subr.mxu0 0.0
    %763 = vmatpush1.msra.mxu0 0.0
    %764 = vmatprep.subr.mxu0 0.0
    %765 = vmatpush1.msra.mxu0 0.0
    %766 = vmatprep.subr.mxu0 0.0
    %767 = vmatpush1.msra.mxu0 0.0
    %768 = vmatprep.mubr.f32.mxu0 0.0
    %769 = vmatmul.mubr.f32.gmra.mrb[0].mxu0 %v699
    %v770 = vpop.f32.mrb[0].mxu0
    %v771 = vadd.f32 0.0, %v770
    %v772 = vpop.f32.mrb[0].mxu0
    %773 = vmatprep.mubr.f32.mxu0 0.0
    %774 = vmatmul.mubr.f32.gmra.mrb[0].mxu0 %v702
    %v775 = vpop.f32.mrb[0].mxu0
    %v776 = vadd.f32 0.0, %v775
    %v777 = vpop.f32.mrb[0].mxu0
    %778 = vdwg.mxu0
    %v779 = vadd.f32 %v18, %v771
    %v780 = vadd.f32 %v19, %v776
    %s781 = scalar_lea.vmem %s2, 32
    %v782 = vld [vmem:[%s781] sm:$0xff]
    %v783 = vld [vmem:[%s781 + $0x8] sm:$0xff]
    %v784 = vld [vmem:[%s781 + $0x10] sm:$0xff]
    %v785 = vld [vmem:[%s781 + $0x18] sm:$0xff]
    %786 = vmatprep.subr.mxu0 0.0
    %787 = vmatpush1.msra.mxu0 %v782
    %788 = vmatprep.subr.mxu0 0.0
    %789 = vmatpush1.msra.mxu0 %v783
    %790 = vmatprep.subr.mxu0 0.0
    %791 = vmatpush1.msra.mxu0 %v784
    %792 = vmatprep.subr.mxu0 0.0
    %793 = vmatpush1.msra.mxu0 %v785
    %794 = vmatprep.subr.mxu0 0.0
    %795 = vmatpush1.msra.mxu0 0.0
    %796 = vmatprep.subr.mxu0 0.0
    %797 = vmatpush1.msra.mxu0 0.0
    %798 = vmatprep.subr.mxu0 0.0
    %799 = vmatpush1.msra.mxu0 0.0
    %800 = vmatprep.subr.mxu0 0.0
    %801 = vmatpush1.msra.mxu0 0.0
    %802 = vmatprep.subr.mxu0 0.0
    %803 = vmatpush1.msra.mxu0 0.0
    %804 = vmatprep.subr.mxu0 0.0
    %805 = vmatpush1.msra.mxu0 0.0
    %806 = vmatprep.subr.mxu0 0.0
    %807 = vmatpush1.msra.mxu0 0.0
    %808 = vmatprep.subr.mxu0 0.0
    %809 = vmatpush1.msra.mxu0 0.0
    %810 = vmatprep.subr.mxu0 0.0
    %811 = vmatpush1.msra.mxu0 0.0
    %812 = vmatprep.subr.mxu0 0.0
    %813 = vmatpush1.msra.mxu0 0.0
    %814 = vmatprep.subr.mxu0 0.0
    %815 = vmatpush1.msra.mxu0 0.0
    %816 = vmatprep.subr.mxu0 0.0
    %817 = vmatpush1.msra.mxu0 0.0
    %818 = vmatprep.subr.mxu0 0.0
    %819 = vmatpush1.msra.mxu0 0.0
    %820 = vmatprep.subr.mxu0 0.0
    %821 = vmatpush1.msra.mxu0 0.0
    %822 = vmatprep.subr.mxu0 0.0
    %823 = vmatpush1.msra.mxu0 0.0
    %824 = vmatprep.subr.mxu0 0.0
    %825 = vmatpush1.msra.mxu0 0.0
    %826 = vmatprep.subr.mxu0 0.0
    %827 = vmatpush1.msra.mxu0 0.0
    %828 = vmatprep.subr.mxu0 0.0
    %829 = vmatpush1.msra.mxu0 0.0
    %830 = vmatprep.subr.mxu0 0.0
    %831 = vmatpush1.msra.mxu0 0.0
    %832 = vmatprep.subr.mxu0 0.0
    %833 = vmatpush1.msra.mxu0 0.0
    %834 = vmatprep.subr.mxu0 0.0
    %835 = vmatpush1.msra.mxu0 0.0
    %836 = vmatprep.subr.mxu0 0.0
    %837 = vmatpush1.msra.mxu0 0.0
    %838 = vmatprep.subr.mxu0 0.0
    %839 = vmatpush1.msra.mxu0 0.0
    %840 = vmatprep.subr.mxu0 0.0
    %841 = vmatpush1.msra.mxu0 0.0
    %842 = vmatprep.subr.mxu0 0.0
    %843 = vmatpush1.msra.mxu0 0.0
    %844 = vmatprep.subr.mxu0 0.0
    %845 = vmatpush1.msra.mxu0 0.0
    %846 = vmatprep.subr.mxu0 0.0
    %847 = vmatpush1.msra.mxu0 0.0
    %848 = vmatprep.subr.mxu0 0.0
    %849 = vmatpush1.msra.mxu0 0.0
    %850 = vmatprep.mubr.f32.mxu0 0.0
    %851 = vmatmul.mubr.f32.gmra.mrb[0].mxu0 %v131
    %v852 = vpop.f32.mrb[0].mxu0
    %v853 = vadd.f32 0.0, %v852
    %v854 = vpop.f32.mrb[0].mxu0
    %855 = vmatprep.mubr.f32.mxu0 0.0
    %856 = vmatmul.mubr.f32.gmra.mrb[0].mxu0 %v134
    %v857 = vpop.f32.mrb[0].mxu0
    %v858 = vadd.f32 0.0, %v857
    %v859 = vpop.f32.mrb[0].mxu0
    %860 = vdwg.mxu0
    %s861 = scalar_lea.vmem %s2, 160
    %v862 = vld [vmem:[%s861] sm:$0xff]
    %v863 = vld [vmem:[%s861 + $0x8] sm:$0xff]
    %v864 = vld [vmem:[%s861 + $0x10] sm:$0xff]
    %v865 = vld [vmem:[%s861 + $0x18] sm:$0xff]
    %866 = vmatprep.subr.mxu0 0.0
    %867 = vmatpush1.msra.mxu0 %v862
    %868 = vmatprep.subr.mxu0 0.0
    %869 = vmatpush1.msra.mxu0 %v863
    %870 = vmatprep.subr.mxu0 0.0
    %871 = vmatpush1.msra.mxu0 %v864
    %872 = vmatprep.subr.mxu0 0.0
    %873 = vmatpush1.msra.mxu0 %v865
    %874 = vmatprep.subr.mxu0 0.0
    %875 = vmatpush1.msra.mxu0 0.0
    %876 = vmatprep.subr.mxu0 0.0
    %877 = vmatpush1.msra.mxu0 0.0
    %878 = vmatprep.subr.mxu0 0.0
    %879 = vmatpush1.msra.mxu0 0.0
    %880 = vmatprep.subr.mxu0 0.0
    %881 = vmatpush1.msra.mxu0 0.0
    %882 = vmatprep.subr.mxu0 0.0
    %883 = vmatpush1.msra.mxu0 0.0
    %884 = vmatprep.subr.mxu0 0.0
    %885 = vmatpush1.msra.mxu0 0.0
    %886 = vmatprep.subr.mxu0 0.0
    %887 = vmatpush1.msra.mxu0 0.0
    %888 = vmatprep.subr.mxu0 0.0
    %889 = vmatpush1.msra.mxu0 0.0
    %890 = vmatprep.subr.mxu0 0.0
    %891 = vmatpush1.msra.mxu0 0.0
    %892 = vmatprep.subr.mxu0 0.0
    %893 = vmatpush1.msra.mxu0 0.0
    %894 = vmatprep.subr.mxu0 0.0
    %895 = vmatpush1.msra.mxu0 0.0
    %896 = vmatprep.subr.mxu0 0.0
    %897 = vmatpush1.msra.mxu0 0.0
    %898 = vmatprep.subr.mxu0 0.0
    %899 = vmatpush1.msra.mxu0 0.0
    %900 = vmatprep.subr.mxu0 0.0
    %901 = vmatpush1.msra.mxu0 0.0
    %902 = vmatprep.subr.mxu0 0.0
    %903 = vmatpush1.msra.mxu0 0.0
    %904 = vmatprep.subr.mxu0 0.0
    %905 = vmatpush1.msra.mxu0 0.0
    %906 = vmatprep.subr.mxu0 0.0
    %907 = vmatpush1.msra.mxu0 0.0
    %908 = vmatprep.subr.mxu0 0.0
    %909 = vmatpush1.msra.mxu0 0.0
    %910 = vmatprep.subr.mxu0 0.0
    %911 = vmatpush1.msra.mxu0 0.0
    %912 = vmatprep.subr.mxu0 0.0
    %913 = vmatpush1.msra.mxu0 0.0
    %914 = vmatprep.subr.mxu0 0.0
    %915 = vmatpush1.msra.mxu0 0.0
    %916 = vmatprep.subr.mxu0 0.0
    %917 = vmatpush1.msra.mxu0 0.0
    %918 = vmatprep.subr.mxu0 0.0
    %919 = vmatpush1.msra.mxu0 0.0
    %920 = vmatprep.subr.mxu0 0.0
    %921 = vmatpush1.msra.mxu0 0.0
    %922 = vmatprep.subr.mxu0 0.0
    %923 = vmatpush1.msra.mxu0 0.0
    %924 = vmatprep.subr.mxu0 0.0
    %925 = vmatpush1.msra.mxu0 0.0
    %926 = vmatprep.subr.mxu0 0.0
    %927 = vmatpush1.msra.mxu0 0.0
    %928 = vmatprep.subr.mxu0 0.0
    %929 = vmatpush1.msra.mxu0 0.0
    %930 = vmatprep.mubr.f32.mxu0 0.0
    %931 = vmatmul.mubr.f32.gmra.mrb[0].mxu0 %v131
    %v932 = vpop.f32.mrb[0].mxu0
    %v933 = vadd.f32 0.0, %v932
    %v934 = vpop.f32.mrb[0].mxu0
    %935 = vmatprep.mubr.f32.mxu0 0.0
    %936 = vmatmul.mubr.f32.gmra.mrb[0].mxu0 %v134
    %v937 = vpop.f32.mrb[0].mxu0
    %v938 = vadd.f32 0.0, %v937
    %v939 = vpop.f32.mrb[0].mxu0
    %940 = vdwg.mxu0
    %s941 = scalar_lea.vmem %s2, 288
    %v942 = vld [vmem:[%s941] sm:$0xff]
    %v943 = vld [vmem:[%s941 + $0x8] sm:$0xff]
    %v944 = vld [vmem:[%s941 + $0x10] sm:$0xff]
    %v945 = vld [vmem:[%s941 + $0x18] sm:$0xff]
    %946 = vmatprep.subr.mxu0 0.0
    %947 = vmatpush1.msra.mxu0 %v942
    %948 = vmatprep.subr.mxu0 0.0
    %949 = vmatpush1.msra.mxu0 %v943
    %950 = vmatprep.subr.mxu0 0.0
    %951 = vmatpush1.msra.mxu0 %v944
    %952 = vmatprep.subr.mxu0 0.0
    %953 = vmatpush1.msra.mxu0 %v945
    %954 = vmatprep.subr.mxu0 0.0
    %955 = vmatpush1.msra.mxu0 0.0
    %956 = vmatprep.subr.mxu0 0.0
    %957 = vmatpush1.msra.mxu0 0.0
    %958 = vmatprep.subr.mxu0 0.0
    %959 = vmatpush1.msra.mxu0 0.0
    %960 = vmatprep.subr.mxu0 0.0
    %961 = vmatpush1.msra.mxu0 0.0
    %962 = vmatprep.subr.mxu0 0.0
    %963 = vmatpush1.msra.mxu0 0.0
    %964 = vmatprep.subr.mxu0 0.0
    %965 = vmatpush1.msra.mxu0 0.0
    %966 = vmatprep.subr.mxu0 0.0
    %967 = vmatpush1.msra.mxu0 0.0
    %968 = vmatprep.subr.mxu0 0.0
    %969 = vmatpush1.msra.mxu0 0.0
    %970 = vmatprep.subr.mxu0 0.0
    %971 = vmatpush1.msra.mxu0 0.0
    %972 = vmatprep.subr.mxu0 0.0
    %973 = vmatpush1.msra.mxu0 0.0
    %974 = vmatprep.subr.mxu0 0.0
    %975 = vmatpush1.msra.mxu0 0.0
    %976 = vmatprep.subr.mxu0 0.0
    %977 = vmatpush1.msra.mxu0 0.0
    %978 = vmatprep.subr.mxu0 0.0
    %979 = vmatpush1.msra.mxu0 0.0
    %980 = vmatprep.subr.mxu0 0.0
    %981 = vmatpush1.msra.mxu0 0.0
    %982 = vmatprep.subr.mxu0 0.0
    %983 = vmatpush1.msra.mxu0 0.0
    %984 = vmatprep.subr.mxu0 0.0
    %985 = vmatpush1.msra.mxu0 0.0
    %986 = vmatprep.subr.mxu0 0.0
    %987 = vmatpush1.msra.mxu0 0.0
    %988 = vmatprep.subr.mxu0 0.0
    %989 = vmatpush1.msra.mxu0 0.0
    %990 = vmatprep.subr.mxu0 0.0
    %991 = vmatpush1.msra.mxu0 0.0
    %992 = vmatprep.subr.mxu0 0.0
    %993 = vmatpush1.msra.mxu0 0.0
    %994 = vmatprep.subr.mxu0 0.0
    %995 = vmatpush1.msra.mxu0 0.0
    %996 = vmatprep.subr.mxu0 0.0
    %997 = vmatpush1.msra.mxu0 0.0
    %998 = vmatprep.subr.mxu0 0.0
    %999 = vmatpush1.msra.mxu0 0.0
    %1000 = vmatprep.subr.mxu0 0.0
    %1001 = vmatpush1.msra.mxu0 0.0
    %1002 = vmatprep.subr.mxu0 0.0
    %1003 = vmatpush1.msra.mxu0 0.0
    %1004 = vmatprep.subr.mxu0 0.0
    %1005 = vmatpush1.msra.mxu0 0.0
    %1006 = vmatprep.subr.mxu0 0.0
    %1007 = vmatpush1.msra.mxu0 0.0
    %1008 = vmatprep.subr.mxu0 0.0
    %1009 = vmatpush1.msra.mxu0 0.0
    %1010 = vmatprep.mubr.f32.mxu0 0.0
    %1011 = vmatmul.mubr.f32.gmra.mrb[0].mxu0 %v131
    %v1012 = vpop.f32.mrb[0].mxu0
    %v1013 = vadd.f32 0.0, %v1012
    %v1014 = vpop.f32.mrb[0].mxu0
    %1015 = vmatprep.mubr.f32.mxu0 0.0
    %1016 = vmatmul.mubr.f32.gmra.mrb[0].mxu0 %v134
    %v1017 = vpop.f32.mrb[0].mxu0
    %v1018 = vadd.f32 0.0, %v1017
    %v1019 = vpop.f32.mrb[0].mxu0
    %1020 = vdwg.mxu0
    %v1022 = vsel %vm109, %v853, 0
    %v1025 = vsel %vm109, %v933, 0
    %1027 = vmatprep.subr.mxu0 0.0
    %1028 = vmatpush1.xpose.msra.mxu0 %v1025
    %1029 = vmatprep.subr.mxu0 0.0
    %1030 = vmatpush1.xpose.msra.mxu0 0.0
    %1031 = vmatprep.subr.mxu0 0.0
    %1032 = vmatpush1.xpose.msra.mxu0 0.0
    %1033 = vmatprep.subr.mxu0 0.0
    %1034 = vmatpush1.xpose.msra.mxu0 0.0
    %1035 = vmatprep.subr.mxu0 0.0
    %1036 = vmatpush1.xpose.msra.mxu0 0.0
    %1037 = vmatprep.subr.mxu0 0.0
    %1038 = vmatpush1.xpose.msra.mxu0 0.0
    %1039 = vmatprep.subr.mxu0 0.0
    %1040 = vmatpush1.xpose.msra.mxu0 0.0
    %1041 = vmatprep.subr.mxu0 0.0
    %1042 = vmatpush1.xpose.msra.mxu0 0.0
    %1043 = vmatprep.subr.mxu0 0.0
    %1044 = vmatpush1.xpose.msra.mxu0 0.0
    %1045 = vmatprep.subr.mxu0 0.0
    %1046 = vmatpush1.xpose.msra.mxu0 0.0
    %1047 = vmatprep.subr.mxu0 0.0
    %1048 = vmatpush1.xpose.msra.mxu0 0.0
    %1049 = vmatprep.subr.mxu0 0.0
    %1050 = vmatpush1.xpose.msra.mxu0 0.0
    %1051 = vmatprep.subr.mxu0 0.0
    %1052 = vmatpush1.xpose.msra.mxu0 0.0
    %1053 = vmatprep.subr.mxu0 0.0
    %1054 = vmatpush1.xpose.msra.mxu0 0.0
    %1055 = vmatprep.subr.mxu0 0.0
    %1056 = vmatpush1.xpose.msra.mxu0 0.0
    %1057 = vmatprep.subr.mxu0 0.0
    %1058 = vmatpush1.xpose.msra.mxu0 0.0
    %1059 = vmatprep.subr.mxu0 0.0
    %1060 = vmatpush1.xpose.msra.mxu0 0.0
    %1061 = vmatprep.subr.mxu0 0.0
    %1062 = vmatpush1.xpose.msra.mxu0 0.0
    %1063 = vmatprep.subr.mxu0 0.0
    %1064 = vmatpush1.xpose.msra.mxu0 0.0
    %1065 = vmatprep.subr.mxu0 0.0
    %1066 = vmatpush1.xpose.msra.mxu0 0.0
    %1067 = vmatprep.subr.mxu0 0.0
    %1068 = vmatpush1.xpose.msra.mxu0 0.0
    %1069 = vmatprep.subr.mxu0 0.0
    %1070 = vmatpush1.xpose.msra.mxu0 0.0
    %1071 = vmatprep.subr.mxu0 0.0
    %1072 = vmatpush1.xpose.msra.mxu0 0.0
    %1073 = vmatprep.subr.mxu0 0.0
    %1074 = vmatpush1.xpose.msra.mxu0 0.0
    %1075 = vmatprep.subr.mxu0 0.0
    %1076 = vmatpush1.xpose.msra.mxu0 0.0
    %1077 = vmatprep.subr.mxu0 0.0
    %1078 = vmatpush1.xpose.msra.mxu0 0.0
    %1079 = vmatprep.subr.mxu0 0.0
    %1080 = vmatpush1.xpose.msra.mxu0 0.0
    %1081 = vmatprep.subr.mxu0 0.0
    %1082 = vmatpush1.xpose.msra.mxu0 0.0
    %1083 = vmatprep.subr.mxu0 0.0
    %1084 = vmatpush1.xpose.msra.mxu0 0.0
    %1085 = vmatprep.subr.mxu0 0.0
    %1086 = vmatpush1.xpose.msra.mxu0 0.0
    %1087 = vmatprep.subr.mxu0 0.0
    %1088 = vmatpush1.xpose.msra.mxu0 0.0
    %1089 = vmatprep.subr.mxu0 0.0
    %1090 = vmatpush1.xpose.msra.mxu0 0.0
    %1091 = vmatprep.mubr.f32.mxu0 0.0
    %1092 = vmatmul.mubr.f32.gmra.mrb[0].mxu0 %v1022
    %v1093 = vpop.f32.mrb[0].mxu0
    %v1094 = vadd.f32 %v124, %v1093
    %v1095 = vpop.f32.mrb[0].mxu0
    %1096 = vdwg.mxu0
    %v1098 = vsel %vm109, %v858, 0
    %v1101 = vsel %vm109, %v938, 0
    %1103 = vmatprep.subr.mxu0 0.0
    %1104 = vmatpush1.xpose.msra.mxu0 %v1101
    %1105 = vmatprep.subr.mxu0 0.0
    %1106 = vmatpush1.xpose.msra.mxu0 0.0
    %1107 = vmatprep.subr.mxu0 0.0
    %1108 = vmatpush1.xpose.msra.mxu0 0.0
    %1109 = vmatprep.subr.mxu0 0.0
    %1110 = vmatpush1.xpose.msra.mxu0 0.0
    %1111 = vmatprep.subr.mxu0 0.0
    %1112 = vmatpush1.xpose.msra.mxu0 0.0
    %1113 = vmatprep.subr.mxu0 0.0
    %1114 = vmatpush1.xpose.msra.mxu0 0.0
    %1115 = vmatprep.subr.mxu0 0.0
    %1116 = vmatpush1.xpose.msra.mxu0 0.0
    %1117 = vmatprep.subr.mxu0 0.0
    %1118 = vmatpush1.xpose.msra.mxu0 0.0
    %1119 = vmatprep.subr.mxu0 0.0
    %1120 = vmatpush1.xpose.msra.mxu0 0.0
    %1121 = vmatprep.subr.mxu0 0.0
    %1122 = vmatpush1.xpose.msra.mxu0 0.0
    %1123 = vmatprep.subr.mxu0 0.0
    %1124 = vmatpush1.xpose.msra.mxu0 0.0
    %1125 = vmatprep.subr.mxu0 0.0
    %1126 = vmatpush1.xpose.msra.mxu0 0.0
    %1127 = vmatprep.subr.mxu0 0.0
    %1128 = vmatpush1.xpose.msra.mxu0 0.0
    %1129 = vmatprep.subr.mxu0 0.0
    %1130 = vmatpush1.xpose.msra.mxu0 0.0
    %1131 = vmatprep.subr.mxu0 0.0
    %1132 = vmatpush1.xpose.msra.mxu0 0.0
    %1133 = vmatprep.subr.mxu0 0.0
    %1134 = vmatpush1.xpose.msra.mxu0 0.0
    %1135 = vmatprep.subr.mxu0 0.0
    %1136 = vmatpush1.xpose.msra.mxu0 0.0
    %1137 = vmatprep.subr.mxu0 0.0
    %1138 = vmatpush1.xpose.msra.mxu0 0.0
    %1139 = vmatprep.subr.mxu0 0.0
    %1140 = vmatpush1.xpose.msra.mxu0 0.0
    %1141 = vmatprep.subr.mxu0 0.0
    %1142 = vmatpush1.xpose.msra.mxu0 0.0
    %1143 = vmatprep.subr.mxu0 0.0
    %1144 = vmatpush1.xpose.msra.mxu0 0.0
    %1145 = vmatprep.subr.mxu0 0.0
    %1146 = vmatpush1.xpose.msra.mxu0 0.0
    %1147 = vmatprep.subr.mxu0 0.0
    %1148 = vmatpush1.xpose.msra.mxu0 0.0
    %1149 = vmatprep.subr.mxu0 0.0
    %1150 = vmatpush1.xpose.msra.mxu0 0.0
    %1151 = vmatprep.subr.mxu0 0.0
    %1152 = vmatpush1.xpose.msra.mxu0 0.0
    %1153 = vmatprep.subr.mxu0 0.0
    %1154 = vmatpush1.xpose.msra.mxu0 0.0
    %1155 = vmatprep.subr.mxu0 0.0
    %1156 = vmatpush1.xpose.msra.mxu0 0.0
    %1157 = vmatprep.subr.mxu0 0.0
    %1158 = vmatpush1.xpose.msra.mxu0 0.0
    %1159 = vmatprep.subr.mxu0 0.0
    %1160 = vmatpush1.xpose.msra.mxu0 0.0
    %1161 = vmatprep.subr.mxu0 0.0
    %1162 = vmatpush1.xpose.msra.mxu0 0.0
    %1163 = vmatprep.subr.mxu0 0.0
    %1164 = vmatpush1.xpose.msra.mxu0 0.0
    %1165 = vmatprep.subr.mxu0 0.0
    %1166 = vmatpush1.xpose.msra.mxu0 0.0
    %1167 = vmatprep.mubr.f32.mxu0 0.0
    %1168 = vmatmul.mubr.f32.gmra.mrb[0].mxu0 %v1098
    %v1169 = vpop.f32.mrb[0].mxu0
    %v1170 = vadd.f32 %v125, %v1169
    %v1171 = vpop.f32.mrb[0].mxu0
    %1172 = vdwg.mxu0
    %v1173 = vsel %vm109, %v1094, -inf
    %1174 = vmax.xlane.f32.xlu0 %v1173
    %v1175 = vpop.xlane.xlu0 %1174
    %v1176 = vsel %vm109, %v1170, -inf
    %1177 = vmax.xlane.f32.xlu0 %v1176
    %v1178 = vpop.xlane.xlu0 %1177
    %v1179 = vsub.f32 %v1094, %v1175
    %v1180 = vsub.f32 %v1170, %v1178
    %v1181 = vmul.f32 %v1179, 1.442695
    %v1182 = vpow.pop %v1181
    %v1183 = vmul.f32 %v1180, 1.442695
    %v1184 = vpow.pop %v1183
    %v1185 = vsel %vm109, %v1182, 0.0
    %1186 = vadd.xlane.f32.xlu0 %v1185
    %v1187 = vpop.xlane.xlu0 %1186
    %v1188 = vsel %vm109, %v1184, 0.0
    %1189 = vadd.xlane.f32.xlu0 %v1188
    %v1190 = vpop.xlane.xlu0 %1189
    %v1191 = vrcp.pop %v1187
    %v1192 = vrcp.pop %v1190
    %v1193 = vmul.f32 %v1187, %v1191
    %v1194 = vmul.f32 %v1190, %v1192
    %v1195 = vsub.f32 2.0, %v1193
    %v1196 = vsub.f32 2.0, %v1194
    %v1197 = vmul.f32 %v1191, %v1195
    %v1198 = vmul.f32 %v1192, %v1196
    %v1199 = vmul.f32 %v1182, %v1197
    %v1200 = vmul.f32 %v1184, %v1198
    %v1202 = vsel %vm109, %v1199, 0
    %1204 = vmatprep.subr.mxu0 0.0
    %1205 = vmatpush1.msra.mxu0 %v1013
    %1206 = vmatprep.subr.mxu0 0.0
    %1207 = vmatpush1.msra.mxu0 0.0
    %1208 = vmatprep.subr.mxu0 0.0
    %1209 = vmatpush1.msra.mxu0 0.0
    %1210 = vmatprep.subr.mxu0 0.0
    %1211 = vmatpush1.msra.mxu0 0.0
    %1212 = vmatprep.subr.mxu0 0.0
    %1213 = vmatpush1.msra.mxu0 0.0
    %1214 = vmatprep.subr.mxu0 0.0
    %1215 = vmatpush1.msra.mxu0 0.0
    %1216 = vmatprep.subr.mxu0 0.0
    %1217 = vmatpush1.msra.mxu0 0.0
    %1218 = vmatprep.subr.mxu0 0.0
    %1219 = vmatpush1.msra.mxu0 0.0
    %1220 = vmatprep.subr.mxu0 0.0
    %1221 = vmatpush1.msra.mxu0 0.0
    %1222 = vmatprep.subr.mxu0 0.0
    %1223 = vmatpush1.msra.mxu0 0.0
    %1224 = vmatprep.subr.mxu0 0.0
    %1225 = vmatpush1.msra.mxu0 0.0
    %1226 = vmatprep.subr.mxu0 0.0
    %1227 = vmatpush1.msra.mxu0 0.0
    %1228 = vmatprep.subr.mxu0 0.0
    %1229 = vmatpush1.msra.mxu0 0.0
    %1230 = vmatprep.subr.mxu0 0.0
    %1231 = vmatpush1.msra.mxu0 0.0
    %1232 = vmatprep.subr.mxu0 0.0
    %1233 = vmatpush1.msra.mxu0 0.0
    %1234 = vmatprep.subr.mxu0 0.0
    %1235 = vmatpush1.msra.mxu0 0.0
    %1236 = vmatprep.subr.mxu0 0.0
    %1237 = vmatpush1.msra.mxu0 0.0
    %1238 = vmatprep.subr.mxu0 0.0
    %1239 = vmatpush1.msra.mxu0 0.0
    %1240 = vmatprep.subr.mxu0 0.0
    %1241 = vmatpush1.msra.mxu0 0.0
    %1242 = vmatprep.subr.mxu0 0.0
    %1243 = vmatpush1.msra.mxu0 0.0
    %1244 = vmatprep.subr.mxu0 0.0
    %1245 = vmatpush1.msra.mxu0 0.0
    %1246 = vmatprep.subr.mxu0 0.0
    %1247 = vmatpush1.msra.mxu0 0.0
    %1248 = vmatprep.subr.mxu0 0.0
    %1249 = vmatpush1.msra.mxu0 0.0
    %1250 = vmatprep.subr.mxu0 0.0
    %1251 = vmatpush1.msra.mxu0 0.0
    %1252 = vmatprep.subr.mxu0 0.0
    %1253 = vmatpush1.msra.mxu0 0.0
    %1254 = vmatprep.subr.mxu0 0.0
    %1255 = vmatpush1.msra.mxu0 0.0
    %1256 = vmatprep.subr.mxu0 0.0
    %1257 = vmatpush1.msra.mxu0 0.0
    %1258 = vmatprep.subr.mxu0 0.0
    %1259 = vmatpush1.msra.mxu0 0.0
    %1260 = vmatprep.subr.mxu0 0.0
    %1261 = vmatpush1.msra.mxu0 0.0
    %1262 = vmatprep.subr.mxu0 0.0
    %1263 = vmatpush1.msra.mxu0 0.0
    %1264 = vmatprep.subr.mxu0 0.0
    %1265 = vmatpush1.msra.mxu0 0.0
    %1266 = vmatprep.subr.mxu0 0.0
    %1267 = vmatpush1.msra.mxu0 0.0
    %1268 = vmatprep.mubr.f32.mxu0 0.0
    %1269 = vmatmul.mubr.f32.gmra.mrb[0].mxu0 %v1202
    %v1270 = vpop.f32.mrb[0].mxu0
    %v1271 = vadd.f32 0.0, %v1270
    %v1272 = vpop.f32.mrb[0].mxu0
    %1273 = vdwg.mxu0
    %v1275 = vsel %vm109, %v1200, 0
    %1277 = vmatprep.subr.mxu0 0.0
    %1278 = vmatpush1.msra.mxu0 %v1018
    %1279 = vmatprep.subr.mxu0 0.0
    %1280 = vmatpush1.msra.mxu0 0.0
    %1281 = vmatprep.subr.mxu0 0.0
    %1282 = vmatpush1.msra.mxu0 0.0
    %1283 = vmatprep.subr.mxu0 0.0
    %1284 = vmatpush1.msra.mxu0 0.0
    %1285 = vmatprep.subr.mxu0 0.0
    %1286 = vmatpush1.msra.mxu0 0.0
    %1287 = vmatprep.subr.mxu0 0.0
    %1288 = vmatpush1.msra.mxu0 0.0
    %1289 = vmatprep.subr.mxu0 0.0
    %1290 = vmatpush1.msra.mxu0 0.0
    %1291 = vmatprep.subr.mxu0 0.0
    %1292 = vmatpush1.msra.mxu0 0.0
    %1293 = vmatprep.subr.mxu0 0.0
    %1294 = vmatpush1.msra.mxu0 0.0
    %1295 = vmatprep.subr.mxu0 0.0
    %1296 = vmatpush1.msra.mxu0 0.0
    %1297 = vmatprep.subr.mxu0 0.0
    %1298 = vmatpush1.msra.mxu0 0.0
    %1299 = vmatprep.subr.mxu0 0.0
    %1300 = vmatpush1.msra.mxu0 0.0
    %1301 = vmatprep.subr.mxu0 0.0
    %1302 = vmatpush1.msra.mxu0 0.0
    %1303 = vmatprep.subr.mxu0 0.0
    %1304 = vmatpush1.msra.mxu0 0.0
    %1305 = vmatprep.subr.mxu0 0.0
    %1306 = vmatpush1.msra.mxu0 0.0
    %1307 = vmatprep.subr.mxu0 0.0
    %1308 = vmatpush1.msra.mxu0 0.0
    %1309 = vmatprep.subr.mxu0 0.0
    %1310 = vmatpush1.msra.mxu0 0.0
    %1311 = vmatprep.subr.mxu0 0.0
    %1312 = vmatpush1.msra.mxu0 0.0
    %1313 = vmatprep.subr.mxu0 0.0
    %1314 = vmatpush1.msra.mxu0 0.0
    %1315 = vmatprep.subr.mxu0 0.0
    %1316 = vmatpush1.msra.mxu0 0.0
    %1317 = vmatprep.subr.mxu0 0.0
    %1318 = vmatpush1.msra.mxu0 0.0
    %1319 = vmatprep.subr.mxu0 0.0
    %1320 = vmatpush1.msra.mxu0 0.0
    %1321 = vmatprep.subr.mxu0 0.0
    %1322 = vmatpush1.msra.mxu0 0.0
    %1323 = vmatprep.subr.mxu0 0.0
    %1324 = vmatpush1.msra.mxu0 0.0
    %1325 = vmatprep.subr.mxu0 0.0
    %1326 = vmatpush1.msra.mxu0 0.0
    %1327 = vmatprep.subr.mxu0 0.0
    %1328 = vmatpush1.msra.mxu0 0.0
    %1329 = vmatprep.subr.mxu0 0.0
    %1330 = vmatpush1.msra.mxu0 0.0
    %1331 = vmatprep.subr.mxu0 0.0
    %1332 = vmatpush1.msra.mxu0 0.0
    %1333 = vmatprep.subr.mxu0 0.0
    %1334 = vmatpush1.msra.mxu0 0.0
    %1335 = vmatprep.subr.mxu0 0.0
    %1336 = vmatpush1.msra.mxu0 0.0
    %1337 = vmatprep.subr.mxu0 0.0
    %1338 = vmatpush1.msra.mxu0 0.0
    %1339 = vmatprep.subr.mxu0 0.0
    %1340 = vmatpush1.msra.mxu0 0.0
    %1341 = vmatprep.mubr.f32.mxu0 0.0
    %1342 = vmatmul.mubr.f32.gmra.mrb[0].mxu0 %v1275
    %v1343 = vpop.f32.mrb[0].mxu0
    %v1344 = vadd.f32 0.0, %v1343
    %v1345 = vpop.f32.mrb[0].mxu0
    %1346 = vdwg.mxu0
    %v1347 = vld [vmem:[%s3 + $0x8] sm:$0xff]
    %v1349 = vsel %vm109, %v1271, 0
    %v1352 = vsel %vm109, %v1344, 0
    %1354 = vmatprep.subr.mxu0 0.0
    %1355 = vmatpush1.msra.mxu0 %v1347
    %1356 = vmatprep.subr.mxu0 0.0
    %1357 = vmatpush1.msra.mxu0 0.0
    %1358 = vmatprep.subr.mxu0 0.0
    %1359 = vmatpush1.msra.mxu0 0.0
    %1360 = vmatprep.subr.mxu0 0.0
    %1361 = vmatpush1.msra.mxu0 0.0
    %1362 = vmatprep.subr.mxu0 0.0
    %1363 = vmatpush1.msra.mxu0 0.0
    %1364 = vmatprep.subr.mxu0 0.0
    %1365 = vmatpush1.msra.mxu0 0.0
    %1366 = vmatprep.subr.mxu0 0.0
    %1367 = vmatpush1.msra.mxu0 0.0
    %1368 = vmatprep.subr.mxu0 0.0
    %1369 = vmatpush1.msra.mxu0 0.0
    %1370 = vmatprep.subr.mxu0 0.0
    %1371 = vmatpush1.msra.mxu0 0.0
    %1372 = vmatprep.subr.mxu0 0.0
    %1373 = vmatpush1.msra.mxu0 0.0
    %1374 = vmatprep.subr.mxu0 0.0
    %1375 = vmatpush1.msra.mxu0 0.0
    %1376 = vmatprep.subr.mxu0 0.0
    %1377 = vmatpush1.msra.mxu0 0.0
    %1378 = vmatprep.subr.mxu0 0.0
    %1379 = vmatpush1.msra.mxu0 0.0
    %1380 = vmatprep.subr.mxu0 0.0
    %1381 = vmatpush1.msra.mxu0 0.0
    %1382 = vmatprep.subr.mxu0 0.0
    %1383 = vmatpush1.msra.mxu0 0.0
    %1384 = vmatprep.subr.mxu0 0.0
    %1385 = vmatpush1.msra.mxu0 0.0
    %1386 = vmatprep.subr.mxu0 0.0
    %1387 = vmatpush1.msra.mxu0 0.0
    %1388 = vmatprep.subr.mxu0 0.0
    %1389 = vmatpush1.msra.mxu0 0.0
    %1390 = vmatprep.subr.mxu0 0.0
    %1391 = vmatpush1.msra.mxu0 0.0
    %1392 = vmatprep.subr.mxu0 0.0
    %1393 = vmatpush1.msra.mxu0 0.0
    %1394 = vmatprep.subr.mxu0 0.0
    %1395 = vmatpush1.msra.mxu0 0.0
    %1396 = vmatprep.subr.mxu0 0.0
    %1397 = vmatpush1.msra.mxu0 0.0
    %1398 = vmatprep.subr.mxu0 0.0
    %1399 = vmatpush1.msra.mxu0 0.0
    %1400 = vmatprep.subr.mxu0 0.0
    %1401 = vmatpush1.msra.mxu0 0.0
    %1402 = vmatprep.subr.mxu0 0.0
    %1403 = vmatpush1.msra.mxu0 0.0
    %1404 = vmatprep.subr.mxu0 0.0
    %1405 = vmatpush1.msra.mxu0 0.0
    %1406 = vmatprep.subr.mxu0 0.0
    %1407 = vmatpush1.msra.mxu0 0.0
    %1408 = vmatprep.subr.mxu0 0.0
    %1409 = vmatpush1.msra.mxu0 0.0
    %1410 = vmatprep.subr.mxu0 0.0
    %1411 = vmatpush1.msra.mxu0 0.0
    %1412 = vmatprep.subr.mxu0 0.0
    %1413 = vmatpush1.msra.mxu0 0.0
    %1414 = vmatprep.subr.mxu0 0.0
    %1415 = vmatpush1.msra.mxu0 0.0
    %1416 = vmatprep.subr.mxu0 0.0
    %1417 = vmatpush1.msra.mxu0 0.0
    %1418 = vmatprep.mubr.f32.mxu0 0.0
    %1419 = vmatmul.mubr.f32.gmra.mrb[0].mxu0 %v1349
    %v1420 = vpop.f32.mrb[0].mxu0
    %v1421 = vadd.f32 0.0, %v1420
    %v1422 = vpop.f32.mrb[0].mxu0
    %1423 = vmatprep.mubr.f32.mxu0 0.0
    %1424 = vmatmul.mubr.f32.gmra.mrb[0].mxu0 %v1352
    %v1425 = vpop.f32.mrb[0].mxu0
    %v1426 = vadd.f32 0.0, %v1425
    %v1427 = vpop.f32.mrb[0].mxu0
    %1428 = vdwg.mxu0
    %v1429 = vadd.f32 %v779, %v1421
    %v1430 = vadd.f32 %v780, %v1426
    %s1431 = scalar_lea.vmem %s2, 64
    %v1432 = vld [vmem:[%s1431] sm:$0xff]
    %v1433 = vld [vmem:[%s1431 + $0x8] sm:$0xff]
    %v1434 = vld [vmem:[%s1431 + $0x10] sm:$0xff]
    %v1435 = vld [vmem:[%s1431 + $0x18] sm:$0xff]
    %1436 = vmatprep.subr.mxu0 0.0
    %1437 = vmatpush1.msra.mxu0 %v1432
    %1438 = vmatprep.subr.mxu0 0.0
    %1439 = vmatpush1.msra.mxu0 %v1433
    %1440 = vmatprep.subr.mxu0 0.0
    %1441 = vmatpush1.msra.mxu0 %v1434
    %1442 = vmatprep.subr.mxu0 0.0
    %1443 = vmatpush1.msra.mxu0 %v1435
    %1444 = vmatprep.subr.mxu0 0.0
    %1445 = vmatpush1.msra.mxu0 0.0
    %1446 = vmatprep.subr.mxu0 0.0
    %1447 = vmatpush1.msra.mxu0 0.0
    %1448 = vmatprep.subr.mxu0 0.0
    %1449 = vmatpush1.msra.mxu0 0.0
    %1450 = vmatprep.subr.mxu0 0.0
    %1451 = vmatpush1.msra.mxu0 0.0
    %1452 = vmatprep.subr.mxu0 0.0
    %1453 = vmatpush1.msra.mxu0 0.0
    %1454 = vmatprep.subr.mxu0 0.0
    %1455 = vmatpush1.msra.mxu0 0.0
    %1456 = vmatprep.subr.mxu0 0.0
    %1457 = vmatpush1.msra.mxu0 0.0
    %1458 = vmatprep.subr.mxu0 0.0
    %1459 = vmatpush1.msra.mxu0 0.0
    %1460 = vmatprep.subr.mxu0 0.0
    %1461 = vmatpush1.msra.mxu0 0.0
    %1462 = vmatprep.subr.mxu0 0.0
    %1463 = vmatpush1.msra.mxu0 0.0
    %1464 = vmatprep.subr.mxu0 0.0
    %1465 = vmatpush1.msra.mxu0 0.0
    %1466 = vmatprep.subr.mxu0 0.0
    %1467 = vmatpush1.msra.mxu0 0.0
    %1468 = vmatprep.subr.mxu0 0.0
    %1469 = vmatpush1.msra.mxu0 0.0
    %1470 = vmatprep.subr.mxu0 0.0
    %1471 = vmatpush1.msra.mxu0 0.0
    %1472 = vmatprep.subr.mxu0 0.0
    %1473 = vmatpush1.msra.mxu0 0.0
    %1474 = vmatprep.subr.mxu0 0.0
    %1475 = vmatpush1.msra.mxu0 0.0
    %1476 = vmatprep.subr.mxu0 0.0
    %1477 = vmatpush1.msra.mxu0 0.0
    %1478 = vmatprep.subr.mxu0 0.0
    %1479 = vmatpush1.msra.mxu0 0.0
    %1480 = vmatprep.subr.mxu0 0.0
    %1481 = vmatpush1.msra.mxu0 0.0
    %1482 = vmatprep.subr.mxu0 0.0
    %1483 = vmatpush1.msra.mxu0 0.0
    %1484 = vmatprep.subr.mxu0 0.0
    %1485 = vmatpush1.msra.mxu0 0.0
    %1486 = vmatprep.subr.mxu0 0.0
    %1487 = vmatpush1.msra.mxu0 0.0
    %1488 = vmatprep.subr.mxu0 0.0
    %1489 = vmatpush1.msra.mxu0 0.0
    %1490 = vmatprep.subr.mxu0 0.0
    %1491 = vmatpush1.msra.mxu0 0.0
    %1492 = vmatprep.subr.mxu0 0.0
    %1493 = vmatpush1.msra.mxu0 0.0
    %1494 = vmatprep.subr.mxu0 0.0
    %1495 = vmatpush1.msra.mxu0 0.0
    %1496 = vmatprep.subr.mxu0 0.0
    %1497 = vmatpush1.msra.mxu0 0.0
    %1498 = vmatprep.subr.mxu0 0.0
    %1499 = vmatpush1.msra.mxu0 0.0
    %1500 = vmatprep.mubr.f32.mxu0 0.0
    %1501 = vmatmul.mubr.f32.gmra.mrb[0].mxu0 %v131
    %v1502 = vpop.f32.mrb[0].mxu0
    %v1503 = vadd.f32 0.0, %v1502
    %v1504 = vpop.f32.mrb[0].mxu0
    %1505 = vmatprep.mubr.f32.mxu0 0.0
    %1506 = vmatmul.mubr.f32.gmra.mrb[0].mxu0 %v134
    %v1507 = vpop.f32.mrb[0].mxu0
    %v1508 = vadd.f32 0.0, %v1507
    %v1509 = vpop.f32.mrb[0].mxu0
    %1510 = vdwg.mxu0
    %s1511 = scalar_lea.vmem %s2, 192
    %v1512 = vld [vmem:[%s1511] sm:$0xff]
    %v1513 = vld [vmem:[%s1511 + $0x8] sm:$0xff]
    %v1514 = vld [vmem:[%s1511 + $0x10] sm:$0xff]
    %v1515 = vld [vmem:[%s1511 + $0x18] sm:$0xff]
    %1516 = vmatprep.subr.mxu0 0.0
    %1517 = vmatpush1.msra.mxu0 %v1512
    %1518 = vmatprep.subr.mxu0 0.0
    %1519 = vmatpush1.msra.mxu0 %v1513
    %1520 = vmatprep.subr.mxu0 0.0
    %1521 = vmatpush1.msra.mxu0 %v1514
    %1522 = vmatprep.subr.mxu0 0.0
    %1523 = vmatpush1.msra.mxu0 %v1515
    %1524 = vmatprep.subr.mxu0 0.0
    %1525 = vmatpush1.msra.mxu0 0.0
    %1526 = vmatprep.subr.mxu0 0.0
    %1527 = vmatpush1.msra.mxu0 0.0
    %1528 = vmatprep.subr.mxu0 0.0
    %1529 = vmatpush1.msra.mxu0 0.0
    %1530 = vmatprep.subr.mxu0 0.0
    %1531 = vmatpush1.msra.mxu0 0.0
    %1532 = vmatprep.subr.mxu0 0.0
    %1533 = vmatpush1.msra.mxu0 0.0
    %1534 = vmatprep.subr.mxu0 0.0
    %1535 = vmatpush1.msra.mxu0 0.0
    %1536 = vmatprep.subr.mxu0 0.0
    %1537 = vmatpush1.msra.mxu0 0.0
    %1538 = vmatprep.subr.mxu0 0.0
    %1539 = vmatpush1.msra.mxu0 0.0
    %1540 = vmatprep.subr.mxu0 0.0
    %1541 = vmatpush1.msra.mxu0 0.0
    %1542 = vmatprep.subr.mxu0 0.0
    %1543 = vmatpush1.msra.mxu0 0.0
    %1544 = vmatprep.subr.mxu0 0.0
    %1545 = vmatpush1.msra.mxu0 0.0
    %1546 = vmatprep.subr.mxu0 0.0
    %1547 = vmatpush1.msra.mxu0 0.0
    %1548 = vmatprep.subr.mxu0 0.0
    %1549 = vmatpush1.msra.mxu0 0.0
    %1550 = vmatprep.subr.mxu0 0.0
    %1551 = vmatpush1.msra.mxu0 0.0
    %1552 = vmatprep.subr.mxu0 0.0
    %1553 = vmatpush1.msra.mxu0 0.0
    %1554 = vmatprep.subr.mxu0 0.0
    %1555 = vmatpush1.msra.mxu0 0.0
    %1556 = vmatprep.subr.mxu0 0.0
    %1557 = vmatpush1.msra.mxu0 0.0
    %1558 = vmatprep.subr.mxu0 0.0
    %1559 = vmatpush1.msra.mxu0 0.0
    %1560 = vmatprep.subr.mxu0 0.0
    %1561 = vmatpush1.msra.mxu0 0.0
    %1562 = vmatprep.subr.mxu0 0.0
    %1563 = vmatpush1.msra.mxu0 0.0
    %1564 = vmatprep.subr.mxu0 0.0
    %1565 = vmatpush1.msra.mxu0 0.0
    %1566 = vmatprep.subr.mxu0 0.0
    %1567 = vmatpush1.msra.mxu0 0.0
    %1568 = vmatprep.subr.mxu0 0.0
    %1569 = vmatpush1.msra.mxu0 0.0
    %1570 = vmatprep.subr.mxu0 0.0
    %1571 = vmatpush1.msra.mxu0 0.0
    %1572 = vmatprep.subr.mxu0 0.0
    %1573 = vmatpush1.msra.mxu0 0.0
    %1574 = vmatprep.subr.mxu0 0.0
    %1575 = vmatpush1.msra.mxu0 0.0
    %1576 = vmatprep.subr.mxu0 0.0
    %1577 = vmatpush1.msra.mxu0 0.0
    %1578 = vmatprep.subr.mxu0 0.0
    %1579 = vmatpush1.msra.mxu0 0.0
    %1580 = vmatprep.mubr.f32.mxu0 0.0
    %1581 = vmatmul.mubr.f32.gmra.mrb[0].mxu0 %v131
    %v1582 = vpop.f32.mrb[0].mxu0
    %v1583 = vadd.f32 0.0, %v1582
    %v1584 = vpop.f32.mrb[0].mxu0
    %1585 = vmatprep.mubr.f32.mxu0 0.0
    %1586 = vmatmul.mubr.f32.gmra.mrb[0].mxu0 %v134
    %v1587 = vpop.f32.mrb[0].mxu0
    %v1588 = vadd.f32 0.0, %v1587
    %v1589 = vpop.f32.mrb[0].mxu0
    %1590 = vdwg.mxu0
    %s1591 = scalar_lea.vmem %s2, 320
    %v1592 = vld [vmem:[%s1591] sm:$0xff]
    %v1593 = vld [vmem:[%s1591 + $0x8] sm:$0xff]
    %v1594 = vld [vmem:[%s1591 + $0x10] sm:$0xff]
    %v1595 = vld [vmem:[%s1591 + $0x18] sm:$0xff]
    %1596 = vmatprep.subr.mxu0 0.0
    %1597 = vmatpush1.msra.mxu0 %v1592
    %1598 = vmatprep.subr.mxu0 0.0
    %1599 = vmatpush1.msra.mxu0 %v1593
    %1600 = vmatprep.subr.mxu0 0.0
    %1601 = vmatpush1.msra.mxu0 %v1594
    %1602 = vmatprep.subr.mxu0 0.0
    %1603 = vmatpush1.msra.mxu0 %v1595
    %1604 = vmatprep.subr.mxu0 0.0
    %1605 = vmatpush1.msra.mxu0 0.0
    %1606 = vmatprep.subr.mxu0 0.0
    %1607 = vmatpush1.msra.mxu0 0.0
    %1608 = vmatprep.subr.mxu0 0.0
    %1609 = vmatpush1.msra.mxu0 0.0
    %1610 = vmatprep.subr.mxu0 0.0
    %1611 = vmatpush1.msra.mxu0 0.0
    %1612 = vmatprep.subr.mxu0 0.0
    %1613 = vmatpush1.msra.mxu0 0.0
    %1614 = vmatprep.subr.mxu0 0.0
    %1615 = vmatpush1.msra.mxu0 0.0
    %1616 = vmatprep.subr.mxu0 0.0
    %1617 = vmatpush1.msra.mxu0 0.0
    %1618 = vmatprep.subr.mxu0 0.0
    %1619 = vmatpush1.msra.mxu0 0.0
    %1620 = vmatprep.subr.mxu0 0.0
    %1621 = vmatpush1.msra.mxu0 0.0
    %1622 = vmatprep.subr.mxu0 0.0
    %1623 = vmatpush1.msra.mxu0 0.0
    %1624 = vmatprep.subr.mxu0 0.0
    %1625 = vmatpush1.msra.mxu0 0.0
    %1626 = vmatprep.subr.mxu0 0.0
    %1627 = vmatpush1.msra.mxu0 0.0
    %1628 = vmatprep.subr.mxu0 0.0
    %1629 = vmatpush1.msra.mxu0 0.0
    %1630 = vmatprep.subr.mxu0 0.0
    %1631 = vmatpush1.msra.mxu0 0.0
    %1632 = vmatprep.subr.mxu0 0.0
    %1633 = vmatpush1.msra.mxu0 0.0
    %1634 = vmatprep.subr.mxu0 0.0
    %1635 = vmatpush1.msra.mxu0 0.0
    %1636 = vmatprep.subr.mxu0 0.0
    %1637 = vmatpush1.msra.mxu0 0.0
    %1638 = vmatprep.subr.mxu0 0.0
    %1639 = vmatpush1.msra.mxu0 0.0
    %1640 = vmatprep.subr.mxu0 0.0
    %1641 = vmatpush1.msra.mxu0 0.0
    %1642 = vmatprep.subr.mxu0 0.0
    %1643 = vmatpush1.msra.mxu0 0.0
    %1644 = vmatprep.subr.mxu0 0.0
    %1645 = vmatpush1.msra.mxu0 0.0
    %1646 = vmatprep.subr.mxu0 0.0
    %1647 = vmatpush1.msra.mxu0 0.0
    %1648 = vmatprep.subr.mxu0 0.0
    %1649 = vmatpush1.msra.mxu0 0.0
    %1650 = vmatprep.subr.mxu0 0.0
    %1651 = vmatpush1.msra.mxu0 0.0
    %1652 = vmatprep.subr.mxu0 0.0
    %1653 = vmatpush1.msra.mxu0 0.0
    %1654 = vmatprep.subr.mxu0 0.0
    %1655 = vmatpush1.msra.mxu0 0.0
    %1656 = vmatprep.subr.mxu0 0.0
    %1657 = vmatpush1.msra.mxu0 0.0
    %1658 = vmatprep.subr.mxu0 0.0
    %1659 = vmatpush1.msra.mxu0 0.0
    %1660 = vmatprep.mubr.f32.mxu0 0.0
    %1661 = vmatmul.mubr.f32.gmra.mrb[0].mxu0 %v131
    %v1662 = vpop.f32.mrb[0].mxu0
    %v1663 = vadd.f32 0.0, %v1662
    %v1664 = vpop.f32.mrb[0].mxu0
    %1665 = vmatprep.mubr.f32.mxu0 0.0
    %1666 = vmatmul.mubr.f32.gmra.mrb[0].mxu0 %v134
    %v1667 = vpop.f32.mrb[0].mxu0
    %v1668 = vadd.f32 0.0, %v1667
    %v1669 = vpop.f32.mrb[0].mxu0
    %1670 = vdwg.mxu0
    %v1672 = vsel %vm109, %v1503, 0
    %v1675 = vsel %vm109, %v1583, 0
    %1677 = vmatprep.subr.mxu0 0.0
    %1678 = vmatpush1.xpose.msra.mxu0 %v1675
    %1679 = vmatprep.subr.mxu0 0.0
    %1680 = vmatpush1.xpose.msra.mxu0 0.0
    %1681 = vmatprep.subr.mxu0 0.0
    %1682 = vmatpush1.xpose.msra.mxu0 0.0
    %1683 = vmatprep.subr.mxu0 0.0
    %1684 = vmatpush1.xpose.msra.mxu0 0.0
    %1685 = vmatprep.subr.mxu0 0.0
    %1686 = vmatpush1.xpose.msra.mxu0 0.0
    %1687 = vmatprep.subr.mxu0 0.0
    %1688 = vmatpush1.xpose.msra.mxu0 0.0
    %1689 = vmatprep.subr.mxu0 0.0
    %1690 = vmatpush1.xpose.msra.mxu0 0.0
    %1691 = vmatprep.subr.mxu0 0.0
    %1692 = vmatpush1.xpose.msra.mxu0 0.0
    %1693 = vmatprep.subr.mxu0 0.0
    %1694 = vmatpush1.xpose.msra.mxu0 0.0
    %1695 = vmatprep.subr.mxu0 0.0
    %1696 = vmatpush1.xpose.msra.mxu0 0.0
    %1697 = vmatprep.subr.mxu0 0.0
    %1698 = vmatpush1.xpose.msra.mxu0 0.0
    %1699 = vmatprep.subr.mxu0 0.0
    %1700 = vmatpush1.xpose.msra.mxu0 0.0
    %1701 = vmatprep.subr.mxu0 0.0
    %1702 = vmatpush1.xpose.msra.mxu0 0.0
    %1703 = vmatprep.subr.mxu0 0.0
    %1704 = vmatpush1.xpose.msra.mxu0 0.0
    %1705 = vmatprep.subr.mxu0 0.0
    %1706 = vmatpush1.xpose.msra.mxu0 0.0
    %1707 = vmatprep.subr.mxu0 0.0
    %1708 = vmatpush1.xpose.msra.mxu0 0.0
    %1709 = vmatprep.subr.mxu0 0.0
    %1710 = vmatpush1.xpose.msra.mxu0 0.0
    %1711 = vmatprep.subr.mxu0 0.0
    %1712 = vmatpush1.xpose.msra.mxu0 0.0
    %1713 = vmatprep.subr.mxu0 0.0
    %1714 = vmatpush1.xpose.msra.mxu0 0.0
    %1715 = vmatprep.subr.mxu0 0.0
    %1716 = vmatpush1.xpose.msra.mxu0 0.0
    %1717 = vmatprep.subr.mxu0 0.0
    %1718 = vmatpush1.xpose.msra.mxu0 0.0
    %1719 = vmatprep.subr.mxu0 0.0
    %1720 = vmatpush1.xpose.msra.mxu0 0.0
    %1721 = vmatprep.subr.mxu0 0.0
    %1722 = vmatpush1.xpose.msra.mxu0 0.0
    %1723 = vmatprep.subr.mxu0 0.0
    %1724 = vmatpush1.xpose.msra.mxu0 0.0
    %1725 = vmatprep.subr.mxu0 0.0
    %1726 = vmatpush1.xpose.msra.mxu0 0.0
    %1727 = vmatprep.subr.mxu0 0.0
    %1728 = vmatpush1.xpose.msra.mxu0 0.0
    %1729 = vmatprep.subr.mxu0 0.0
    %1730 = vmatpush1.xpose.msra.mxu0 0.0
    %1731 = vmatprep.subr.mxu0 0.0
    %1732 = vmatpush1.xpose.msra.mxu0 0.0
    %1733 = vmatprep.subr.mxu0 0.0
    %1734 = vmatpush1.xpose.msra.mxu0 0.0
    %1735 = vmatprep.subr.mxu0 0.0
    %1736 = vmatpush1.xpose.msra.mxu0 0.0
    %1737 = vmatprep.subr.mxu0 0.0
    %1738 = vmatpush1.xpose.msra.mxu0 0.0
    %1739 = vmatprep.subr.mxu0 0.0
    %1740 = vmatpush1.xpose.msra.mxu0 0.0
    %1741 = vmatprep.mubr.f32.mxu0 0.0
    %1742 = vmatmul.mubr.f32.gmra.mrb[0].mxu0 %v1672
    %v1743 = vpop.f32.mrb[0].mxu0
    %v1744 = vadd.f32 %v124, %v1743
    %v1745 = vpop.f32.mrb[0].mxu0
    %1746 = vdwg.mxu0
    %v1748 = vsel %vm109, %v1508, 0
    %v1751 = vsel %vm109, %v1588, 0
    %1753 = vmatprep.subr.mxu0 0.0
    %1754 = vmatpush1.xpose.msra.mxu0 %v1751
    %1755 = vmatprep.subr.mxu0 0.0
    %1756 = vmatpush1.xpose.msra.mxu0 0.0
    %1757 = vmatprep.subr.mxu0 0.0
    %1758 = vmatpush1.xpose.msra.mxu0 0.0
    %1759 = vmatprep.subr.mxu0 0.0
    %1760 = vmatpush1.xpose.msra.mxu0 0.0
    %1761 = vmatprep.subr.mxu0 0.0
    %1762 = vmatpush1.xpose.msra.mxu0 0.0
    %1763 = vmatprep.subr.mxu0 0.0
    %1764 = vmatpush1.xpose.msra.mxu0 0.0
    %1765 = vmatprep.subr.mxu0 0.0
    %1766 = vmatpush1.xpose.msra.mxu0 0.0
    %1767 = vmatprep.subr.mxu0 0.0
    %1768 = vmatpush1.xpose.msra.mxu0 0.0
    %1769 = vmatprep.subr.mxu0 0.0
    %1770 = vmatpush1.xpose.msra.mxu0 0.0
    %1771 = vmatprep.subr.mxu0 0.0
    %1772 = vmatpush1.xpose.msra.mxu0 0.0
    %1773 = vmatprep.subr.mxu0 0.0
    %1774 = vmatpush1.xpose.msra.mxu0 0.0
    %1775 = vmatprep.subr.mxu0 0.0
    %1776 = vmatpush1.xpose.msra.mxu0 0.0
    %1777 = vmatprep.subr.mxu0 0.0
    %1778 = vmatpush1.xpose.msra.mxu0 0.0
    %1779 = vmatprep.subr.mxu0 0.0
    %1780 = vmatpush1.xpose.msra.mxu0 0.0
    %1781 = vmatprep.subr.mxu0 0.0
    %1782 = vmatpush1.xpose.msra.mxu0 0.0
    %1783 = vmatprep.subr.mxu0 0.0
    %1784 = vmatpush1.xpose.msra.mxu0 0.0
    %1785 = vmatprep.subr.mxu0 0.0
    %1786 = vmatpush1.xpose.msra.mxu0 0.0
    %1787 = vmatprep.subr.mxu0 0.0
    %1788 = vmatpush1.xpose.msra.mxu0 0.0
    %1789 = vmatprep.subr.mxu0 0.0
    %1790 = vmatpush1.xpose.msra.mxu0 0.0
    %1791 = vmatprep.subr.mxu0 0.0
    %1792 = vmatpush1.xpose.msra.mxu0 0.0
    %1793 = vmatprep.subr.mxu0 0.0
    %1794 = vmatpush1.xpose.msra.mxu0 0.0
    %1795 = vmatprep.subr.mxu0 0.0
    %1796 = vmatpush1.xpose.msra.mxu0 0.0
    %1797 = vmatprep.subr.mxu0 0.0
    %1798 = vmatpush1.xpose.msra.mxu0 0.0
    %1799 = vmatprep.subr.mxu0 0.0
    %1800 = vmatpush1.xpose.msra.mxu0 0.0
    %1801 = vmatprep.subr.mxu0 0.0
    %1802 = vmatpush1.xpose.msra.mxu0 0.0
    %1803 = vmatprep.subr.mxu0 0.0
    %1804 = vmatpush1.xpose.msra.mxu0 0.0
    %1805 = vmatprep.subr.mxu0 0.0
    %1806 = vmatpush1.xpose.msra.mxu0 0.0
    %1807 = vmatprep.subr.mxu0 0.0
    %1808 = vmatpush1.xpose.msra.mxu0 0.0
    %1809 = vmatprep.subr.mxu0 0.0
    %1810 = vmatpush1.xpose.msra.mxu0 0.0
    %1811 = vmatprep.subr.mxu0 0.0
    %1812 = vmatpush1.xpose.msra.mxu0 0.0
    %1813 = vmatprep.subr.mxu0 0.0
    %1814 = vmatpush1.xpose.msra.mxu0 0.0
    %1815 = vmatprep.subr.mxu0 0.0
    %1816 = vmatpush1.xpose.msra.mxu0 0.0
    %1817 = vmatprep.mubr.f32.mxu0 0.0
    %1818 = vmatmul.mubr.f32.gmra.mrb[0].mxu0 %v1748
    %v1819 = vpop.f32.mrb[0].mxu0
    %v1820 = vadd.f32 %v125, %v1819
    %v1821 = vpop.f32.mrb[0].mxu0
    %1822 = vdwg.mxu0
    %v1823 = vsel %vm109, %v1744, -inf
    %1824 = vmax.xlane.f32.xlu0 %v1823
    %v1825 = vpop.xlane.xlu0 %1824
    %v1826 = vsel %vm109, %v1820, -inf
    %1827 = vmax.xlane.f32.xlu0 %v1826
    %v1828 = vpop.xlane.xlu0 %1827
    %v1829 = vsub.f32 %v1744, %v1825
    %v1830 = vsub.f32 %v1820, %v1828
    %v1831 = vmul.f32 %v1829, 1.442695
    %v1832 = vpow.pop %v1831
    %v1833 = vmul.f32 %v1830, 1.442695
    %v1834 = vpow.pop %v1833
    %v1835 = vsel %vm109, %v1832, 0.0
    %1836 = vadd.xlane.f32.xlu0 %v1835
    %v1837 = vpop.xlane.xlu0 %1836
    %v1838 = vsel %vm109, %v1834, 0.0
    %1839 = vadd.xlane.f32.xlu0 %v1838
    %v1840 = vpop.xlane.xlu0 %1839
    %v1841 = vrcp.pop %v1837
    %v1842 = vrcp.pop %v1840
    %v1843 = vmul.f32 %v1837, %v1841
    %v1844 = vmul.f32 %v1840, %v1842
    %v1845 = vsub.f32 2.0, %v1843
    %v1846 = vsub.f32 2.0, %v1844
    %v1847 = vmul.f32 %v1841, %v1845
    %v1848 = vmul.f32 %v1842, %v1846
    %v1849 = vmul.f32 %v1832, %v1847
    %v1850 = vmul.f32 %v1834, %v1848
    %v1852 = vsel %vm109, %v1849, 0
    %1854 = vmatprep.subr.mxu0 0.0
    %1855 = vmatpush1.msra.mxu0 %v1663
    %1856 = vmatprep.subr.mxu0 0.0
    %1857 = vmatpush1.msra.mxu0 0.0
    %1858 = vmatprep.subr.mxu0 0.0
    %1859 = vmatpush1.msra.mxu0 0.0
    %1860 = vmatprep.subr.mxu0 0.0
    %1861 = vmatpush1.msra.mxu0 0.0
    %1862 = vmatprep.subr.mxu0 0.0
    %1863 = vmatpush1.msra.mxu0 0.0
    %1864 = vmatprep.subr.mxu0 0.0
    %1865 = vmatpush1.msra.mxu0 0.0
    %1866 = vmatprep.subr.mxu0 0.0
    %1867 = vmatpush1.msra.mxu0 0.0
    %1868 = vmatprep.subr.mxu0 0.0
    %1869 = vmatpush1.msra.mxu0 0.0
    %1870 = vmatprep.subr.mxu0 0.0
    %1871 = vmatpush1.msra.mxu0 0.0
    %1872 = vmatprep.subr.mxu0 0.0
    %1873 = vmatpush1.msra.mxu0 0.0
    %1874 = vmatprep.subr.mxu0 0.0
    %1875 = vmatpush1.msra.mxu0 0.0
    %1876 = vmatprep.subr.mxu0 0.0
    %1877 = vmatpush1.msra.mxu0 0.0
    %1878 = vmatprep.subr.mxu0 0.0
    %1879 = vmatpush1.msra.mxu0 0.0
    %1880 = vmatprep.subr.mxu0 0.0
    %1881 = vmatpush1.msra.mxu0 0.0
    %1882 = vmatprep.subr.mxu0 0.0
    %1883 = vmatpush1.msra.mxu0 0.0
    %1884 = vmatprep.subr.mxu0 0.0
    %1885 = vmatpush1.msra.mxu0 0.0
    %1886 = vmatprep.subr.mxu0 0.0
    %1887 = vmatpush1.msra.mxu0 0.0
    %1888 = vmatprep.subr.mxu0 0.0
    %1889 = vmatpush1.msra.mxu0 0.0
    %1890 = vmatprep.subr.mxu0 0.0
    %1891 = vmatpush1.msra.mxu0 0.0
    %1892 = vmatprep.subr.mxu0 0.0
    %1893 = vmatpush1.msra.mxu0 0.0
    %1894 = vmatprep.subr.mxu0 0.0
    %1895 = vmatpush1.msra.mxu0 0.0
    %1896 = vmatprep.subr.mxu0 0.0
    %1897 = vmatpush1.msra.mxu0 0.0
    %1898 = vmatprep.subr.mxu0 0.0
    %1899 = vmatpush1.msra.mxu0 0.0
    %1900 = vmatprep.subr.mxu0 0.0
    %1901 = vmatpush1.msra.mxu0 0.0
    %1902 = vmatprep.subr.mxu0 0.0
    %1903 = vmatpush1.msra.mxu0 0.0
    %1904 = vmatprep.subr.mxu0 0.0
    %1905 = vmatpush1.msra.mxu0 0.0
    %1906 = vmatprep.subr.mxu0 0.0
    %1907 = vmatpush1.msra.mxu0 0.0
    %1908 = vmatprep.subr.mxu0 0.0
    %1909 = vmatpush1.msra.mxu0 0.0
    %1910 = vmatprep.subr.mxu0 0.0
    %1911 = vmatpush1.msra.mxu0 0.0
    %1912 = vmatprep.subr.mxu0 0.0
    %1913 = vmatpush1.msra.mxu0 0.0
    %1914 = vmatprep.subr.mxu0 0.0
    %1915 = vmatpush1.msra.mxu0 0.0
    %1916 = vmatprep.subr.mxu0 0.0
    %1917 = vmatpush1.msra.mxu0 0.0
    %1918 = vmatprep.mubr.f32.mxu0 0.0
    %1919 = vmatmul.mubr.f32.gmra.mrb[0].mxu0 %v1852
    %v1920 = vpop.f32.mrb[0].mxu0
    %v1921 = vadd.f32 0.0, %v1920
    %v1922 = vpop.f32.mrb[0].mxu0
    %1923 = vdwg.mxu0
    %v1925 = vsel %vm109, %v1850, 0
    %1927 = vmatprep.subr.mxu0 0.0
    %1928 = vmatpush1.msra.mxu0 %v1668
    %1929 = vmatprep.subr.mxu0 0.0
    %1930 = vmatpush1.msra.mxu0 0.0
    %1931 = vmatprep.subr.mxu0 0.0
    %1932 = vmatpush1.msra.mxu0 0.0
    %1933 = vmatprep.subr.mxu0 0.0
    %1934 = vmatpush1.msra.mxu0 0.0
    %1935 = vmatprep.subr.mxu0 0.0
    %1936 = vmatpush1.msra.mxu0 0.0
    %1937 = vmatprep.subr.mxu0 0.0
    %1938 = vmatpush1.msra.mxu0 0.0
    %1939 = vmatprep.subr.mxu0 0.0
    %1940 = vmatpush1.msra.mxu0 0.0
    %1941 = vmatprep.subr.mxu0 0.0
    %1942 = vmatpush1.msra.mxu0 0.0
    %1943 = vmatprep.subr.mxu0 0.0
    %1944 = vmatpush1.msra.mxu0 0.0
    %1945 = vmatprep.subr.mxu0 0.0
    %1946 = vmatpush1.msra.mxu0 0.0
    %1947 = vmatprep.subr.mxu0 0.0
    %1948 = vmatpush1.msra.mxu0 0.0
    %1949 = vmatprep.subr.mxu0 0.0
    %1950 = vmatpush1.msra.mxu0 0.0
    %1951 = vmatprep.subr.mxu0 0.0
    %1952 = vmatpush1.msra.mxu0 0.0
    %1953 = vmatprep.subr.mxu0 0.0
    %1954 = vmatpush1.msra.mxu0 0.0
    %1955 = vmatprep.subr.mxu0 0.0
    %1956 = vmatpush1.msra.mxu0 0.0
    %1957 = vmatprep.subr.mxu0 0.0
    %1958 = vmatpush1.msra.mxu0 0.0
    %1959 = vmatprep.subr.mxu0 0.0
    %1960 = vmatpush1.msra.mxu0 0.0
    %1961 = vmatprep.subr.mxu0 0.0
    %1962 = vmatpush1.msra.mxu0 0.0
    %1963 = vmatprep.subr.mxu0 0.0
    %1964 = vmatpush1.msra.mxu0 0.0
    %1965 = vmatprep.subr.mxu0 0.0
    %1966 = vmatpush1.msra.mxu0 0.0
    %1967 = vmatprep.subr.mxu0 0.0
    %1968 = vmatpush1.msra.mxu0 0.0
    %1969 = vmatprep.subr.mxu0 0.0
    %1970 = vmatpush1.msra.mxu0 0.0
    %1971 = vmatprep.subr.mxu0 0.0
    %1972 = vmatpush1.msra.mxu0 0.0
    %1973 = vmatprep.subr.mxu0 0.0
    %1974 = vmatpush1.msra.mxu0 0.0
    %1975 = vmatprep.subr.mxu0 0.0
    %1976 = vmatpush1.msra.mxu0 0.0
    %1977 = vmatprep.subr.mxu0 0.0
    %1978 = vmatpush1.msra.mxu0 0.0
    %1979 = vmatprep.subr.mxu0 0.0
    %1980 = vmatpush1.msra.mxu0 0.0
    %1981 = vmatprep.subr.mxu0 0.0
    %1982 = vmatpush1.msra.mxu0 0.0
    %1983 = vmatprep.subr.mxu0 0.0
    %1984 = vmatpush1.msra.mxu0 0.0
    %1985 = vmatprep.subr.mxu0 0.0
    %1986 = vmatpush1.msra.mxu0 0.0
    %1987 = vmatprep.subr.mxu0 0.0
    %1988 = vmatpush1.msra.mxu0 0.0
    %1989 = vmatprep.subr.mxu0 0.0
    %1990 = vmatpush1.msra.mxu0 0.0
    %1991 = vmatprep.mubr.f32.mxu0 0.0
    %1992 = vmatmul.mubr.f32.gmra.mrb[0].mxu0 %v1925
    %v1993 = vpop.f32.mrb[0].mxu0
    %v1994 = vadd.f32 0.0, %v1993
    %v1995 = vpop.f32.mrb[0].mxu0
    %1996 = vdwg.mxu0
    %v1997 = vld [vmem:[%s3 + $0x10] sm:$0xff]
    %v1999 = vsel %vm109, %v1921, 0
    %v2002 = vsel %vm109, %v1994, 0
    %2004 = vmatprep.subr.mxu0 0.0
    %2005 = vmatpush1.msra.mxu0 %v1997
    %2006 = vmatprep.subr.mxu0 0.0
    %2007 = vmatpush1.msra.mxu0 0.0
    %2008 = vmatprep.subr.mxu0 0.0
    %2009 = vmatpush1.msra.mxu0 0.0
    %2010 = vmatprep.subr.mxu0 0.0
    %2011 = vmatpush1.msra.mxu0 0.0
    %2012 = vmatprep.subr.mxu0 0.0
    %2013 = vmatpush1.msra.mxu0 0.0
    %2014 = vmatprep.subr.mxu0 0.0
    %2015 = vmatpush1.msra.mxu0 0.0
    %2016 = vmatprep.subr.mxu0 0.0
    %2017 = vmatpush1.msra.mxu0 0.0
    %2018 = vmatprep.subr.mxu0 0.0
    %2019 = vmatpush1.msra.mxu0 0.0
    %2020 = vmatprep.subr.mxu0 0.0
    %2021 = vmatpush1.msra.mxu0 0.0
    %2022 = vmatprep.subr.mxu0 0.0
    %2023 = vmatpush1.msra.mxu0 0.0
    %2024 = vmatprep.subr.mxu0 0.0
    %2025 = vmatpush1.msra.mxu0 0.0
    %2026 = vmatprep.subr.mxu0 0.0
    %2027 = vmatpush1.msra.mxu0 0.0
    %2028 = vmatprep.subr.mxu0 0.0
    %2029 = vmatpush1.msra.mxu0 0.0
    %2030 = vmatprep.subr.mxu0 0.0
    %2031 = vmatpush1.msra.mxu0 0.0
    %2032 = vmatprep.subr.mxu0 0.0
    %2033 = vmatpush1.msra.mxu0 0.0
    %2034 = vmatprep.subr.mxu0 0.0
    %2035 = vmatpush1.msra.mxu0 0.0
    %2036 = vmatprep.subr.mxu0 0.0
    %2037 = vmatpush1.msra.mxu0 0.0
    %2038 = vmatprep.subr.mxu0 0.0
    %2039 = vmatpush1.msra.mxu0 0.0
    %2040 = vmatprep.subr.mxu0 0.0
    %2041 = vmatpush1.msra.mxu0 0.0
    %2042 = vmatprep.subr.mxu0 0.0
    %2043 = vmatpush1.msra.mxu0 0.0
    %2044 = vmatprep.subr.mxu0 0.0
    %2045 = vmatpush1.msra.mxu0 0.0
    %2046 = vmatprep.subr.mxu0 0.0
    %2047 = vmatpush1.msra.mxu0 0.0
    %2048 = vmatprep.subr.mxu0 0.0
    %2049 = vmatpush1.msra.mxu0 0.0
    %2050 = vmatprep.subr.mxu0 0.0
    %2051 = vmatpush1.msra.mxu0 0.0
    %2052 = vmatprep.subr.mxu0 0.0
    %2053 = vmatpush1.msra.mxu0 0.0
    %2054 = vmatprep.subr.mxu0 0.0
    %2055 = vmatpush1.msra.mxu0 0.0
    %2056 = vmatprep.subr.mxu0 0.0
    %2057 = vmatpush1.msra.mxu0 0.0
    %2058 = vmatprep.subr.mxu0 0.0
    %2059 = vmatpush1.msra.mxu0 0.0
    %2060 = vmatprep.subr.mxu0 0.0
    %2061 = vmatpush1.msra.mxu0 0.0
    %2062 = vmatprep.subr.mxu0 0.0
    %2063 = vmatpush1.msra.mxu0 0.0
    %2064 = vmatprep.subr.mxu0 0.0
    %2065 = vmatpush1.msra.mxu0 0.0
    %2066 = vmatprep.subr.mxu0 0.0
    %2067 = vmatpush1.msra.mxu0 0.0
    %2068 = vmatprep.mubr.f32.mxu0 0.0
    %2069 = vmatmul.mubr.f32.gmra.mrb[0].mxu0 %v1999
    %v2070 = vpop.f32.mrb[0].mxu0
    %v2071 = vadd.f32 0.0, %v2070
    %v2072 = vpop.f32.mrb[0].mxu0
    %2073 = vmatprep.mubr.f32.mxu0 0.0
    %2074 = vmatmul.mubr.f32.gmra.mrb[0].mxu0 %v2002
    %v2075 = vpop.f32.mrb[0].mxu0
    %v2076 = vadd.f32 0.0, %v2075
    %v2077 = vpop.f32.mrb[0].mxu0
    %2078 = vdwg.mxu0
    %v2079 = vadd.f32 %v1429, %v2071
    %v2080 = vadd.f32 %v1430, %v2076
    %s2081 = scalar_lea.vmem %s2, 96
    %v2082 = vld [vmem:[%s2081] sm:$0xff]
    %v2083 = vld [vmem:[%s2081 + $0x8] sm:$0xff]
    %v2084 = vld [vmem:[%s2081 + $0x10] sm:$0xff]
    %v2085 = vld [vmem:[%s2081 + $0x18] sm:$0xff]
    %2086 = vmatprep.subr.mxu0 0.0
    %2087 = vmatpush1.msra.mxu0 %v2082
    %2088 = vmatprep.subr.mxu0 0.0
    %2089 = vmatpush1.msra.mxu0 %v2083
    %2090 = vmatprep.subr.mxu0 0.0
    %2091 = vmatpush1.msra.mxu0 %v2084
    %2092 = vmatprep.subr.mxu0 0.0
    %2093 = vmatpush1.msra.mxu0 %v2085
    %2094 = vmatprep.subr.mxu0 0.0
    %2095 = vmatpush1.msra.mxu0 0.0
    %2096 = vmatprep.subr.mxu0 0.0
    %2097 = vmatpush1.msra.mxu0 0.0
    %2098 = vmatprep.subr.mxu0 0.0
    %2099 = vmatpush1.msra.mxu0 0.0
    %2100 = vmatprep.subr.mxu0 0.0
    %2101 = vmatpush1.msra.mxu0 0.0
    %2102 = vmatprep.subr.mxu0 0.0
    %2103 = vmatpush1.msra.mxu0 0.0
    %2104 = vmatprep.subr.mxu0 0.0
    %2105 = vmatpush1.msra.mxu0 0.0
    %2106 = vmatprep.subr.mxu0 0.0
    %2107 = vmatpush1.msra.mxu0 0.0
    %2108 = vmatprep.subr.mxu0 0.0
    %2109 = vmatpush1.msra.mxu0 0.0
    %2110 = vmatprep.subr.mxu0 0.0
    %2111 = vmatpush1.msra.mxu0 0.0
    %2112 = vmatprep.subr.mxu0 0.0
    %2113 = vmatpush1.msra.mxu0 0.0
    %2114 = vmatprep.subr.mxu0 0.0
    %2115 = vmatpush1.msra.mxu0 0.0
    %2116 = vmatprep.subr.mxu0 0.0
    %2117 = vmatpush1.msra.mxu0 0.0
    %2118 = vmatprep.subr.mxu0 0.0
    %2119 = vmatpush1.msra.mxu0 0.0
    %2120 = vmatprep.subr.mxu0 0.0
    %2121 = vmatpush1.msra.mxu0 0.0
    %2122 = vmatprep.subr.mxu0 0.0
    %2123 = vmatpush1.msra.mxu0 0.0
    %2124 = vmatprep.subr.mxu0 0.0
    %2125 = vmatpush1.msra.mxu0 0.0
    %2126 = vmatprep.subr.mxu0 0.0
    %2127 = vmatpush1.msra.mxu0 0.0
    %2128 = vmatprep.subr.mxu0 0.0
    %2129 = vmatpush1.msra.mxu0 0.0
    %2130 = vmatprep.subr.mxu0 0.0
    %2131 = vmatpush1.msra.mxu0 0.0
    %2132 = vmatprep.subr.mxu0 0.0
    %2133 = vmatpush1.msra.mxu0 0.0
    %2134 = vmatprep.subr.mxu0 0.0
    %2135 = vmatpush1.msra.mxu0 0.0
    %2136 = vmatprep.subr.mxu0 0.0
    %2137 = vmatpush1.msra.mxu0 0.0
    %2138 = vmatprep.subr.mxu0 0.0
    %2139 = vmatpush1.msra.mxu0 0.0
    %2140 = vmatprep.subr.mxu0 0.0
    %2141 = vmatpush1.msra.mxu0 0.0
    %2142 = vmatprep.subr.mxu0 0.0
    %2143 = vmatpush1.msra.mxu0 0.0
    %2144 = vmatprep.subr.mxu0 0.0
    %2145 = vmatpush1.msra.mxu0 0.0
    %2146 = vmatprep.subr.mxu0 0.0
    %2147 = vmatpush1.msra.mxu0 0.0
    %2148 = vmatprep.subr.mxu0 0.0
    %2149 = vmatpush1.msra.mxu0 0.0
    %2150 = vmatprep.mubr.f32.mxu0 0.0
    %2151 = vmatmul.mubr.f32.gmra.mrb[0].mxu0 %v131
    %v2152 = vpop.f32.mrb[0].mxu0
    %v2153 = vadd.f32 0.0, %v2152
    %v2154 = vpop.f32.mrb[0].mxu0
    %2155 = vmatprep.mubr.f32.mxu0 0.0
    %2156 = vmatmul.mubr.f32.gmra.mrb[0].mxu0 %v134
    %v2157 = vpop.f32.mrb[0].mxu0
    %v2158 = vadd.f32 0.0, %v2157
    %v2159 = vpop.f32.mrb[0].mxu0
    %2160 = vdwg.mxu0
    %s2161 = scalar_lea.vmem %s2, 224
    %v2162 = vld [vmem:[%s2161] sm:$0xff]
    %v2163 = vld [vmem:[%s2161 + $0x8] sm:$0xff]
    %v2164 = vld [vmem:[%s2161 + $0x10] sm:$0xff]
    %v2165 = vld [vmem:[%s2161 + $0x18] sm:$0xff]
    %2166 = vmatprep.subr.mxu0 0.0
    %2167 = vmatpush1.msra.mxu0 %v2162
    %2168 = vmatprep.subr.mxu0 0.0
    %2169 = vmatpush1.msra.mxu0 %v2163
    %2170 = vmatprep.subr.mxu0 0.0
    %2171 = vmatpush1.msra.mxu0 %v2164
    %2172 = vmatprep.subr.mxu0 0.0
    %2173 = vmatpush1.msra.mxu0 %v2165
    %2174 = vmatprep.subr.mxu0 0.0
    %2175 = vmatpush1.msra.mxu0 0.0
    %2176 = vmatprep.subr.mxu0 0.0
    %2177 = vmatpush1.msra.mxu0 0.0
    %2178 = vmatprep.subr.mxu0 0.0
    %2179 = vmatpush1.msra.mxu0 0.0
    %2180 = vmatprep.subr.mxu0 0.0
    %2181 = vmatpush1.msra.mxu0 0.0
    %2182 = vmatprep.subr.mxu0 0.0
    %2183 = vmatpush1.msra.mxu0 0.0
    %2184 = vmatprep.subr.mxu0 0.0
    %2185 = vmatpush1.msra.mxu0 0.0
    %2186 = vmatprep.subr.mxu0 0.0
    %2187 = vmatpush1.msra.mxu0 0.0
    %2188 = vmatprep.subr.mxu0 0.0
    %2189 = vmatpush1.msra.mxu0 0.0
    %2190 = vmatprep.subr.mxu0 0.0
    %2191 = vmatpush1.msra.mxu0 0.0
    %2192 = vmatprep.subr.mxu0 0.0
    %2193 = vmatpush1.msra.mxu0 0.0
    %2194 = vmatprep.subr.mxu0 0.0
    %2195 = vmatpush1.msra.mxu0 0.0
    %2196 = vmatprep.subr.mxu0 0.0
    %2197 = vmatpush1.msra.mxu0 0.0
    %2198 = vmatprep.subr.mxu0 0.0
    %2199 = vmatpush1.msra.mxu0 0.0
    %2200 = vmatprep.subr.mxu0 0.0
    %2201 = vmatpush1.msra.mxu0 0.0
    %2202 = vmatprep.subr.mxu0 0.0
    %2203 = vmatpush1.msra.mxu0 0.0
    %2204 = vmatprep.subr.mxu0 0.0
    %2205 = vmatpush1.msra.mxu0 0.0
    %2206 = vmatprep.subr.mxu0 0.0
    %2207 = vmatpush1.msra.mxu0 0.0
    %2208 = vmatprep.subr.mxu0 0.0
    %2209 = vmatpush1.msra.mxu0 0.0
    %2210 = vmatprep.subr.mxu0 0.0
    %2211 = vmatpush1.msra.mxu0 0.0
    %2212 = vmatprep.subr.mxu0 0.0
    %2213 = vmatpush1.msra.mxu0 0.0
    %2214 = vmatprep.subr.mxu0 0.0
    %2215 = vmatpush1.msra.mxu0 0.0
    %2216 = vmatprep.subr.mxu0 0.0
    %2217 = vmatpush1.msra.mxu0 0.0
    %2218 = vmatprep.subr.mxu0 0.0
    %2219 = vmatpush1.msra.mxu0 0.0
    %2220 = vmatprep.subr.mxu0 0.0
    %2221 = vmatpush1.msra.mxu0 0.0
    %2222 = vmatprep.subr.mxu0 0.0
    %2223 = vmatpush1.msra.mxu0 0.0
    %2224 = vmatprep.subr.mxu0 0.0
    %2225 = vmatpush1.msra.mxu0 0.0
    %2226 = vmatprep.subr.mxu0 0.0
    %2227 = vmatpush1.msra.mxu0 0.0
    %2228 = vmatprep.subr.mxu0 0.0
    %2229 = vmatpush1.msra.mxu0 0.0
    %2230 = vmatprep.mubr.f32.mxu0 0.0
    %2231 = vmatmul.mubr.f32.gmra.mrb[0].mxu0 %v131
    %v2232 = vpop.f32.mrb[0].mxu0
    %v2233 = vadd.f32 0.0, %v2232
    %v2234 = vpop.f32.mrb[0].mxu0
    %2235 = vmatprep.mubr.f32.mxu0 0.0
    %2236 = vmatmul.mubr.f32.gmra.mrb[0].mxu0 %v134
    %v2237 = vpop.f32.mrb[0].mxu0
    %v2238 = vadd.f32 0.0, %v2237
    %v2239 = vpop.f32.mrb[0].mxu0
    %2240 = vdwg.mxu0
    %s2241 = scalar_lea.vmem %s2, 352
    %v2242 = vld [vmem:[%s2241] sm:$0xff]
    %v2243 = vld [vmem:[%s2241 + $0x8] sm:$0xff]
    %v2244 = vld [vmem:[%s2241 + $0x10] sm:$0xff]
    %v2245 = vld [vmem:[%s2241 + $0x18] sm:$0xff]
    %2246 = vmatprep.subr.mxu0 0.0
    %2247 = vmatpush1.msra.mxu0 %v2242
    %2248 = vmatprep.subr.mxu0 0.0
    %2249 = vmatpush1.msra.mxu0 %v2243
    %2250 = vmatprep.subr.mxu0 0.0
    %2251 = vmatpush1.msra.mxu0 %v2244
    %2252 = vmatprep.subr.mxu0 0.0
    %2253 = vmatpush1.msra.mxu0 %v2245
    %2254 = vmatprep.subr.mxu0 0.0
    %2255 = vmatpush1.msra.mxu0 0.0
    %2256 = vmatprep.subr.mxu0 0.0
    %2257 = vmatpush1.msra.mxu0 0.0
    %2258 = vmatprep.subr.mxu0 0.0
    %2259 = vmatpush1.msra.mxu0 0.0
    %2260 = vmatprep.subr.mxu0 0.0
    %2261 = vmatpush1.msra.mxu0 0.0
    %2262 = vmatprep.subr.mxu0 0.0
    %2263 = vmatpush1.msra.mxu0 0.0
    %2264 = vmatprep.subr.mxu0 0.0
    %2265 = vmatpush1.msra.mxu0 0.0
    %2266 = vmatprep.subr.mxu0 0.0
    %2267 = vmatpush1.msra.mxu0 0.0
    %2268 = vmatprep.subr.mxu0 0.0
    %2269 = vmatpush1.msra.mxu0 0.0
    %2270 = vmatprep.subr.mxu0 0.0
    %2271 = vmatpush1.msra.mxu0 0.0
    %2272 = vmatprep.subr.mxu0 0.0
    %2273 = vmatpush1.msra.mxu0 0.0
    %2274 = vmatprep.subr.mxu0 0.0
    %2275 = vmatpush1.msra.mxu0 0.0
    %2276 = vmatprep.subr.mxu0 0.0
    %2277 = vmatpush1.msra.mxu0 0.0
    %2278 = vmatprep.subr.mxu0 0.0
    %2279 = vmatpush1.msra.mxu0 0.0
    %2280 = vmatprep.subr.mxu0 0.0
    %2281 = vmatpush1.msra.mxu0 0.0
    %2282 = vmatprep.subr.mxu0 0.0
    %2283 = vmatpush1.msra.mxu0 0.0
    %2284 = vmatprep.subr.mxu0 0.0
    %2285 = vmatpush1.msra.mxu0 0.0
    %2286 = vmatprep.subr.mxu0 0.0
    %2287 = vmatpush1.msra.mxu0 0.0
    %2288 = vmatprep.subr.mxu0 0.0
    %2289 = vmatpush1.msra.mxu0 0.0
    %2290 = vmatprep.subr.mxu0 0.0
    %2291 = vmatpush1.msra.mxu0 0.0
    %2292 = vmatprep.subr.mxu0 0.0
    %2293 = vmatpush1.msra.mxu0 0.0
    %2294 = vmatprep.subr.mxu0 0.0
    %2295 = vmatpush1.msra.mxu0 0.0
    %2296 = vmatprep.subr.mxu0 0.0
    %2297 = vmatpush1.msra.mxu0 0.0
    %2298 = vmatprep.subr.mxu0 0.0
    %2299 = vmatpush1.msra.mxu0 0.0
    %2300 = vmatprep.subr.mxu0 0.0
    %2301 = vmatpush1.msra.mxu0 0.0
    %2302 = vmatprep.subr.mxu0 0.0
    %2303 = vmatpush1.msra.mxu0 0.0
    %2304 = vmatprep.subr.mxu0 0.0
    %2305 = vmatpush1.msra.mxu0 0.0
    %2306 = vmatprep.subr.mxu0 0.0
    %2307 = vmatpush1.msra.mxu0 0.0
    %2308 = vmatprep.subr.mxu0 0.0
    %2309 = vmatpush1.msra.mxu0 0.0
    %2310 = vmatprep.mubr.f32.mxu0 0.0
    %2311 = vmatmul.mubr.f32.gmra.mrb[0].mxu0 %v131
    %v2312 = vpop.f32.mrb[0].mxu0
    %v2313 = vadd.f32 0.0, %v2312
    %v2314 = vpop.f32.mrb[0].mxu0
    %2315 = vmatprep.mubr.f32.mxu0 0.0
    %2316 = vmatmul.mubr.f32.gmra.mrb[0].mxu0 %v134
    %v2317 = vpop.f32.mrb[0].mxu0
    %v2318 = vadd.f32 0.0, %v2317
    %v2319 = vpop.f32.mrb[0].mxu0
    %2320 = vdwg.mxu0
    %v2322 = vsel %vm109, %v2153, 0
    %v2325 = vsel %vm109, %v2233, 0
    %2327 = vmatprep.subr.mxu0 0.0
    %2328 = vmatpush1.xpose.msra.mxu0 %v2325
    %2329 = vmatprep.subr.mxu0 0.0
    %2330 = vmatpush1.xpose.msra.mxu0 0.0
    %2331 = vmatprep.subr.mxu0 0.0
    %2332 = vmatpush1.xpose.msra.mxu0 0.0
    %2333 = vmatprep.subr.mxu0 0.0
    %2334 = vmatpush1.xpose.msra.mxu0 0.0
    %2335 = vmatprep.subr.mxu0 0.0
    %2336 = vmatpush1.xpose.msra.mxu0 0.0
    %2337 = vmatprep.subr.mxu0 0.0
    %2338 = vmatpush1.xpose.msra.mxu0 0.0
    %2339 = vmatprep.subr.mxu0 0.0
    %2340 = vmatpush1.xpose.msra.mxu0 0.0
    %2341 = vmatprep.subr.mxu0 0.0
    %2342 = vmatpush1.xpose.msra.mxu0 0.0
    %2343 = vmatprep.subr.mxu0 0.0
    %2344 = vmatpush1.xpose.msra.mxu0 0.0
    %2345 = vmatprep.subr.mxu0 0.0
    %2346 = vmatpush1.xpose.msra.mxu0 0.0
    %2347 = vmatprep.subr.mxu0 0.0
    %2348 = vmatpush1.xpose.msra.mxu0 0.0
    %2349 = vmatprep.subr.mxu0 0.0
    %2350 = vmatpush1.xpose.msra.mxu0 0.0
    %2351 = vmatprep.subr.mxu0 0.0
    %2352 = vmatpush1.xpose.msra.mxu0 0.0
    %2353 = vmatprep.subr.mxu0 0.0
    %2354 = vmatpush1.xpose.msra.mxu0 0.0
    %2355 = vmatprep.subr.mxu0 0.0
    %2356 = vmatpush1.xpose.msra.mxu0 0.0
    %2357 = vmatprep.subr.mxu0 0.0
    %2358 = vmatpush1.xpose.msra.mxu0 0.0
    %2359 = vmatprep.subr.mxu0 0.0
    %2360 = vmatpush1.xpose.msra.mxu0 0.0
    %2361 = vmatprep.subr.mxu0 0.0
    %2362 = vmatpush1.xpose.msra.mxu0 0.0
    %2363 = vmatprep.subr.mxu0 0.0
    %2364 = vmatpush1.xpose.msra.mxu0 0.0
    %2365 = vmatprep.subr.mxu0 0.0
    %2366 = vmatpush1.xpose.msra.mxu0 0.0
    %2367 = vmatprep.subr.mxu0 0.0
    %2368 = vmatpush1.xpose.msra.mxu0 0.0
    %2369 = vmatprep.subr.mxu0 0.0
    %2370 = vmatpush1.xpose.msra.mxu0 0.0
    %2371 = vmatprep.subr.mxu0 0.0
    %2372 = vmatpush1.xpose.msra.mxu0 0.0
    %2373 = vmatprep.subr.mxu0 0.0
    %2374 = vmatpush1.xpose.msra.mxu0 0.0
    %2375 = vmatprep.subr.mxu0 0.0
    %2376 = vmatpush1.xpose.msra.mxu0 0.0
    %2377 = vmatprep.subr.mxu0 0.0
    %2378 = vmatpush1.xpose.msra.mxu0 0.0
    %2379 = vmatprep.subr.mxu0 0.0
    %2380 = vmatpush1.xpose.msra.mxu0 0.0
    %2381 = vmatprep.subr.mxu0 0.0
    %2382 = vmatpush1.xpose.msra.mxu0 0.0
    %2383 = vmatprep.subr.mxu0 0.0
    %2384 = vmatpush1.xpose.msra.mxu0 0.0
    %2385 = vmatprep.subr.mxu0 0.0
    %2386 = vmatpush1.xpose.msra.mxu0 0.0
    %2387 = vmatprep.subr.mxu0 0.0
    %2388 = vmatpush1.xpose.msra.mxu0 0.0
    %2389 = vmatprep.subr.mxu0 0.0
    %2390 = vmatpush1.xpose.msra.mxu0 0.0
    %2391 = vmatprep.mubr.f32.mxu0 0.0
    %2392 = vmatmul.mubr.f32.gmra.mrb[0].mxu0 %v2322
    %v2393 = vpop.f32.mrb[0].mxu0
    %v2394 = vadd.f32 %v124, %v2393
    %v2395 = vpop.f32.mrb[0].mxu0
    %2396 = vdwg.mxu0
    %v2398 = vsel %vm109, %v2158, 0
    %v2401 = vsel %vm109, %v2238, 0
    %2403 = vmatprep.subr.mxu0 0.0
    %2404 = vmatpush1.xpose.msra.mxu0 %v2401
    %2405 = vmatprep.subr.mxu0 0.0
    %2406 = vmatpush1.xpose.msra.mxu0 0.0
    %2407 = vmatprep.subr.mxu0 0.0
    %2408 = vmatpush1.xpose.msra.mxu0 0.0
    %2409 = vmatprep.subr.mxu0 0.0
    %2410 = vmatpush1.xpose.msra.mxu0 0.0
    %2411 = vmatprep.subr.mxu0 0.0
    %2412 = vmatpush1.xpose.msra.mxu0 0.0
    %2413 = vmatprep.subr.mxu0 0.0
    %2414 = vmatpush1.xpose.msra.mxu0 0.0
    %2415 = vmatprep.subr.mxu0 0.0
    %2416 = vmatpush1.xpose.msra.mxu0 0.0
    %2417 = vmatprep.subr.mxu0 0.0
    %2418 = vmatpush1.xpose.msra.mxu0 0.0
    %2419 = vmatprep.subr.mxu0 0.0
    %2420 = vmatpush1.xpose.msra.mxu0 0.0
    %2421 = vmatprep.subr.mxu0 0.0
    %2422 = vmatpush1.xpose.msra.mxu0 0.0
    %2423 = vmatprep.subr.mxu0 0.0
    %2424 = vmatpush1.xpose.msra.mxu0 0.0
    %2425 = vmatprep.subr.mxu0 0.0
    %2426 = vmatpush1.xpose.msra.mxu0 0.0
    %2427 = vmatprep.subr.mxu0 0.0
    %2428 = vmatpush1.xpose.msra.mxu0 0.0
    %2429 = vmatprep.subr.mxu0 0.0
    %2430 = vmatpush1.xpose.msra.mxu0 0.0
    %2431 = vmatprep.subr.mxu0 0.0
    %2432 = vmatpush1.xpose.msra.mxu0 0.0
    %2433 = vmatprep.subr.mxu0 0.0
    %2434 = vmatpush1.xpose.msra.mxu0 0.0
    %2435 = vmatprep.subr.mxu0 0.0
    %2436 = vmatpush1.xpose.msra.mxu0 0.0
    %2437 = vmatprep.subr.mxu0 0.0
    %2438 = vmatpush1.xpose.msra.mxu0 0.0
    %2439 = vmatprep.subr.mxu0 0.0
    %2440 = vmatpush1.xpose.msra.mxu0 0.0
    %2441 = vmatprep.subr.mxu0 0.0
    %2442 = vmatpush1.xpose.msra.mxu0 0.0
    %2443 = vmatprep.subr.mxu0 0.0
    %2444 = vmatpush1.xpose.msra.mxu0 0.0
    %2445 = vmatprep.subr.mxu0 0.0
    %2446 = vmatpush1.xpose.msra.mxu0 0.0
    %2447 = vmatprep.subr.mxu0 0.0
    %2448 = vmatpush1.xpose.msra.mxu0 0.0
    %2449 = vmatprep.subr.mxu0 0.0
    %2450 = vmatpush1.xpose.msra.mxu0 0.0
    %2451 = vmatprep.subr.mxu0 0.0
    %2452 = vmatpush1.xpose.msra.mxu0 0.0
    %2453 = vmatprep.subr.mxu0 0.0
    %2454 = vmatpush1.xpose.msra.mxu0 0.0
    %2455 = vmatprep.subr.mxu0 0.0
    %2456 = vmatpush1.xpose.msra.mxu0 0.0
    %2457 = vmatprep.subr.mxu0 0.0
    %2458 = vmatpush1.xpose.msra.mxu0 0.0
    %2459 = vmatprep.subr.mxu0 0.0
    %2460 = vmatpush1.xpose.msra.mxu0 0.0
    %2461 = vmatprep.subr.mxu0 0.0
    %2462 = vmatpush1.xpose.msra.mxu0 0.0
    %2463 = vmatprep.subr.mxu0 0.0
    %2464 = vmatpush1.xpose.msra.mxu0 0.0
    %2465 = vmatprep.subr.mxu0 0.0
    %2466 = vmatpush1.xpose.msra.mxu0 0.0
    %2467 = vmatprep.mubr.f32.mxu0 0.0
    %2468 = vmatmul.mubr.f32.gmra.mrb[0].mxu0 %v2398
    %v2469 = vpop.f32.mrb[0].mxu0
    %v2470 = vadd.f32 %v125, %v2469
    %v2471 = vpop.f32.mrb[0].mxu0
    %2472 = vdwg.mxu0
    %v2473 = vsel %vm109, %v2394, -inf
    %2474 = vmax.xlane.f32.xlu0 %v2473
    %v2475 = vpop.xlane.xlu0 %2474
    %v2476 = vsel %vm109, %v2470, -inf
    %2477 = vmax.xlane.f32.xlu0 %v2476
    %v2478 = vpop.xlane.xlu0 %2477
    %v2479 = vsub.f32 %v2394, %v2475
    %v2480 = vsub.f32 %v2470, %v2478
    %v2481 = vmul.f32 %v2479, 1.442695
    %v2482 = vpow.pop %v2481
    %v2483 = vmul.f32 %v2480, 1.442695
    %v2484 = vpow.pop %v2483
    %v2485 = vsel %vm109, %v2482, 0.0
    %2486 = vadd.xlane.f32.xlu0 %v2485
    %v2487 = vpop.xlane.xlu0 %2486
    %v2488 = vsel %vm109, %v2484, 0.0
    %2489 = vadd.xlane.f32.xlu0 %v2488
    %v2490 = vpop.xlane.xlu0 %2489
    %v2491 = vrcp.pop %v2487
    %v2492 = vrcp.pop %v2490
    %v2493 = vmul.f32 %v2487, %v2491
    %v2494 = vmul.f32 %v2490, %v2492
    %v2495 = vsub.f32 2.0, %v2493
    %v2496 = vsub.f32 2.0, %v2494
    %v2497 = vmul.f32 %v2491, %v2495
    %v2498 = vmul.f32 %v2492, %v2496
    %v2499 = vmul.f32 %v2482, %v2497
    %v2500 = vmul.f32 %v2484, %v2498
    %v2502 = vsel %vm109, %v2499, 0
    %2504 = vmatprep.subr.mxu0 0.0
    %2505 = vmatpush1.msra.mxu0 %v2313
    %2506 = vmatprep.subr.mxu0 0.0
    %2507 = vmatpush1.msra.mxu0 0.0
    %2508 = vmatprep.subr.mxu0 0.0
    %2509 = vmatpush1.msra.mxu0 0.0
    %2510 = vmatprep.subr.mxu0 0.0
    %2511 = vmatpush1.msra.mxu0 0.0
    %2512 = vmatprep.subr.mxu0 0.0
    %2513 = vmatpush1.msra.mxu0 0.0
    %2514 = vmatprep.subr.mxu0 0.0
    %2515 = vmatpush1.msra.mxu0 0.0
    %2516 = vmatprep.subr.mxu0 0.0
    %2517 = vmatpush1.msra.mxu0 0.0
    %2518 = vmatprep.subr.mxu0 0.0
    %2519 = vmatpush1.msra.mxu0 0.0
    %2520 = vmatprep.subr.mxu0 0.0
    %2521 = vmatpush1.msra.mxu0 0.0
    %2522 = vmatprep.subr.mxu0 0.0
    %2523 = vmatpush1.msra.mxu0 0.0
    %2524 = vmatprep.subr.mxu0 0.0
    %2525 = vmatpush1.msra.mxu0 0.0
    %2526 = vmatprep.subr.mxu0 0.0
    %2527 = vmatpush1.msra.mxu0 0.0
    %2528 = vmatprep.subr.mxu0 0.0
    %2529 = vmatpush1.msra.mxu0 0.0
    %2530 = vmatprep.subr.mxu0 0.0
    %2531 = vmatpush1.msra.mxu0 0.0
    %2532 = vmatprep.subr.mxu0 0.0
    %2533 = vmatpush1.msra.mxu0 0.0
    %2534 = vmatprep.subr.mxu0 0.0
    %2535 = vmatpush1.msra.mxu0 0.0
    %2536 = vmatprep.subr.mxu0 0.0
    %2537 = vmatpush1.msra.mxu0 0.0
    %2538 = vmatprep.subr.mxu0 0.0
    %2539 = vmatpush1.msra.mxu0 0.0
    %2540 = vmatprep.subr.mxu0 0.0
    %2541 = vmatpush1.msra.mxu0 0.0
    %2542 = vmatprep.subr.mxu0 0.0
    %2543 = vmatpush1.msra.mxu0 0.0
    %2544 = vmatprep.subr.mxu0 0.0
    %2545 = vmatpush1.msra.mxu0 0.0
    %2546 = vmatprep.subr.mxu0 0.0
    %2547 = vmatpush1.msra.mxu0 0.0
    %2548 = vmatprep.subr.mxu0 0.0
    %2549 = vmatpush1.msra.mxu0 0.0
    %2550 = vmatprep.subr.mxu0 0.0
    %2551 = vmatpush1.msra.mxu0 0.0
    %2552 = vmatprep.subr.mxu0 0.0
    %2553 = vmatpush1.msra.mxu0 0.0
    %2554 = vmatprep.subr.mxu0 0.0
    %2555 = vmatpush1.msra.mxu0 0.0
    %2556 = vmatprep.subr.mxu0 0.0
    %2557 = vmatpush1.msra.mxu0 0.0
    %2558 = vmatprep.subr.mxu0 0.0
    %2559 = vmatpush1.msra.mxu0 0.0
    %2560 = vmatprep.subr.mxu0 0.0
    %2561 = vmatpush1.msra.mxu0 0.0
    %2562 = vmatprep.subr.mxu0 0.0
    %2563 = vmatpush1.msra.mxu0 0.0
    %2564 = vmatprep.subr.mxu0 0.0
    %2565 = vmatpush1.msra.mxu0 0.0
    %2566 = vmatprep.subr.mxu0 0.0
    %2567 = vmatpush1.msra.mxu0 0.0
    %2568 = vmatprep.mubr.f32.mxu0 0.0
    %2569 = vmatmul.mubr.f32.gmra.mrb[0].mxu0 %v2502
    %v2570 = vpop.f32.mrb[0].mxu0
    %v2571 = vadd.f32 0.0, %v2570
    %v2572 = vpop.f32.mrb[0].mxu0
    %2573 = vdwg.mxu0
    %v2575 = vsel %vm109, %v2500, 0
    %2577 = vmatprep.subr.mxu0 0.0
    %2578 = vmatpush1.msra.mxu0 %v2318
    %2579 = vmatprep.subr.mxu0 0.0
    %2580 = vmatpush1.msra.mxu0 0.0
    %2581 = vmatprep.subr.mxu0 0.0
    %2582 = vmatpush1.msra.mxu0 0.0
    %2583 = vmatprep.subr.mxu0 0.0
    %2584 = vmatpush1.msra.mxu0 0.0
    %2585 = vmatprep.subr.mxu0 0.0
    %2586 = vmatpush1.msra.mxu0 0.0
    %2587 = vmatprep.subr.mxu0 0.0
    %2588 = vmatpush1.msra.mxu0 0.0
    %2589 = vmatprep.subr.mxu0 0.0
    %2590 = vmatpush1.msra.mxu0 0.0
    %2591 = vmatprep.subr.mxu0 0.0
    %2592 = vmatpush1.msra.mxu0 0.0
    %2593 = vmatprep.subr.mxu0 0.0
    %2594 = vmatpush1.msra.mxu0 0.0
    %2595 = vmatprep.subr.mxu0 0.0
    %2596 = vmatpush1.msra.mxu0 0.0
    %2597 = vmatprep.subr.mxu0 0.0
    %2598 = vmatpush1.msra.mxu0 0.0
    %2599 = vmatprep.subr.mxu0 0.0
    %2600 = vmatpush1.msra.mxu0 0.0
    %2601 = vmatprep.subr.mxu0 0.0
    %2602 = vmatpush1.msra.mxu0 0.0
    %2603 = vmatprep.subr.mxu0 0.0
    %2604 = vmatpush1.msra.mxu0 0.0
    %2605 = vmatprep.subr.mxu0 0.0
    %2606 = vmatpush1.msra.mxu0 0.0
    %2607 = vmatprep.subr.mxu0 0.0
    %2608 = vmatpush1.msra.mxu0 0.0
    %2609 = vmatprep.subr.mxu0 0.0
    %2610 = vmatpush1.msra.mxu0 0.0
    %2611 = vmatprep.subr.mxu0 0.0
    %2612 = vmatpush1.msra.mxu0 0.0
    %2613 = vmatprep.subr.mxu0 0.0
    %2614 = vmatpush1.msra.mxu0 0.0
    %2615 = vmatprep.subr.mxu0 0.0
    %2616 = vmatpush1.msra.mxu0 0.0
    %2617 = vmatprep.subr.mxu0 0.0
    %2618 = vmatpush1.msra.mxu0 0.0
    %2619 = vmatprep.subr.mxu0 0.0
    %2620 = vmatpush1.msra.mxu0 0.0
    %2621 = vmatprep.subr.mxu0 0.0
    %2622 = vmatpush1.msra.mxu0 0.0
    %2623 = vmatprep.subr.mxu0 0.0
    %2624 = vmatpush1.msra.mxu0 0.0
    %2625 = vmatprep.subr.mxu0 0.0
    %2626 = vmatpush1.msra.mxu0 0.0
    %2627 = vmatprep.subr.mxu0 0.0
    %2628 = vmatpush1.msra.mxu0 0.0
    %2629 = vmatprep.subr.mxu0 0.0
    %2630 = vmatpush1.msra.mxu0 0.0
    %2631 = vmatprep.subr.mxu0 0.0
    %2632 = vmatpush1.msra.mxu0 0.0
    %2633 = vmatprep.subr.mxu0 0.0
    %2634 = vmatpush1.msra.mxu0 0.0
    %2635 = vmatprep.subr.mxu0 0.0
    %2636 = vmatpush1.msra.mxu0 0.0
    %2637 = vmatprep.subr.mxu0 0.0
    %2638 = vmatpush1.msra.mxu0 0.0
    %2639 = vmatprep.subr.mxu0 0.0
    %2640 = vmatpush1.msra.mxu0 0.0
    %2641 = vmatprep.mubr.f32.mxu0 0.0
    %2642 = vmatmul.mubr.f32.gmra.mrb[0].mxu0 %v2575
    %v2643 = vpop.f32.mrb[0].mxu0
    %v2644 = vadd.f32 0.0, %v2643
    %v2645 = vpop.f32.mrb[0].mxu0
    %2646 = vdwg.mxu0
    %v2647 = vld [vmem:[%s3 + $0x18] sm:$0xff]
    %v2649 = vsel %vm109, %v2571, 0
    %v2652 = vsel %vm109, %v2644, 0
    %2654 = vmatprep.subr.mxu0 0.0
    %2655 = vmatpush1.msra.mxu0 %v2647
    %2656 = vmatprep.subr.mxu0 0.0
    %2657 = vmatpush1.msra.mxu0 0.0
    %2658 = vmatprep.subr.mxu0 0.0
    %2659 = vmatpush1.msra.mxu0 0.0
    %2660 = vmatprep.subr.mxu0 0.0
    %2661 = vmatpush1.msra.mxu0 0.0
    %2662 = vmatprep.subr.mxu0 0.0
    %2663 = vmatpush1.msra.mxu0 0.0
    %2664 = vmatprep.subr.mxu0 0.0
    %2665 = vmatpush1.msra.mxu0 0.0
    %2666 = vmatprep.subr.mxu0 0.0
    %2667 = vmatpush1.msra.mxu0 0.0
    %2668 = vmatprep.subr.mxu0 0.0
    %2669 = vmatpush1.msra.mxu0 0.0
    %2670 = vmatprep.subr.mxu0 0.0
    %2671 = vmatpush1.msra.mxu0 0.0
    %2672 = vmatprep.subr.mxu0 0.0
    %2673 = vmatpush1.msra.mxu0 0.0
    %2674 = vmatprep.subr.mxu0 0.0
    %2675 = vmatpush1.msra.mxu0 0.0
    %2676 = vmatprep.subr.mxu0 0.0
    %2677 = vmatpush1.msra.mxu0 0.0
    %2678 = vmatprep.subr.mxu0 0.0
    %2679 = vmatpush1.msra.mxu0 0.0
    %2680 = vmatprep.subr.mxu0 0.0
    %2681 = vmatpush1.msra.mxu0 0.0
    %2682 = vmatprep.subr.mxu0 0.0
    %2683 = vmatpush1.msra.mxu0 0.0
    %2684 = vmatprep.subr.mxu0 0.0
    %2685 = vmatpush1.msra.mxu0 0.0
    %2686 = vmatprep.subr.mxu0 0.0
    %2687 = vmatpush1.msra.mxu0 0.0
    %2688 = vmatprep.subr.mxu0 0.0
    %2689 = vmatpush1.msra.mxu0 0.0
    %2690 = vmatprep.subr.mxu0 0.0
    %2691 = vmatpush1.msra.mxu0 0.0
    %2692 = vmatprep.subr.mxu0 0.0
    %2693 = vmatpush1.msra.mxu0 0.0
    %2694 = vmatprep.subr.mxu0 0.0
    %2695 = vmatpush1.msra.mxu0 0.0
    %2696 = vmatprep.subr.mxu0 0.0
    %2697 = vmatpush1.msra.mxu0 0.0
    %2698 = vmatprep.subr.mxu0 0.0
    %2699 = vmatpush1.msra.mxu0 0.0
    %2700 = vmatprep.subr.mxu0 0.0
    %2701 = vmatpush1.msra.mxu0 0.0
    %2702 = vmatprep.subr.mxu0 0.0
    %2703 = vmatpush1.msra.mxu0 0.0
    %2704 = vmatprep.subr.mxu0 0.0
    %2705 = vmatpush1.msra.mxu0 0.0
    %2706 = vmatprep.subr.mxu0 0.0
    %2707 = vmatpush1.msra.mxu0 0.0
    %2708 = vmatprep.subr.mxu0 0.0
    %2709 = vmatpush1.msra.mxu0 0.0
    %2710 = vmatprep.subr.mxu0 0.0
    %2711 = vmatpush1.msra.mxu0 0.0
    %2712 = vmatprep.subr.mxu0 0.0
    %2713 = vmatpush1.msra.mxu0 0.0
    %2714 = vmatprep.subr.mxu0 0.0
    %2715 = vmatpush1.msra.mxu0 0.0
    %2716 = vmatprep.subr.mxu0 0.0
    %2717 = vmatpush1.msra.mxu0 0.0
    %2718 = vmatprep.mubr.f32.mxu0 0.0
    %2719 = vmatmul.mubr.f32.gmra.mrb[0].mxu0 %v2649
    %v2720 = vpop.f32.mrb[0].mxu0
    %v2721 = vadd.f32 0.0, %v2720
    %v2722 = vpop.f32.mrb[0].mxu0
    %2723 = vmatprep.mubr.f32.mxu0 0.0
    %2724 = vmatmul.mubr.f32.gmra.mrb[0].mxu0 %v2652
    %v2725 = vpop.f32.mrb[0].mxu0
    %v2726 = vadd.f32 0.0, %v2725
    %v2727 = vpop.f32.mrb[0].mxu0
    %2728 = vdwg.mxu0
    %v2729 = vadd.f32 %v2079, %v2721
    %v2730 = vadd.f32 %v2080, %v2726
    %v2731 = vsel %vm27, %v2729, 0.0
    %2732 = vadd.xlane.f32.xlu0 %v2731
    %v2733 = vpop.xlane.xlu0 %2732
    %v2734 = vsel %vm27, %v2730, 0.0
    %2735 = vadd.xlane.f32.xlu0 %v2734
    %v2736 = vpop.xlane.xlu0 %2735
    %v2737 = vmul.f32 %v2733, %v34
    %v2738 = vmul.f32 %v2736, %v34
    %v2739 = vsub.f32 %v2729, %v2737
    %v2740 = vsub.f32 %v2730, %v2738
    %v2741 = vmul.f32 %v2739, %v2739
    %v2742 = vmul.f32 %v2740, %v2740
    %v2743 = vsel %vm27, %v2741, 0.0
    %2744 = vadd.xlane.f32.xlu0 %v2743
    %v2745 = vpop.xlane.xlu0 %2744
    %v2746 = vsel %vm27, %v2742, 0.0
    %2747 = vadd.xlane.f32.xlu0 %v2746
    %v2748 = vpop.xlane.xlu0 %2747
    %v2749 = vmul.f32 %v2745, %v34
    %v2750 = vmul.f32 %v2748, %v34
    %v2751 = vadd.f32 %v2749, 1e-06
    %v2752 = vadd.f32 %v2750, 1e-06
    %v2753 = vrsqrt.pop %v2751
    %v2754 = vrsqrt.pop %v2752
    %v2755 = vmul.f32 %v2739, %v2753
    %v2756 = vmul.f32 %v2740, %v2754
    %v2757 = vlaneseq
    %v2758 = vshrl.u32 %v2757, 7
    %v2759 = vsub.s32 0, %v2758
    %v2760 = vrot.slane %v22, %v2759
    %v2761 = vmul.f32 %v2755, %v2760
    %v2762 = vmul.f32 %v2756, %v2760
    %v2763 = vlaneseq
    %v2764 = vshrl.u32 %v2763, 7
    %v2765 = vsub.s32 0, %v2764
    %v2766 = vrot.slane %v23, %v2765
    %v2767 = vadd.f32 %v2761, %v2766
    %v2768 = vadd.f32 %v2762, %v2766
    %v2769 = vld [vmem:[%s3 + $0x20] sm:$0xff]
    %v2770 = vld [vmem:[%s3 + $0x28] sm:$0xff]
    %v2771 = vld [vmem:[%s3 + $0x30] sm:$0xff]
    %v2772 = vld [vmem:[%s3 + $0x38] sm:$0xff]
    %v2773 = vlaneseq
    %v2774 = vshrl.u32 %v2773, 7
    %v2775 = vsub.s32 0, %v2774
    %v2776 = vrot.slane %v25, %v2775
    %v2778 = vsel %vm27, %v2767, 0
    %v2781 = vsel %vm27, %v2768, 0
    %2783 = vmatprep.subr.mxu0 0.0
    %2784 = vmatpush1.msra.mxu0 %v2769
    %2785 = vmatprep.subr.mxu0 0.0
    %2786 = vmatpush1.msra.mxu0 %v2770
    %2787 = vmatprep.subr.mxu0 0.0
    %2788 = vmatpush1.msra.mxu0 %v2771
    %2789 = vmatprep.subr.mxu0 0.0
    %2790 = vmatpush1.msra.mxu0 %v2772
    %2791 = vmatprep.subr.mxu0 0.0
    %2792 = vmatpush1.msra.mxu0 0.0
    %2793 = vmatprep.subr.mxu0 0.0
    %2794 = vmatpush1.msra.mxu0 0.0
    %2795 = vmatprep.subr.mxu0 0.0
    %2796 = vmatpush1.msra.mxu0 0.0
    %2797 = vmatprep.subr.mxu0 0.0
    %2798 = vmatpush1.msra.mxu0 0.0
    %2799 = vmatprep.subr.mxu0 0.0
    %2800 = vmatpush1.msra.mxu0 0.0
    %2801 = vmatprep.subr.mxu0 0.0
    %2802 = vmatpush1.msra.mxu0 0.0
    %2803 = vmatprep.subr.mxu0 0.0
    %2804 = vmatpush1.msra.mxu0 0.0
    %2805 = vmatprep.subr.mxu0 0.0
    %2806 = vmatpush1.msra.mxu0 0.0
    %2807 = vmatprep.subr.mxu0 0.0
    %2808 = vmatpush1.msra.mxu0 0.0
    %2809 = vmatprep.subr.mxu0 0.0
    %2810 = vmatpush1.msra.mxu0 0.0
    %2811 = vmatprep.subr.mxu0 0.0
    %2812 = vmatpush1.msra.mxu0 0.0
    %2813 = vmatprep.subr.mxu0 0.0
    %2814 = vmatpush1.msra.mxu0 0.0
    %2815 = vmatprep.subr.mxu0 0.0
    %2816 = vmatpush1.msra.mxu0 0.0
    %2817 = vmatprep.subr.mxu0 0.0
    %2818 = vmatpush1.msra.mxu0 0.0
    %2819 = vmatprep.subr.mxu0 0.0
    %2820 = vmatpush1.msra.mxu0 0.0
    %2821 = vmatprep.subr.mxu0 0.0
    %2822 = vmatpush1.msra.mxu0 0.0
    %2823 = vmatprep.subr.mxu0 0.0
    %2824 = vmatpush1.msra.mxu0 0.0
    %2825 = vmatprep.subr.mxu0 0.0
    %2826 = vmatpush1.msra.mxu0 0.0
    %2827 = vmatprep.subr.mxu0 0.0
    %2828 = vmatpush1.msra.mxu0 0.0
    %2829 = vmatprep.subr.mxu0 0.0
    %2830 = vmatpush1.msra.mxu0 0.0
    %2831 = vmatprep.subr.mxu0 0.0
    %2832 = vmatpush1.msra.mxu0 0.0
    %2833 = vmatprep.subr.mxu0 0.0
    %2834 = vmatpush1.msra.mxu0 0.0
    %2835 = vmatprep.subr.mxu0 0.0
    %2836 = vmatpush1.msra.mxu0 0.0
    %2837 = vmatprep.subr.mxu0 0.0
    %2838 = vmatpush1.msra.mxu0 0.0
    %2839 = vmatprep.subr.mxu0 0.0
    %2840 = vmatpush1.msra.mxu0 0.0
    %2841 = vmatprep.subr.mxu0 0.0
    %2842 = vmatpush1.msra.mxu0 0.0
    %2843 = vmatprep.subr.mxu0 0.0
    %2844 = vmatpush1.msra.mxu0 0.0
    %2845 = vmatprep.subr.mxu0 0.0
    %2846 = vmatpush1.msra.mxu0 0.0
    %2847 = vmatprep.mubr.f32.mxu0 0.0
    %2848 = vmatmul.mubr.f32.gmra.mrb[0].mxu0 %v2778
    %v2849 = vpop.f32.mrb[0].mxu0
    %v2850 = vadd.f32 %v2776, %v2849
    %v2851 = vpop.f32.mrb[0].mxu0
    %2852 = vmatprep.mubr.f32.mxu0 0.0
    %2853 = vmatmul.mubr.f32.gmra.mrb[0].mxu0 %v2781
    %v2854 = vpop.f32.mrb[0].mxu0
    %v2855 = vadd.f32 %v2776, %v2854
    %v2856 = vpop.f32.mrb[0].mxu0
    %2857 = vdwg.mxu0
    %v2858 = vmax.f32 %v2850, 0.0
    %v2859 = vmax.f32 %v2855, 0.0
    %v2860 = vld [vmem:[%s3 + $0x40] sm:$0xff]
    %v2861 = vld [vmem:[%s3 + $0x48] sm:$0xff]
    %v2862 = vld [vmem:[%s3 + $0x50] sm:$0xff]
    %v2863 = vld [vmem:[%s3 + $0x58] sm:$0xff]
    %v2864 = vld [vmem:[%s3 + $0x60] sm:$0xff]
    %v2865 = vld [vmem:[%s3 + $0x68] sm:$0xff]
    %v2866 = vld [vmem:[%s3 + $0x70] sm:$0xff]
    %v2867 = vld [vmem:[%s3 + $0x78] sm:$0xff]
    %v2868 = vlaneseq
    %v2869 = vshrl.u32 %v2868, 7
    %v2870 = vsub.s32 0, %v2869
    %v2871 = vrot.slane %v24, %v2870
    %vm2872 = vcmask 523264
    %v2874 = vsel %vm2872, %v2858, 0
    %v2877 = vsel %vm2872, %v2859, 0
    %2879 = vmatprep.subr.mxu0 0.0
    %2880 = vmatpush1.msra.mxu0 %v2860
    %2881 = vmatprep.subr.mxu0 0.0
    %2882 = vmatpush1.msra.mxu0 %v2861
    %2883 = vmatprep.subr.mxu0 0.0
    %2884 = vmatpush1.msra.mxu0 %v2862
    %2885 = vmatprep.subr.mxu0 0.0
    %2886 = vmatpush1.msra.mxu0 %v2863
    %2887 = vmatprep.subr.mxu0 0.0
    %2888 = vmatpush1.msra.mxu0 %v2864
    %2889 = vmatprep.subr.mxu0 0.0
    %2890 = vmatpush1.msra.mxu0 %v2865
    %2891 = vmatprep.subr.mxu0 0.0
    %2892 = vmatpush1.msra.mxu0 %v2866
    %2893 = vmatprep.subr.mxu0 0.0
    %2894 = vmatpush1.msra.mxu0 %v2867
    %2895 = vmatprep.subr.mxu0 0.0
    %2896 = vmatpush1.msra.mxu0 0.0
    %2897 = vmatprep.subr.mxu0 0.0
    %2898 = vmatpush1.msra.mxu0 0.0
    %2899 = vmatprep.subr.mxu0 0.0
    %2900 = vmatpush1.msra.mxu0 0.0
    %2901 = vmatprep.subr.mxu0 0.0
    %2902 = vmatpush1.msra.mxu0 0.0
    %2903 = vmatprep.subr.mxu0 0.0
    %2904 = vmatpush1.msra.mxu0 0.0
    %2905 = vmatprep.subr.mxu0 0.0
    %2906 = vmatpush1.msra.mxu0 0.0
    %2907 = vmatprep.subr.mxu0 0.0
    %2908 = vmatpush1.msra.mxu0 0.0
    %2909 = vmatprep.subr.mxu0 0.0
    %2910 = vmatpush1.msra.mxu0 0.0
    %2911 = vmatprep.subr.mxu0 0.0
    %2912 = vmatpush1.msra.mxu0 0.0
    %2913 = vmatprep.subr.mxu0 0.0
    %2914 = vmatpush1.msra.mxu0 0.0
    %2915 = vmatprep.subr.mxu0 0.0
    %2916 = vmatpush1.msra.mxu0 0.0
    %2917 = vmatprep.subr.mxu0 0.0
    %2918 = vmatpush1.msra.mxu0 0.0
    %2919 = vmatprep.subr.mxu0 0.0
    %2920 = vmatpush1.msra.mxu0 0.0
    %2921 = vmatprep.subr.mxu0 0.0
    %2922 = vmatpush1.msra.mxu0 0.0
    %2923 = vmatprep.subr.mxu0 0.0
    %2924 = vmatpush1.msra.mxu0 0.0
    %2925 = vmatprep.subr.mxu0 0.0
    %2926 = vmatpush1.msra.mxu0 0.0
    %2927 = vmatprep.subr.mxu0 0.0
    %2928 = vmatpush1.msra.mxu0 0.0
    %2929 = vmatprep.subr.mxu0 0.0
    %2930 = vmatpush1.msra.mxu0 0.0
    %2931 = vmatprep.subr.mxu0 0.0
    %2932 = vmatpush1.msra.mxu0 0.0
    %2933 = vmatprep.subr.mxu0 0.0
    %2934 = vmatpush1.msra.mxu0 0.0
    %2935 = vmatprep.subr.mxu0 0.0
    %2936 = vmatpush1.msra.mxu0 0.0
    %2937 = vmatprep.subr.mxu0 0.0
    %2938 = vmatpush1.msra.mxu0 0.0
    %2939 = vmatprep.subr.mxu0 0.0
    %2940 = vmatpush1.msra.mxu0 0.0
    %2941 = vmatprep.subr.mxu0 0.0
    %2942 = vmatpush1.msra.mxu0 0.0
    %2943 = vmatprep.mubr.f32.mxu0 0.0
    %2944 = vmatmul.mubr.f32.gmra.mrb[0].mxu0 %v2874
    %v2945 = vpop.f32.mrb[0].mxu0
    %v2946 = vadd.f32 %v2871, %v2945
    %v2947 = vpop.f32.mrb[0].mxu0
    %2948 = vmatprep.mubr.f32.mxu0 0.0
    %2949 = vmatmul.mubr.f32.gmra.mrb[0].mxu0 %v2877
    %v2950 = vpop.f32.mrb[0].mxu0
    %v2951 = vadd.f32 %v2871, %v2950
    %v2952 = vpop.f32.mrb[0].mxu0
    %2953 = vdwg.mxu0
    %v2954 = vadd.f32 %v2946, %v2729
    %v2955 = vadd.f32 %v2951, %v2730
    %2956 = vrot.lane.b32.xlu0 %v549, 32
    %v2957 = vpop.permute.xlu0 %2956
    %2958 = vrot.lane.b32.xlu0 %v550, 32
    %v2959 = vpop.permute.xlu0 %2958
    %v2962 = vsel %vm27, %v2954, %v2957
    %v2963 = vsel %vm27, %v2955, %v2959
    %vm2964 = vcmask 326656
    %2965 = vst.msk [vmem:[#allocation2] sm:$0xff] %vm2964, %v2962
    %2966 = vst.msk [vmem:[#allocation2 + $0x8] sm:$0xff] %vm2964, %v2963
    // Predicated region
    $region18: #{tpu_custom_call.1} parent=1 // pred_check
      _
    $region19: #{tpu_custom_call.1} parent=1 // pred_check_branch
      %2968 = sbr.rel (0) target = $region21
    $region20: #{tpu_custom_call.1} parent=1 // pred_region
      %s2970 = ssub.s32 256, 256
      %2971 = vsyncadd [#allocation3], %s2970
      %s2972 = sshll.u32 [#allocation2], 4
      %s2973 = int_to_ptr.vmem [resolvable:$true] %s2972
      %2978 = dma.vmem_to_hbm [thread:$0]  %s2973, 256, %s4, [#allocation3], 128, 128, 8
    $region21: #{tpu_custom_call.1} parent=1 // pred_fallthru
      _
    // Predicated region
    $region22: #{tpu_custom_call.1} parent=1 // pred_check
      _
    $region23: #{tpu_custom_call.1} parent=1 // pred_check_branch
      %2980 = sbr.rel (0) target = $region25
    $region24: #{tpu_custom_call.1} parent=1 // pred_region
      %2981 = dma.done [#allocation3], 256
    $region25: #{tpu_custom_call.1} parent=1 // pred_fallthru
      _
    %2982 = vsyncpa [#allocation3], 1

</llo_original>
